<compile_context>
chip_gen: v5e
topology: v5e:2x2
jax: 0.10.0
libtpu: 0.0.40
codegen_flags: <defaults>
</compile_context>

<pallas_src>
import numpy as np

import jax
import jax.numpy as jnp
from jax import lax
from jax.experimental import pallas as pl
from jax.experimental.pallas import tpu as pltpu


# ----------------------------------------------------------------------------
# Fused Pallas kernel: conv1 -> pool -> conv2 -> pool -> fc1 -> fc2 -> fc3
# ----------------------------------------------------------------------------
def _fused_net_kernel(x_ref, w1_ref, b1_ref, w2_ref, b2_ref,
                      fw1_ref, fb1_ref, fw2_ref, fb2_ref, fw3_ref, fb3_ref,
                      o_ref):
    """One batch tile of Bt images.

    x_ref:   (32, Bt, 128) bf16   input rows, cols = w*3+c (96 real, pad 0)
    w1_ref:  (10, 128, 128) bf16  conv1 banded weights, plane = di*2 + s
    b1_ref:  (1, 128) f32         conv1 bias tiled over pooled width (84 real)
    w2_ref:  (10, 128, 128) bf16  conv2 banded weights
    b2_ref:  (1, 128) f32         conv2 bias tiled over pooled width (80 real)
    fw1_ref: (5, 128, 128) bf16   fc1 weights split by feature row h
    fb*_ref: (1, 128) f32         fc biases (lane-padded)
    fw2/3:   (128, 128) bf16      fc2 / fc3 weights (lane-padded)
    o_ref:   (Bt, 128) f32        logits (cols 0..9 real)
    """
    bt = x_ref.shape[1]
    f32 = jnp.float32

    # Rows ordered (h, b): row h*bt + b is input row h of image b.
    xf = x_ref[...].reshape(32 * bt, 128)

    # ---- conv1 (5x5 valid) + bias + ReLU + 2x2/2 max pool ------------------
    acc0 = jnp.zeros((28 * bt, 128), f32)
    acc1 = jnp.zeros((28 * bt, 128), f32)
    for di in range(5):
        lhs = xf[di * bt:(di + 28) * bt]                   # (28*Bt, 128)
        acc0 += jnp.dot(lhs, w1_ref[2 * di + 0], preferred_element_type=f32)
        acc1 += jnp.dot(lhs, w1_ref[2 * di + 1], preferred_element_type=f32)
    m = jnp.maximum(jnp.maximum(acc0, acc1) + b1_ref[...], 0.0)   # W pool+bias+ReLU
    m = m.reshape(14, 2 * bt, 128)
    y1 = jnp.maximum(m[:, :bt, :], m[:, bt:, :])           # H pool -> (14, Bt, 128)
    y1f = y1.reshape(14 * bt, 128).astype(jnp.bfloat16)

    # ---- conv2 (5x5 valid) + bias + ReLU + 2x2/2 max pool ------------------
    acc0 = jnp.zeros((10 * bt, 128), f32)
    acc1 = jnp.zeros((10 * bt, 128), f32)
    for di in range(5):
        lhs = y1f[di * bt:(di + 10) * bt]                  # (10*Bt, 128)
        acc0 += jnp.dot(lhs, w2_ref[2 * di + 0], preferred_element_type=f32)
        acc1 += jnp.dot(lhs, w2_ref[2 * di + 1], preferred_element_type=f32)
    m2 = jnp.maximum(jnp.maximum(acc0, acc1) + b2_ref[...], 0.0)
    m2 = m2.reshape(5, 2 * bt, 128)
    y2 = jnp.maximum(m2[:, :bt, :], m2[:, bt:, :]).astype(jnp.bfloat16)  # (5,Bt,128)

    # ---- fc1 -> ReLU -> fc2 -> ReLU -> fc3 ----------------------------------
    h = jnp.zeros((bt, 128), f32)
    for r in range(5):                                     # sum over feature rows
        h += jnp.dot(y2[r], fw1_ref[r], preferred_element_type=f32)
    h = jnp.maximum(h + fb1_ref[...], 0.0).astype(jnp.bfloat16)
    h = jnp.dot(h, fw2_ref[...], preferred_element_type=f32)
    h = jnp.maximum(h + fb2_ref[...], 0.0).astype(jnp.bfloat16)
    h = jnp.dot(h, fw3_ref[...], preferred_element_type=f32)
    o_ref[...] = h + fb3_ref[...]


# ----------------------------------------------------------------------------
# pallas_call wrapper
# ----------------------------------------------------------------------------
def _fused_forward_call(x_pad, kp, bt):
    _, bpad, _ = x_pad.shape                               # (32, Bpad, 128)
    ntiles = bpad // bt

    flops = 2 * ntiles * bt * 128 * 128 * (10 * 28 + 10 * 10 + 5 + 1 + 1)
    weight_bytes = sum(int(np.prod(v.shape)) * v.dtype.itemsize
                       for v in kp.values())
    bytes_accessed = int(np.prod(x_pad.shape)) * 2 + weight_bytes + bpad * 128 * 4

    full2 = lambda i: (0, 0)
    full3 = lambda i: (0, 0, 0)

    return pl.pallas_call(
        _fused_net_kernel,
        out_shape=jax.ShapeDtypeStruct((bpad, 128), jnp.float32),
        grid=(ntiles,),
        in_specs=[
            pl.BlockSpec((32, bt, 128), lambda i: (0, i, 0)),   # input tile
            pl.BlockSpec((10, 128, 128), full3),                # conv1 banded w
            pl.BlockSpec((1, 128), full2),                      # conv1 bias row
            pl.BlockSpec((10, 128, 128), full3),                # conv2 banded w
            pl.BlockSpec((1, 128), full2),                      # conv2 bias row
            pl.BlockSpec((5, 128, 128), full3),                 # fc1 (split by h)
            pl.BlockSpec((1, 128), full2),                      # fc1 bias
            pl.BlockSpec((128, 128), full2),                    # fc2
            pl.BlockSpec((1, 128), full2),                      # fc2 bias
            pl.BlockSpec((128, 128), full2),                    # fc3
            pl.BlockSpec((1, 128), full2),                      # fc3 bias
        ],
        out_specs=pl.BlockSpec((bt, 128), lambda i: (i, 0)),
        compiler_params=pltpu.CompilerParams(
            dimension_semantics=("parallel",)),
        cost_estimate=pl.CostEstimate(flops=flops, transcendentals=0,
                                      bytes_accessed=bytes_accessed),
    )(x_pad, kp["conv1_wb"], kp["conv1_brow"],
      kp["conv2_wb"], kp["conv2_brow"],
      kp["fc1_w"], kp["fc1_b"], kp["fc2_w"], kp["fc2_b"],
      kp["fc3_w"], kp["fc3_b"])


# ----------------------------------------------------------------------------
# Static parameter preparation (torch layout -> kernel layout, done once)
# ----------------------------------------------------------------------------
def _banded_conv_weight(w_oihw, W, k_pad, n_pad):
    """(Cout,Cin,k,k) torch conv weight -> (2k, k_pad, n_pad) bf16 banded weights.

    Plane di*2+s: kernel row di, output-column parity s (for W pooling).
    K index = w_in*Cin + c (row layout of the activations); N = wp*Cout + co.
    Rows/cols beyond the real extents are zero (lane padding to 128).
    """
    Cout, Cin, k, _ = w_oihw.shape
    Wo = W - k + 1
    Wp = Wo // 2
    w_np = np.asarray(w_oihw, np.float32)
    out = np.zeros((2 * k, k_pad, n_pad), np.float32)
    for di in range(k):
        for s in range(2):
            for wp in range(Wp):
                for dj in range(k):
                    w_in = 2 * wp + s + dj
                    out[di * 2 + s,
                        w_in * Cin:(w_in + 1) * Cin,
                        wp * Cout:(wp + 1) * Cout] = w_np[:, :, di, dj].T
    return jnp.asarray(out, jnp.bfloat16)


def _bias_row(b, wp, n_pad):
    b_np = np.asarray(b, np.float32)
    row = np.zeros((1, n_pad), np.float32)
    row[0, :wp * b_np.shape[0]] = np.tile(b_np, wp)
    return jnp.asarray(row)


def _pad_row(b, n_pad):
    b_np = np.asarray(b, np.float32)
    row = np.zeros((1, n_pad), np.float32)
    row[0, :b_np.shape[0]] = b_np
    return jnp.asarray(row)


def _pad2(a, rows, cols, dtype=jnp.bfloat16):
    a_np = np.asarray(a, np.float32)
    out = np.zeros((rows, cols), np.float32)
    out[:a_np.shape[0], :a_np.shape[1]] = a_np
    return jnp.asarray(out, dtype)


def _fc1_weight_split(fc1_w, n_pad=128):
    """torch fc1 weight (120, 400) -> (5, 128, 128) bf16, split by feature row h.

    Folds torch's NCHW flatten (j = c*25 + h*5 + w) into the per-row weight
    slabs; the kernel's conv2 output row h has columns w*16 + c (80 real).
    """
    w_np = np.asarray(fc1_w, np.float32)          # (120, 400)
    out = np.zeros((5, 128, n_pad), np.float32)
    for h in range(5):
        for w in range(5):
            for c in range(16):
                out[h, w * 16 + c, :120] = w_np[:, c * 25 + h * 5 + w]
    return jnp.asarray(out, jnp.bfloat16)


def prepare_params(p):
    """One-time static transforms of torch-layout params into kernel layout."""
    return {
        "conv1_wb": _banded_conv_weight(p["conv1_w"], 32, 128, 128),  # (10,128,128)
        "conv1_brow": _bias_row(p["conv1_b"], 14, 128),               # (1,128)
        "conv2_wb": _banded_conv_weight(p["conv2_w"], 14, 128, 128),  # (10,128,128)
        "conv2_brow": _bias_row(p["conv2_b"], 5, 128),                # (1,128)
        "fc1_w": _fc1_weight_split(p["fc1_w"]),                       # (5,128,128)
        "fc1_b": _pad_row(p["fc1_b"], 128),
        "fc2_w": _pad2(p["fc2_w"].T, 128, 128),
        "fc2_b": _pad_row(p["fc2_b"], 128),
        "fc3_w": _pad2(p["fc3_w"].T, 128, 128),
        "fc3_b": _pad_row(p["fc3_b"], 128),
    }


# ----------------------------------------------------------------------------
# Model
# ----------------------------------------------------------------------------
def init_params(key):
    """PyTorch-default-style init, stored in torch layouts (OIHW / (out,in))."""
    def u(k, shape, fan_in):
        bound = 1.0 / float(np.sqrt(fan_in))
        return jax.random.uniform(k, shape, jnp.float32, -bound, bound)

    ks = jax.random.split(key, 10)
    return {
        "conv1_w": u(ks[0], (6, 3, 5, 5), 75), "conv1_b": u(ks[1], (6,), 75),
        "conv2_w": u(ks[2], (16, 6, 5, 5), 150), "conv2_b": u(ks[3], (16,), 150),
        "fc1_w": u(ks[4], (120, 400), 400), "fc1_b": u(ks[5], (120,), 400),
        "fc2_w": u(ks[6], (84, 120), 120), "fc2_b": u(ks[7], (84,), 120),
        "fc3_w": u(ks[8], (10, 84), 84), "fc3_b": u(ks[9], (10,), 84),
    }


def net_cifar10_forward(x_nchw, kp):
    B = x_nchw.shape[0]
    # Batch tile: multiple of 16 (clean bf16 sublane tiling), capped at 32.
    bt = 16 if B <= 16 else 32
    bpad = ((B + bt - 1) // bt) * bt

    # NCHW -> (H, B, W*Cin) bf16; pad batch to a tile multiple, lanes to 128.
    # This single layout transform of the raw input (plus the output slice
    # below) is the only XLA glue left around the fused kernel.
    x = jnp.transpose(x_nchw, (2, 0, 3, 1)).astype(jnp.bfloat16)   # (32,B,32,3)
    x = x.reshape(32, B, 96)
    x = jnp.pad(x, ((0, 0), (0, bpad - B), (0, 128 - 96)))         # (32,Bpad,128)

    logits = _fused_forward_call(x, kp, bt)                        # (Bpad,128)
    return logits[:B, :10]


# ----------------------------------------------------------------------------
# Pure-JAX reference (f32, torch semantics) for validation
# ----------------------------------------------------------------------------
def reference_forward(x, p):
    def conv(x, w, b):
        y = lax.conv_general_dilated(x, w, (1, 1), "VALID",
                                     dimension_numbers=("NCHW", "OIHW", "NCHW"))
        return y + b[None, :, None, None]

    def pool(x):
        return lax.reduce_window(x, -jnp.inf, lax.max,
                                 (1, 1, 2, 2), (1, 1, 2, 2), "VALID")

    x = pool(jnp.maximum(conv(x, p["conv1_w"], p["conv1_b"]), 0.0))
    x = pool(jnp.maximum(conv(x, p["conv2_w"], p["conv2_b"]), 0.0))
    x = x.reshape(x.shape[0], -1)
    x = jnp.maximum(x @ p["fc1_w"].T + p["fc1_b"], 0.0)
    x = jnp.maximum(x @ p["fc2_w"].T + p["fc2_b"], 0.0)
    return x @ p["fc3_w"].T + p["fc3_b"]


if __name__ == "__main__":
    key = jax.random.PRNGKey(0)
    k_in, k_params = jax.random.split(key)
    # 16*5*5 flatten implies CIFAR-sized 32x32 input: (B, 3, 32, 32)
    x = jax.random.normal(k_in, (2, 3, 32, 32), dtype=jnp.float32)
    params = init_params(k_params)
    kparams = prepare_params(params)

    fwd = jax.jit(net_cifar10_forward)
    out = jax.block_until_ready(fwd(x, kparams))
    assert out.shape == (2, 10) and out.dtype == jnp.float32

    ref = reference_forward(x, params)
    err = float(jnp.max(jnp.abs(out - ref)))
    assert err < 5e-2, f"mismatch vs f32 reference: max abs err {err}"
    print("KERNEL_OK")
</pallas_src>

<mosaic_0001>
module attributes {stable_mosaic.version = 11 : i64} {
  func.func @_fused_net_kernel(%arg0: i32, %arg1: memref<32x16x128xbf16, #tpu.memory_space<vmem>>, %arg2: memref<10x128x128xbf16, #tpu.memory_space<vmem>>, %arg3: memref<1x128xf32, #tpu.memory_space<vmem>>, %arg4: memref<10x128x128xbf16, #tpu.memory_space<vmem>>, %arg5: memref<1x128xf32, #tpu.memory_space<vmem>>, %arg6: memref<5x128x128xbf16, #tpu.memory_space<vmem>>, %arg7: memref<1x128xf32, #tpu.memory_space<vmem>>, %arg8: memref<128x128xbf16, #tpu.memory_space<vmem>>, %arg9: memref<1x128xf32, #tpu.memory_space<vmem>>, %arg10: memref<128x128xbf16, #tpu.memory_space<vmem>>, %arg11: memref<1x128xf32, #tpu.memory_space<vmem>>, %arg12: memref<16x128xf32, #tpu.memory_space<vmem>>) attributes {dimension_semantics = [#tpu.dimension_semantics<parallel>], iteration_bounds = array<i64: 1>, scalar_prefetch = 0 : i64, scratch_operands = 0 : i64, tpu.core_type = #tpu.core_type<tc>, window_params = [{transform_indices = @transform_0, window_bounds = array<i64: 32, 16, 128>}, {pipeline_mode = #tpu.pipeline_mode<synchronous>, transform_indices = @transform_1, window_bounds = array<i64: 10, 128, 128>}, {pipeline_mode = #tpu.pipeline_mode<synchronous>, transform_indices = @transform_2, window_bounds = array<i64: 1, 128>}, {pipeline_mode = #tpu.pipeline_mode<synchronous>, transform_indices = @transform_3, window_bounds = array<i64: 10, 128, 128>}, {pipeline_mode = #tpu.pipeline_mode<synchronous>, transform_indices = @transform_4, window_bounds = array<i64: 1, 128>}, {pipeline_mode = #tpu.pipeline_mode<synchronous>, transform_indices = @transform_5, window_bounds = array<i64: 5, 128, 128>}, {pipeline_mode = #tpu.pipeline_mode<synchronous>, transform_indices = @transform_6, window_bounds = array<i64: 1, 128>}, {pipeline_mode = #tpu.pipeline_mode<synchronous>, transform_indices = @transform_7, window_bounds = array<i64: 128, 128>}, {pipeline_mode = #tpu.pipeline_mode<synchronous>, transform_indices = @transform_8, window_bounds = array<i64: 1, 128>}, {pipeline_mode = #tpu.pipeline_mode<synchronous>, transform_indices = @transform_9, window_bounds = array<i64: 128, 128>}, {pipeline_mode = #tpu.pipeline_mode<synchronous>, transform_indices = @transform_10, window_bounds = array<i64: 1, 128>}, {transform_indices = @transform_11, window_bounds = array<i64: 16, 128>}]} {
    %c0 = arith.constant 0 : index
    %c0_0 = arith.constant 0 : index
    %c0_1 = arith.constant 0 : index
    %0 = vector.load %arg1[%c0, %c0_0, %c0_1] : memref<32x16x128xbf16, #tpu.memory_space<vmem>>, vector<32x16x128xbf16>
    %1 = vector.shape_cast %0 : vector<32x16x128xbf16> to vector<512x128xbf16>
    %cst = arith.constant 0.000000e+00 : f32
    %2 = vector.broadcast %cst : f32 to vector<448x128xf32>
    %cst_2 = arith.constant 0.000000e+00 : f32
    %3 = vector.broadcast %cst_2 : f32 to vector<448x128xf32>
    %4 = vector.extract_strided_slice %1 {offsets = [0, 0], sizes = [448, 128], strides = [1, 1]} : vector<512x128xbf16> to vector<448x128xbf16>
    %c0_3 = arith.constant 0 : index
    %c0_4 = arith.constant 0 : index
    %c0_5 = arith.constant 0 : index
    %5 = vector.load %arg2[%c0_3, %c0_4, %c0_5] : memref<10x128x128xbf16, #tpu.memory_space<vmem>>, vector<1x128x128xbf16>
    %6 = vector.shape_cast %5 : vector<1x128x128xbf16> to vector<128x128xbf16>
    %cst_6 = arith.constant dense<0.000000e+00> : vector<448x128xf32>
    %7 = tpu.matmul %4, %6, %cst_6 {dimension_numbers = #tpu.dot_dimension_numbers<[1], [0], [0], [1], [0, 0, 1, 1], [], []>} : vector<448x128xbf16>, vector<128x128xbf16>, vector<448x128xf32> -> vector<448x128xf32>
    %8 = arith.addf %2, %7 : vector<448x128xf32>
    %c1 = arith.constant 1 : index
    %c0_7 = arith.constant 0 : index
    %c0_8 = arith.constant 0 : index
    %9 = vector.load %arg2[%c1, %c0_7, %c0_8] : memref<10x128x128xbf16, #tpu.memory_space<vmem>>, vector<1x128x128xbf16>
    %10 = vector.shape_cast %9 : vector<1x128x128xbf16> to vector<128x128xbf16>
    %cst_9 = arith.constant dense<0.000000e+00> : vector<448x128xf32>
    %11 = tpu.matmul %4, %10, %cst_9 {dimension_numbers = #tpu.dot_dimension_numbers<[1], [0], [0], [1], [0, 0, 1, 1], [], []>} : vector<448x128xbf16>, vector<128x128xbf16>, vector<448x128xf32> -> vector<448x128xf32>
    %12 = arith.addf %3, %11 : vector<448x128xf32>
    %13 = vector.extract_strided_slice %1 {offsets = [16, 0], sizes = [448, 128], strides = [1, 1]} : vector<512x128xbf16> to vector<448x128xbf16>
    %c2 = arith.constant 2 : index
    %c0_10 = arith.constant 0 : index
    %c0_11 = arith.constant 0 : index
    %14 = vector.load %arg2[%c2, %c0_10, %c0_11] : memref<10x128x128xbf16, #tpu.memory_space<vmem>>, vector<1x128x128xbf16>
    %15 = vector.shape_cast %14 : vector<1x128x128xbf16> to vector<128x128xbf16>
    %cst_12 = arith.constant dense<0.000000e+00> : vector<448x128xf32>
    %16 = tpu.matmul %13, %15, %cst_12 {dimension_numbers = #tpu.dot_dimension_numbers<[1], [0], [0], [1], [0, 0, 1, 1], [], []>} : vector<448x128xbf16>, vector<128x128xbf16>, vector<448x128xf32> -> vector<448x128xf32>
    %17 = arith.addf %8, %16 : vector<448x128xf32>
    %c3 = arith.constant 3 : index
    %c0_13 = arith.constant 0 : index
    %c0_14 = arith.constant 0 : index
    %18 = vector.load %arg2[%c3, %c0_13, %c0_14] : memref<10x128x128xbf16, #tpu.memory_space<vmem>>, vector<1x128x128xbf16>
    %19 = vector.shape_cast %18 : vector<1x128x128xbf16> to vector<128x128xbf16>
    %cst_15 = arith.constant dense<0.000000e+00> : vector<448x128xf32>
    %20 = tpu.matmul %13, %19, %cst_15 {dimension_numbers = #tpu.dot_dimension_numbers<[1], [0], [0], [1], [0, 0, 1, 1], [], []>} : vector<448x128xbf16>, vector<128x128xbf16>, vector<448x128xf32> -> vector<448x128xf32>
    %21 = arith.addf %12, %20 : vector<448x128xf32>
    %22 = vector.extract_strided_slice %1 {offsets = [32, 0], sizes = [448, 128], strides = [1, 1]} : vector<512x128xbf16> to vector<448x128xbf16>
    %c4 = arith.constant 4 : index
    %c0_16 = arith.constant 0 : index
    %c0_17 = arith.constant 0 : index
    %23 = vector.load %arg2[%c4, %c0_16, %c0_17] : memref<10x128x128xbf16, #tpu.memory_space<vmem>>, vector<1x128x128xbf16>
    %24 = vector.shape_cast %23 : vector<1x128x128xbf16> to vector<128x128xbf16>
    %cst_18 = arith.constant dense<0.000000e+00> : vector<448x128xf32>
    %25 = tpu.matmul %22, %24, %cst_18 {dimension_numbers = #tpu.dot_dimension_numbers<[1], [0], [0], [1], [0, 0, 1, 1], [], []>} : vector<448x128xbf16>, vector<128x128xbf16>, vector<448x128xf32> -> vector<448x128xf32>
    %26 = arith.addf %17, %25 : vector<448x128xf32>
    %c5 = arith.constant 5 : index
    %c0_19 = arith.constant 0 : index
    %c0_20 = arith.constant 0 : index
    %27 = vector.load %arg2[%c5, %c0_19, %c0_20] : memref<10x128x128xbf16, #tpu.memory_space<vmem>>, vector<1x128x128xbf16>
    %28 = vector.shape_cast %27 : vector<1x128x128xbf16> to vector<128x128xbf16>
    %cst_21 = arith.constant dense<0.000000e+00> : vector<448x128xf32>
    %29 = tpu.matmul %22, %28, %cst_21 {dimension_numbers = #tpu.dot_dimension_numbers<[1], [0], [0], [1], [0, 0, 1, 1], [], []>} : vector<448x128xbf16>, vector<128x128xbf16>, vector<448x128xf32> -> vector<448x128xf32>
    %30 = arith.addf %21, %29 : vector<448x128xf32>
    %31 = vector.extract_strided_slice %1 {offsets = [48, 0], sizes = [448, 128], strides = [1, 1]} : vector<512x128xbf16> to vector<448x128xbf16>
    %c6 = arith.constant 6 : index
    %c0_22 = arith.constant 0 : index
    %c0_23 = arith.constant 0 : index
    %32 = vector.load %arg2[%c6, %c0_22, %c0_23] : memref<10x128x128xbf16, #tpu.memory_space<vmem>>, vector<1x128x128xbf16>
    %33 = vector.shape_cast %32 : vector<1x128x128xbf16> to vector<128x128xbf16>
    %cst_24 = arith.constant dense<0.000000e+00> : vector<448x128xf32>
    %34 = tpu.matmul %31, %33, %cst_24 {dimension_numbers = #tpu.dot_dimension_numbers<[1], [0], [0], [1], [0, 0, 1, 1], [], []>} : vector<448x128xbf16>, vector<128x128xbf16>, vector<448x128xf32> -> vector<448x128xf32>
    %35 = arith.addf %26, %34 : vector<448x128xf32>
    %c7 = arith.constant 7 : index
    %c0_25 = arith.constant 0 : index
    %c0_26 = arith.constant 0 : index
    %36 = vector.load %arg2[%c7, %c0_25, %c0_26] : memref<10x128x128xbf16, #tpu.memory_space<vmem>>, vector<1x128x128xbf16>
    %37 = vector.shape_cast %36 : vector<1x128x128xbf16> to vector<128x128xbf16>
    %cst_27 = arith.constant dense<0.000000e+00> : vector<448x128xf32>
    %38 = tpu.matmul %31, %37, %cst_27 {dimension_numbers = #tpu.dot_dimension_numbers<[1], [0], [0], [1], [0, 0, 1, 1], [], []>} : vector<448x128xbf16>, vector<128x128xbf16>, vector<448x128xf32> -> vector<448x128xf32>
    %39 = arith.addf %30, %38 : vector<448x128xf32>
    %40 = vector.extract_strided_slice %1 {offsets = [64, 0], sizes = [448, 128], strides = [1, 1]} : vector<512x128xbf16> to vector<448x128xbf16>
    %c8 = arith.constant 8 : index
    %c0_28 = arith.constant 0 : index
    %c0_29 = arith.constant 0 : index
    %41 = vector.load %arg2[%c8, %c0_28, %c0_29] : memref<10x128x128xbf16, #tpu.memory_space<vmem>>, vector<1x128x128xbf16>
    %42 = vector.shape_cast %41 : vector<1x128x128xbf16> to vector<128x128xbf16>
    %cst_30 = arith.constant dense<0.000000e+00> : vector<448x128xf32>
    %43 = tpu.matmul %40, %42, %cst_30 {dimension_numbers = #tpu.dot_dimension_numbers<[1], [0], [0], [1], [0, 0, 1, 1], [], []>} : vector<448x128xbf16>, vector<128x128xbf16>, vector<448x128xf32> -> vector<448x128xf32>
    %44 = arith.addf %35, %43 : vector<448x128xf32>
    %c9 = arith.constant 9 : index
    %c0_31 = arith.constant 0 : index
    %c0_32 = arith.constant 0 : index
    %45 = vector.load %arg2[%c9, %c0_31, %c0_32] : memref<10x128x128xbf16, #tpu.memory_space<vmem>>, vector<1x128x128xbf16>
    %46 = vector.shape_cast %45 : vector<1x128x128xbf16> to vector<128x128xbf16>
    %cst_33 = arith.constant dense<0.000000e+00> : vector<448x128xf32>
    %47 = tpu.matmul %40, %46, %cst_33 {dimension_numbers = #tpu.dot_dimension_numbers<[1], [0], [0], [1], [0, 0, 1, 1], [], []>} : vector<448x128xbf16>, vector<128x128xbf16>, vector<448x128xf32> -> vector<448x128xf32>
    %48 = arith.addf %39, %47 : vector<448x128xf32>
    %49 = arith.maximumf %44, %48 : vector<448x128xf32>
    %c0_34 = arith.constant 0 : index
    %c0_35 = arith.constant 0 : index
    %50 = vector.load %arg3[%c0_34, %c0_35] : memref<1x128xf32, #tpu.memory_space<vmem>>, vector<1x128xf32>
    %51 = vector.broadcast %50 : vector<1x128xf32> to vector<448x128xf32>
    %52 = arith.addf %49, %51 : vector<448x128xf32>
    %cst_36 = arith.constant 0.000000e+00 : f32
    %53 = vector.broadcast %cst_36 : f32 to vector<448x128xf32>
    %54 = arith.maximumf %52, %53 : vector<448x128xf32>
    %55 = vector.shape_cast %54 : vector<448x128xf32> to vector<14x32x128xf32>
    %56 = vector.extract_strided_slice %55 {offsets = [0, 0, 0], sizes = [14, 16, 128], strides = [1, 1, 1]} : vector<14x32x128xf32> to vector<14x16x128xf32>
    %57 = vector.extract_strided_slice %55 {offsets = [0, 16, 0], sizes = [14, 16, 128], strides = [1, 1, 1]} : vector<14x32x128xf32> to vector<14x16x128xf32>
    %58 = arith.maximumf %56, %57 : vector<14x16x128xf32>
    %59 = vector.shape_cast %58 : vector<14x16x128xf32> to vector<224x128xf32>
    %60 = arith.truncf %59 : vector<224x128xf32> to vector<224x128xbf16>
    %cst_37 = arith.constant 0.000000e+00 : f32
    %61 = vector.broadcast %cst_37 : f32 to vector<160x128xf32>
    %cst_38 = arith.constant 0.000000e+00 : f32
    %62 = vector.broadcast %cst_38 : f32 to vector<160x128xf32>
    %63 = vector.extract_strided_slice %60 {offsets = [0, 0], sizes = [160, 128], strides = [1, 1]} : vector<224x128xbf16> to vector<160x128xbf16>
    %c0_39 = arith.constant 0 : index
    %c0_40 = arith.constant 0 : index
    %c0_41 = arith.constant 0 : index
    %64 = vector.load %arg4[%c0_39, %c0_40, %c0_41] : memref<10x128x128xbf16, #tpu.memory_space<vmem>>, vector<1x128x128xbf16>
    %65 = vector.shape_cast %64 : vector<1x128x128xbf16> to vector<128x128xbf16>
    %cst_42 = arith.constant dense<0.000000e+00> : vector<160x128xf32>
    %66 = tpu.matmul %63, %65, %cst_42 {dimension_numbers = #tpu.dot_dimension_numbers<[1], [0], [0], [1], [0, 0, 1, 1], [], []>} : vector<160x128xbf16>, vector<128x128xbf16>, vector<160x128xf32> -> vector<160x128xf32>
    %67 = arith.addf %61, %66 : vector<160x128xf32>
    %c1_43 = arith.constant 1 : index
    %c0_44 = arith.constant 0 : index
    %c0_45 = arith.constant 0 : index
    %68 = vector.load %arg4[%c1_43, %c0_44, %c0_45] : memref<10x128x128xbf16, #tpu.memory_space<vmem>>, vector<1x128x128xbf16>
    %69 = vector.shape_cast %68 : vector<1x128x128xbf16> to vector<128x128xbf16>
    %cst_46 = arith.constant dense<0.000000e+00> : vector<160x128xf32>
    %70 = tpu.matmul %63, %69, %cst_46 {dimension_numbers = #tpu.dot_dimension_numbers<[1], [0], [0], [1], [0, 0, 1, 1], [], []>} : vector<160x128xbf16>, vector<128x128xbf16>, vector<160x128xf32> -> vector<160x128xf32>
    %71 = arith.addf %62, %70 : vector<160x128xf32>
    %72 = vector.extract_strided_slice %60 {offsets = [16, 0], sizes = [160, 128], strides = [1, 1]} : vector<224x128xbf16> to vector<160x128xbf16>
    %c2_47 = arith.constant 2 : index
    %c0_48 = arith.constant 0 : index
    %c0_49 = arith.constant 0 : index
    %73 = vector.load %arg4[%c2_47, %c0_48, %c0_49] : memref<10x128x128xbf16, #tpu.memory_space<vmem>>, vector<1x128x128xbf16>
    %74 = vector.shape_cast %73 : vector<1x128x128xbf16> to vector<128x128xbf16>
    %cst_50 = arith.constant dense<0.000000e+00> : vector<160x128xf32>
    %75 = tpu.matmul %72, %74, %cst_50 {dimension_numbers = #tpu.dot_dimension_numbers<[1], [0], [0], [1], [0, 0, 1, 1], [], []>} : vector<160x128xbf16>, vector<128x128xbf16>, vector<160x128xf32> -> vector<160x128xf32>
    %76 = arith.addf %67, %75 : vector<160x128xf32>
    %c3_51 = arith.constant 3 : index
    %c0_52 = arith.constant 0 : index
    %c0_53 = arith.constant 0 : index
    %77 = vector.load %arg4[%c3_51, %c0_52, %c0_53] : memref<10x128x128xbf16, #tpu.memory_space<vmem>>, vector<1x128x128xbf16>
    %78 = vector.shape_cast %77 : vector<1x128x128xbf16> to vector<128x128xbf16>
    %cst_54 = arith.constant dense<0.000000e+00> : vector<160x128xf32>
    %79 = tpu.matmul %72, %78, %cst_54 {dimension_numbers = #tpu.dot_dimension_numbers<[1], [0], [0], [1], [0, 0, 1, 1], [], []>} : vector<160x128xbf16>, vector<128x128xbf16>, vector<160x128xf32> -> vector<160x128xf32>
    %80 = arith.addf %71, %79 : vector<160x128xf32>
    %81 = vector.extract_strided_slice %60 {offsets = [32, 0], sizes = [160, 128], strides = [1, 1]} : vector<224x128xbf16> to vector<160x128xbf16>
    %c4_55 = arith.constant 4 : index
    %c0_56 = arith.constant 0 : index
    %c0_57 = arith.constant 0 : index
    %82 = vector.load %arg4[%c4_55, %c0_56, %c0_57] : memref<10x128x128xbf16, #tpu.memory_space<vmem>>, vector<1x128x128xbf16>
    %83 = vector.shape_cast %82 : vector<1x128x128xbf16> to vector<128x128xbf16>
    %cst_58 = arith.constant dense<0.000000e+00> : vector<160x128xf32>
    %84 = tpu.matmul %81, %83, %cst_58 {dimension_numbers = #tpu.dot_dimension_numbers<[1], [0], [0], [1], [0, 0, 1, 1], [], []>} : vector<160x128xbf16>, vector<128x128xbf16>, vector<160x128xf32> -> vector<160x128xf32>
    %85 = arith.addf %76, %84 : vector<160x128xf32>
    %c5_59 = arith.constant 5 : index
    %c0_60 = arith.constant 0 : index
    %c0_61 = arith.constant 0 : index
    %86 = vector.load %arg4[%c5_59, %c0_60, %c0_61] : memref<10x128x128xbf16, #tpu.memory_space<vmem>>, vector<1x128x128xbf16>
    %87 = vector.shape_cast %86 : vector<1x128x128xbf16> to vector<128x128xbf16>
    %cst_62 = arith.constant dense<0.000000e+00> : vector<160x128xf32>
    %88 = tpu.matmul %81, %87, %cst_62 {dimension_numbers = #tpu.dot_dimension_numbers<[1], [0], [0], [1], [0, 0, 1, 1], [], []>} : vector<160x128xbf16>, vector<128x128xbf16>, vector<160x128xf32> -> vector<160x128xf32>
    %89 = arith.addf %80, %88 : vector<160x128xf32>
    %90 = vector.extract_strided_slice %60 {offsets = [48, 0], sizes = [160, 128], strides = [1, 1]} : vector<224x128xbf16> to vector<160x128xbf16>
    %c6_63 = arith.constant 6 : index
    %c0_64 = arith.constant 0 : index
    %c0_65 = arith.constant 0 : index
    %91 = vector.load %arg4[%c6_63, %c0_64, %c0_65] : memref<10x128x128xbf16, #tpu.memory_space<vmem>>, vector<1x128x128xbf16>
    %92 = vector.shape_cast %91 : vector<1x128x128xbf16> to vector<128x128xbf16>
    %cst_66 = arith.constant dense<0.000000e+00> : vector<160x128xf32>
    %93 = tpu.matmul %90, %92, %cst_66 {dimension_numbers = #tpu.dot_dimension_numbers<[1], [0], [0], [1], [0, 0, 1, 1], [], []>} : vector<160x128xbf16>, vector<128x128xbf16>, vector<160x128xf32> -> vector<160x128xf32>
    %94 = arith.addf %85, %93 : vector<160x128xf32>
    %c7_67 = arith.constant 7 : index
    %c0_68 = arith.constant 0 : index
    %c0_69 = arith.constant 0 : index
    %95 = vector.load %arg4[%c7_67, %c0_68, %c0_69] : memref<10x128x128xbf16, #tpu.memory_space<vmem>>, vector<1x128x128xbf16>
    %96 = vector.shape_cast %95 : vector<1x128x128xbf16> to vector<128x128xbf16>
    %cst_70 = arith.constant dense<0.000000e+00> : vector<160x128xf32>
    %97 = tpu.matmul %90, %96, %cst_70 {dimension_numbers = #tpu.dot_dimension_numbers<[1], [0], [0], [1], [0, 0, 1, 1], [], []>} : vector<160x128xbf16>, vector<128x128xbf16>, vector<160x128xf32> -> vector<160x128xf32>
    %98 = arith.addf %89, %97 : vector<160x128xf32>
    %99 = vector.extract_strided_slice %60 {offsets = [64, 0], sizes = [160, 128], strides = [1, 1]} : vector<224x128xbf16> to vector<160x128xbf16>
    %c8_71 = arith.constant 8 : index
    %c0_72 = arith.constant 0 : index
    %c0_73 = arith.constant 0 : index
    %100 = vector.load %arg4[%c8_71, %c0_72, %c0_73] : memref<10x128x128xbf16, #tpu.memory_space<vmem>>, vector<1x128x128xbf16>
    %101 = vector.shape_cast %100 : vector<1x128x128xbf16> to vector<128x128xbf16>
    %cst_74 = arith.constant dense<0.000000e+00> : vector<160x128xf32>
    %102 = tpu.matmul %99, %101, %cst_74 {dimension_numbers = #tpu.dot_dimension_numbers<[1], [0], [0], [1], [0, 0, 1, 1], [], []>} : vector<160x128xbf16>, vector<128x128xbf16>, vector<160x128xf32> -> vector<160x128xf32>
    %103 = arith.addf %94, %102 : vector<160x128xf32>
    %c9_75 = arith.constant 9 : index
    %c0_76 = arith.constant 0 : index
    %c0_77 = arith.constant 0 : index
    %104 = vector.load %arg4[%c9_75, %c0_76, %c0_77] : memref<10x128x128xbf16, #tpu.memory_space<vmem>>, vector<1x128x128xbf16>
    %105 = vector.shape_cast %104 : vector<1x128x128xbf16> to vector<128x128xbf16>
    %cst_78 = arith.constant dense<0.000000e+00> : vector<160x128xf32>
    %106 = tpu.matmul %99, %105, %cst_78 {dimension_numbers = #tpu.dot_dimension_numbers<[1], [0], [0], [1], [0, 0, 1, 1], [], []>} : vector<160x128xbf16>, vector<128x128xbf16>, vector<160x128xf32> -> vector<160x128xf32>
    %107 = arith.addf %98, %106 : vector<160x128xf32>
    %108 = arith.maximumf %103, %107 : vector<160x128xf32>
    %c0_79 = arith.constant 0 : index
    %c0_80 = arith.constant 0 : index
    %109 = vector.load %arg5[%c0_79, %c0_80] : memref<1x128xf32, #tpu.memory_space<vmem>>, vector<1x128xf32>
    %110 = vector.broadcast %109 : vector<1x128xf32> to vector<160x128xf32>
    %111 = arith.addf %108, %110 : vector<160x128xf32>
    %cst_81 = arith.constant 0.000000e+00 : f32
    %112 = vector.broadcast %cst_81 : f32 to vector<160x128xf32>
    %113 = arith.maximumf %111, %112 : vector<160x128xf32>
    %114 = vector.shape_cast %113 : vector<160x128xf32> to vector<5x32x128xf32>
    %115 = vector.extract_strided_slice %114 {offsets = [0, 0, 0], sizes = [5, 16, 128], strides = [1, 1, 1]} : vector<5x32x128xf32> to vector<5x16x128xf32>
    %116 = vector.extract_strided_slice %114 {offsets = [0, 16, 0], sizes = [5, 16, 128], strides = [1, 1, 1]} : vector<5x32x128xf32> to vector<5x16x128xf32>
    %117 = arith.maximumf %115, %116 : vector<5x16x128xf32>
    %118 = arith.truncf %117 : vector<5x16x128xf32> to vector<5x16x128xbf16>
    %cst_82 = arith.constant 0.000000e+00 : f32
    %119 = vector.broadcast %cst_82 : f32 to vector<16x128xf32>
    %120 = vector.extract_strided_slice %118 {offsets = [0, 0, 0], sizes = [1, 16, 128], strides = [1, 1, 1]} : vector<5x16x128xbf16> to vector<1x16x128xbf16>
    %121 = vector.shape_cast %120 : vector<1x16x128xbf16> to vector<16x128xbf16>
    %c0_83 = arith.constant 0 : index
    %c0_84 = arith.constant 0 : index
    %c0_85 = arith.constant 0 : index
    %122 = vector.load %arg6[%c0_83, %c0_84, %c0_85] : memref<5x128x128xbf16, #tpu.memory_space<vmem>>, vector<1x128x128xbf16>
    %123 = vector.shape_cast %122 : vector<1x128x128xbf16> to vector<128x128xbf16>
    %cst_86 = arith.constant dense<0.000000e+00> : vector<16x128xf32>
    %124 = tpu.matmul %121, %123, %cst_86 {dimension_numbers = #tpu.dot_dimension_numbers<[1], [0], [0], [1], [0, 0, 1, 1], [], []>} : vector<16x128xbf16>, vector<128x128xbf16>, vector<16x128xf32> -> vector<16x128xf32>
    %125 = arith.addf %119, %124 : vector<16x128xf32>
    %126 = vector.extract_strided_slice %118 {offsets = [1, 0, 0], sizes = [1, 16, 128], strides = [1, 1, 1]} : vector<5x16x128xbf16> to vector<1x16x128xbf16>
    %127 = vector.shape_cast %126 : vector<1x16x128xbf16> to vector<16x128xbf16>
    %c1_87 = arith.constant 1 : index
    %c0_88 = arith.constant 0 : index
    %c0_89 = arith.constant 0 : index
    %128 = vector.load %arg6[%c1_87, %c0_88, %c0_89] : memref<5x128x128xbf16, #tpu.memory_space<vmem>>, vector<1x128x128xbf16>
    %129 = vector.shape_cast %128 : vector<1x128x128xbf16> to vector<128x128xbf16>
    %cst_90 = arith.constant dense<0.000000e+00> : vector<16x128xf32>
    %130 = tpu.matmul %127, %129, %cst_90 {dimension_numbers = #tpu.dot_dimension_numbers<[1], [0], [0], [1], [0, 0, 1, 1], [], []>} : vector<16x128xbf16>, vector<128x128xbf16>, vector<16x128xf32> -> vector<16x128xf32>
    %131 = arith.addf %125, %130 : vector<16x128xf32>
    %132 = vector.extract_strided_slice %118 {offsets = [2, 0, 0], sizes = [1, 16, 128], strides = [1, 1, 1]} : vector<5x16x128xbf16> to vector<1x16x128xbf16>
    %133 = vector.shape_cast %132 : vector<1x16x128xbf16> to vector<16x128xbf16>
    %c2_91 = arith.constant 2 : index
    %c0_92 = arith.constant 0 : index
    %c0_93 = arith.constant 0 : index
    %134 = vector.load %arg6[%c2_91, %c0_92, %c0_93] : memref<5x128x128xbf16, #tpu.memory_space<vmem>>, vector<1x128x128xbf16>
    %135 = vector.shape_cast %134 : vector<1x128x128xbf16> to vector<128x128xbf16>
    %cst_94 = arith.constant dense<0.000000e+00> : vector<16x128xf32>
    %136 = tpu.matmul %133, %135, %cst_94 {dimension_numbers = #tpu.dot_dimension_numbers<[1], [0], [0], [1], [0, 0, 1, 1], [], []>} : vector<16x128xbf16>, vector<128x128xbf16>, vector<16x128xf32> -> vector<16x128xf32>
    %137 = arith.addf %131, %136 : vector<16x128xf32>
    %138 = vector.extract_strided_slice %118 {offsets = [3, 0, 0], sizes = [1, 16, 128], strides = [1, 1, 1]} : vector<5x16x128xbf16> to vector<1x16x128xbf16>
    %139 = vector.shape_cast %138 : vector<1x16x128xbf16> to vector<16x128xbf16>
    %c3_95 = arith.constant 3 : index
    %c0_96 = arith.constant 0 : index
    %c0_97 = arith.constant 0 : index
    %140 = vector.load %arg6[%c3_95, %c0_96, %c0_97] : memref<5x128x128xbf16, #tpu.memory_space<vmem>>, vector<1x128x128xbf16>
    %141 = vector.shape_cast %140 : vector<1x128x128xbf16> to vector<128x128xbf16>
    %cst_98 = arith.constant dense<0.000000e+00> : vector<16x128xf32>
    %142 = tpu.matmul %139, %141, %cst_98 {dimension_numbers = #tpu.dot_dimension_numbers<[1], [0], [0], [1], [0, 0, 1, 1], [], []>} : vector<16x128xbf16>, vector<128x128xbf16>, vector<16x128xf32> -> vector<16x128xf32>
    %143 = arith.addf %137, %142 : vector<16x128xf32>
    %144 = vector.extract_strided_slice %118 {offsets = [4, 0, 0], sizes = [1, 16, 128], strides = [1, 1, 1]} : vector<5x16x128xbf16> to vector<1x16x128xbf16>
    %145 = vector.shape_cast %144 : vector<1x16x128xbf16> to vector<16x128xbf16>
    %c4_99 = arith.constant 4 : index
    %c0_100 = arith.constant 0 : index
    %c0_101 = arith.constant 0 : index
    %146 = vector.load %arg6[%c4_99, %c0_100, %c0_101] : memref<5x128x128xbf16, #tpu.memory_space<vmem>>, vector<1x128x128xbf16>
    %147 = vector.shape_cast %146 : vector<1x128x128xbf16> to vector<128x128xbf16>
    %cst_102 = arith.constant dense<0.000000e+00> : vector<16x128xf32>
    %148 = tpu.matmul %145, %147, %cst_102 {dimension_numbers = #tpu.dot_dimension_numbers<[1], [0], [0], [1], [0, 0, 1, 1], [], []>} : vector<16x128xbf16>, vector<128x128xbf16>, vector<16x128xf32> -> vector<16x128xf32>
    %149 = arith.addf %143, %148 : vector<16x128xf32>
    %c0_103 = arith.constant 0 : index
    %c0_104 = arith.constant 0 : index
    %150 = vector.load %arg7[%c0_103, %c0_104] : memref<1x128xf32, #tpu.memory_space<vmem>>, vector<1x128xf32>
    %151 = vector.broadcast %150 : vector<1x128xf32> to vector<16x128xf32>
    %152 = arith.addf %149, %151 : vector<16x128xf32>
    %cst_105 = arith.constant 0.000000e+00 : f32
    %153 = vector.broadcast %cst_105 : f32 to vector<16x128xf32>
    %154 = arith.maximumf %152, %153 : vector<16x128xf32>
    %155 = arith.truncf %154 : vector<16x128xf32> to vector<16x128xbf16>
    %c0_106 = arith.constant 0 : index
    %c0_107 = arith.constant 0 : index
    %156 = vector.load %arg8[%c0_106, %c0_107] : memref<128x128xbf16, #tpu.memory_space<vmem>>, vector<128x128xbf16>
    %cst_108 = arith.constant dense<0.000000e+00> : vector<16x128xf32>
    %157 = tpu.matmul %155, %156, %cst_108 {dimension_numbers = #tpu.dot_dimension_numbers<[1], [0], [0], [1], [0, 0, 1, 1], [], []>} : vector<16x128xbf16>, vector<128x128xbf16>, vector<16x128xf32> -> vector<16x128xf32>
    %c0_109 = arith.constant 0 : index
    %c0_110 = arith.constant 0 : index
    %158 = vector.load %arg9[%c0_109, %c0_110] : memref<1x128xf32, #tpu.memory_space<vmem>>, vector<1x128xf32>
    %159 = vector.broadcast %158 : vector<1x128xf32> to vector<16x128xf32>
    %160 = arith.addf %157, %159 : vector<16x128xf32>
    %cst_111 = arith.constant 0.000000e+00 : f32
    %161 = vector.broadcast %cst_111 : f32 to vector<16x128xf32>
    %162 = arith.maximumf %160, %161 : vector<16x128xf32>
    %163 = arith.truncf %162 : vector<16x128xf32> to vector<16x128xbf16>
    %c0_112 = arith.constant 0 : index
    %c0_113 = arith.constant 0 : index
    %164 = vector.load %arg10[%c0_112, %c0_113] : memref<128x128xbf16, #tpu.memory_space<vmem>>, vector<128x128xbf16>
    %cst_114 = arith.constant dense<0.000000e+00> : vector<16x128xf32>
    %165 = tpu.matmul %163, %164, %cst_114 {dimension_numbers = #tpu.dot_dimension_numbers<[1], [0], [0], [1], [0, 0, 1, 1], [], []>} : vector<16x128xbf16>, vector<128x128xbf16>, vector<16x128xf32> -> vector<16x128xf32>
    %c0_115 = arith.constant 0 : index
    %c0_116 = arith.constant 0 : index
    %166 = vector.load %arg11[%c0_115, %c0_116] : memref<1x128xf32, #tpu.memory_space<vmem>>, vector<1x128xf32>
    %167 = vector.broadcast %166 : vector<1x128xf32> to vector<16x128xf32>
    %168 = arith.addf %165, %167 : vector<16x128xf32>
    %c0_117 = arith.constant 0 : index
    %c0_118 = arith.constant 0 : index
    %169 = vector.load %arg12[%c0_117, %c0_118] : memref<16x128xf32, #tpu.memory_space<vmem>>, vector<16x128xf32>
    tpu.vector_store %arg12[%c0_117, %c0_118], %168 {strides = array<i32>} : memref<16x128xf32, #tpu.memory_space<vmem>>, vector<16x128xf32>,
    return
  }
  func.func @transform_0(%arg0: i32) -> (i32, i32, i32) {
    %c0_i32 = arith.constant 0 : i32
    %c0_i32_0 = arith.constant 0 : i32
    %c0_i32_1 = arith.constant 0 : i32
    return %c0_i32, %arg0, %c0_i32_0 : i32, i32, i32
  }
  func.func @transform_1(%arg0: i32) -> (i32, i32, i32) {
    %c0_i32 = arith.constant 0 : i32
    %c0_i32_0 = arith.constant 0 : i32
    %c0_i32_1 = arith.constant 0 : i32
    %c0_i32_2 = arith.constant 0 : i32
    return %c0_i32, %c0_i32_0, %c0_i32_1 : i32, i32, i32
  }
  func.func @transform_2(%arg0: i32) -> (i32, i32) {
    %c0_i32 = arith.constant 0 : i32
    %c0_i32_0 = arith.constant 0 : i32
    %c0_i32_1 = arith.constant 0 : i32
    return %c0_i32, %c0_i32_0 : i32, i32
  }
  func.func @transform_3(%arg0: i32) -> (i32, i32, i32) {
    %c0_i32 = arith.constant 0 : i32
    %c0_i32_0 = arith.constant 0 : i32
    %c0_i32_1 = arith.constant 0 : i32
    %c0_i32_2 = arith.constant 0 : i32
    return %c0_i32, %c0_i32_0, %c0_i32_1 : i32, i32, i32
  }
  func.func @transform_4(%arg0: i32) -> (i32, i32) {
    %c0_i32 = arith.constant 0 : i32
    %c0_i32_0 = arith.constant 0 : i32
    %c0_i32_1 = arith.constant 0 : i32
    return %c0_i32, %c0_i32_0 : i32, i32
  }
  func.func @transform_5(%arg0: i32) -> (i32, i32, i32) {
    %c0_i32 = arith.constant 0 : i32
    %c0_i32_0 = arith.constant 0 : i32
    %c0_i32_1 = arith.constant 0 : i32
    %c0_i32_2 = arith.constant 0 : i32
    return %c0_i32, %c0_i32_0, %c0_i32_1 : i32, i32, i32
  }
  func.func @transform_6(%arg0: i32) -> (i32, i32) {
    %c0_i32 = arith.constant 0 : i32
    %c0_i32_0 = arith.constant 0 : i32
    %c0_i32_1 = arith.constant 0 : i32
    return %c0_i32, %c0_i32_0 : i32, i32
  }
  func.func @transform_7(%arg0: i32) -> (i32, i32) {
    %c0_i32 = arith.constant 0 : i32
    %c0_i32_0 = arith.constant 0 : i32
    %c0_i32_1 = arith.constant 0 : i32
    return %c0_i32, %c0_i32_0 : i32, i32
  }
  func.func @transform_8(%arg0: i32) -> (i32, i32) {
    %c0_i32 = arith.constant 0 : i32
    %c0_i32_0 = arith.constant 0 : i32
    %c0_i32_1 = arith.constant 0 : i32
    return %c0_i32, %c0_i32_0 : i32, i32
  }
  func.func @transform_9(%arg0: i32) -> (i32, i32) {
    %c0_i32 = arith.constant 0 : i32
    %c0_i32_0 = arith.constant 0 : i32
    %c0_i32_1 = arith.constant 0 : i32
    return %c0_i32, %c0_i32_0 : i32, i32
  }
  func.func @transform_10(%arg0: i32) -> (i32, i32) {
    %c0_i32 = arith.constant 0 : i32
    %c0_i32_0 = arith.constant 0 : i32
    %c0_i32_1 = arith.constant 0 : i32
    return %c0_i32, %c0_i32_0 : i32, i32
  }
  func.func @transform_11(%arg0: i32) -> (i32, i32) {
    %c0_i32 = arith.constant 0 : i32
    %c0_i32_0 = arith.constant 0 : i32
    return %arg0, %c0_i32 : i32, i32
  }
}

</mosaic_0001>

<llo_original>
// kernel: net_cifar10_forward.1
$region0: #{net_cifar10_forward.1}
  #allocation0 [shape = 'u32[]', space=smem, size = 0x4, offset = 0x4, fixed_abs, tag = 'smem constant byte address 0x4 - core index']
  #allocation1 [shape = 'u32[72,128]{1,0:T(1,128)}', space=vmem, size = 0x9000, scoped, tag = 'internal scratch']
  %s0 = inlined_call_operand.vmem [shape: bf16[32,16,128], index: 0, kind: input, shape index: {}]
  %s1 = inlined_call_operand.vmem [shape: bf16[10,128,128], index: 1, kind: input, shape index: {}]
  %s2 = inlined_call_operand.vmem [shape: f32[1,128], index: 2, kind: input, shape index: {}]
  %s3 = inlined_call_operand.hbm [shape: bf16[10,128,128], index: 3, kind: input, shape index: {}]
  %s4 = inlined_call_operand.vmem [shape: f32[1,128], index: 4, kind: input, shape index: {}]
  %s5 = inlined_call_operand.hbm [shape: bf16[5,128,128], index: 5, kind: input, shape index: {}]
  %s6 = inlined_call_operand.vmem [shape: f32[1,128], index: 6, kind: input, shape index: {}]
  %s7 = inlined_call_operand.vmem [shape: bf16[128,128], index: 7, kind: input, shape index: {}]
  %s8 = inlined_call_operand.vmem [shape: f32[1,128], index: 8, kind: input, shape index: {}]
  %s9 = inlined_call_operand.vmem [shape: bf16[128,128], index: 9, kind: input, shape index: {}]
  %s10 = inlined_call_operand.vmem [shape: f32[1,128], index: 10, kind: input, shape index: {}]
  %s11 = inlined_call_operand.vmem [shape: f32[16,128], index: 11, kind: output, shape index: {}]
  %s12 = sld [smem:[#allocation0]]
  $region62: #{net_cifar10_forward.1} parent=0
    _
  %s14 = ssub.s32 1, %s12
  %s15 = scalar_select 0, %s14, %s12
  $region1: #{net_cifar10_forward.1} parent=0
    #allocation2 [shape = 'u8[327680]{0}', space=vmem, size = 0x50000, scoped, tag = 'input window, operand 3, single buffered']
    #allocation3 [shape = 's32[1]{0}', space=sflag, size = 0x4, scoped, tag = 'scoped memory for net_cifar10_forward.1']
    #allocation4 [shape = 'u8[163840]{0}', space=vmem, size = 0x28000, scoped, tag = 'input window, operand 5, single buffered']
    #allocation5 [shape = 's32[1]{0}', space=sflag, size = 0x4, scoped, tag = 'scoped memory for net_cifar10_forward.1']
    %16 = vsyncpa [#allocation3], 0
    %17 = vsyncpa [#allocation5], 0
    // Predicated region
    $region2: #{net_cifar10_forward.1} parent=1 // pred_check
      _
    $region3: #{net_cifar10_forward.1} parent=1 // pred_check_branch
      %19 = sbr.rel (0) target = $region5
    $region4: #{net_cifar10_forward.1} parent=1 // pred_region
      _
    $region5: #{net_cifar10_forward.1} parent=1 // pred_fallthru
      _
    // Predicated region
    $region6: #{net_cifar10_forward.1} parent=1 // pred_check
      _
    $region7: #{net_cifar10_forward.1} parent=1 // pred_check_branch
      %21 = sbr.rel (0) target = $region9
    $region8: #{net_cifar10_forward.1} parent=1 // pred_region
      _
    $region9: #{net_cifar10_forward.1} parent=1 // pred_fallthru
      _
    // Predicated region
    $region10: #{net_cifar10_forward.1} parent=1 // pred_check
      _
    $region11: #{net_cifar10_forward.1} parent=1 // pred_check_branch
      %23 = sbr.rel (0) target = $region13
    $region12: #{net_cifar10_forward.1} parent=1 // pred_region
      _
    $region13: #{net_cifar10_forward.1} parent=1 // pred_fallthru
      _
    // Predicated region
    $region14: #{net_cifar10_forward.1} parent=1 // pred_check
      _
    $region15: #{net_cifar10_forward.1} parent=1 // pred_check_branch
      %25 = sbr.rel (0) target = $region17
    $region16: #{net_cifar10_forward.1} parent=1 // pred_region
      %27 = vsyncadd [#allocation3], 0
      %s28 = sshll.u32 %s3, 4
      %s29 = int_to_ptr.hbm [resolvable:$true] %s28
      %s30 = sshll.u32 [#allocation2], 4
      %s31 = int_to_ptr.vmem [resolvable:$true] %s30
      %36 = dma.hbm_to_vmem [thread:$0]  %s29, 10240, %s31, [#allocation3], 64, 64, 4
    $region17: #{net_cifar10_forward.1} parent=1 // pred_fallthru
      _
    // Predicated region
    $region18: #{net_cifar10_forward.1} parent=1 // pred_check
      _
    $region19: #{net_cifar10_forward.1} parent=1 // pred_check_branch
      %38 = sbr.rel (0) target = $region21
    $region20: #{net_cifar10_forward.1} parent=1 // pred_region
      _
    $region21: #{net_cifar10_forward.1} parent=1 // pred_fallthru
      _
    // Predicated region
    $region22: #{net_cifar10_forward.1} parent=1 // pred_check
      _
    $region23: #{net_cifar10_forward.1} parent=1 // pred_check_branch
      %40 = sbr.rel (0) target = $region25
    $region24: #{net_cifar10_forward.1} parent=1 // pred_region
      %42 = vsyncadd [#allocation5], 0
      %s43 = sshll.u32 %s5, 4
      %s44 = int_to_ptr.hbm [resolvable:$true] %s43
      %s45 = sshll.u32 [#allocation4], 4
      %s46 = int_to_ptr.vmem [resolvable:$true] %s45
      %51 = dma.hbm_to_vmem [thread:$0]  %s44, 5120, %s46, [#allocation5], 64, 64, 4
    $region25: #{net_cifar10_forward.1} parent=1 // pred_fallthru
      _
    // Predicated region
    $region26: #{net_cifar10_forward.1} parent=1 // pred_check
      _
    $region27: #{net_cifar10_forward.1} parent=1 // pred_check_branch
      %53 = sbr.rel (0) target = $region29
    $region28: #{net_cifar10_forward.1} parent=1 // pred_region
      _
    $region29: #{net_cifar10_forward.1} parent=1 // pred_fallthru
      _
    // Predicated region
    $region30: #{net_cifar10_forward.1} parent=1 // pred_check
      _
    $region31: #{net_cifar10_forward.1} parent=1 // pred_check_branch
      %55 = sbr.rel (0) target = $region33
    $region32: #{net_cifar10_forward.1} parent=1 // pred_region
      _
    $region33: #{net_cifar10_forward.1} parent=1 // pred_fallthru
      _
    // Predicated region
    $region34: #{net_cifar10_forward.1} parent=1 // pred_check
      _
    $region35: #{net_cifar10_forward.1} parent=1 // pred_check_branch
      %57 = sbr.rel (0) target = $region37
    $region36: #{net_cifar10_forward.1} parent=1 // pred_region
      _
    $region37: #{net_cifar10_forward.1} parent=1 // pred_fallthru
      _
    // Predicated region
    $region38: #{net_cifar10_forward.1} parent=1 // pred_check
      _
    $region39: #{net_cifar10_forward.1} parent=1 // pred_check_branch
      %59 = sbr.rel (0) target = $region41
    $region40: #{net_cifar10_forward.1} parent=1 // pred_region
      _
    $region41: #{net_cifar10_forward.1} parent=1 // pred_fallthru
      _
    // Predicated region
    $region42: #{net_cifar10_forward.1} parent=1 // pred_check
      _
    $region43: #{net_cifar10_forward.1} parent=1 // pred_check_branch
      %61 = sbr.rel (0) target = $region45
    $region44: #{net_cifar10_forward.1} parent=1 // pred_region
      _
    $region45: #{net_cifar10_forward.1} parent=1 // pred_fallthru
      _
    // Predicated region
    $region46: #{net_cifar10_forward.1} parent=1 // pred_check
      _
    $region47: #{net_cifar10_forward.1} parent=1 // pred_check_branch
      %63 = sbr.rel (0) target = $region49
    $region48: #{net_cifar10_forward.1} parent=1 // pred_region
      %65 = dma.done [#allocation3], 10240
    $region49: #{net_cifar10_forward.1} parent=1 // pred_fallthru
      _
    // Predicated region
    $region50: #{net_cifar10_forward.1} parent=1 // pred_check
      _
    $region51: #{net_cifar10_forward.1} parent=1 // pred_check_branch
      %67 = sbr.rel (0) target = $region53
    $region52: #{net_cifar10_forward.1} parent=1 // pred_region
      %69 = dma.done [#allocation5], 5120
    $region53: #{net_cifar10_forward.1} parent=1 // pred_fallthru
      _
    %v70 = vld [vmem:[%s0] sm:$0xf]
    %v71 = vld [vmem:[%s0 + $0x4] sm:$0xf]
    %v72 = vld [vmem:[%s0 + $0x8] sm:$0xf]
    %v73 = vld [vmem:[%s0 + $0xc] sm:$0xf]
    %v74 = vld [vmem:[%s0 + $0x10] sm:$0xf]
    %v75 = vld [vmem:[%s0 + $0x14] sm:$0xf]
    %v76 = vld [vmem:[%s0 + $0x18] sm:$0xf]
    %v77 = vld [vmem:[%s0 + $0x1c] sm:$0xf]
    %v78 = vld [vmem:[%s0 + $0x20] sm:$0xf]
    %v79 = vld [vmem:[%s0 + $0x24] sm:$0xf]
    %v80 = vld [vmem:[%s0 + $0x28] sm:$0xf]
    %v81 = vld [vmem:[%s0 + $0x2c] sm:$0xf]
    %v82 = vld [vmem:[%s0 + $0x30] sm:$0xf]
    %v83 = vld [vmem:[%s0 + $0x34] sm:$0xf]
    %v84 = vld [vmem:[%s0 + $0x38] sm:$0xf]
    %v85 = vld [vmem:[%s0 + $0x3c] sm:$0xf]
    %v86 = vld [vmem:[%s0 + $0x40] sm:$0xf]
    %v87 = vld [vmem:[%s0 + $0x44] sm:$0xf]
    %v88 = vld [vmem:[%s0 + $0x48] sm:$0xf]
    %v89 = vld [vmem:[%s0 + $0x4c] sm:$0xf]
    %v90 = vld [vmem:[%s0 + $0x50] sm:$0xf]
    %v91 = vld [vmem:[%s0 + $0x54] sm:$0xf]
    %v92 = vld [vmem:[%s0 + $0x58] sm:$0xf]
    %v93 = vld [vmem:[%s0 + $0x5c] sm:$0xf]
    %v94 = vld [vmem:[%s0 + $0x60] sm:$0xf]
    %v95 = vld [vmem:[%s0 + $0x64] sm:$0xf]
    %v96 = vld [vmem:[%s0 + $0x68] sm:$0xf]
    %v97 = vld [vmem:[%s0 + $0x6c] sm:$0xf]
    %v98 = vld [vmem:[%s0 + $0x70] sm:$0xf]
    %v99 = vld [vmem:[%s0 + $0x74] sm:$0xf]
    %v100 = vld [vmem:[%s0 + $0x78] sm:$0xf]
    %v101 = vld [vmem:[%s0 + $0x7c] sm:$0xf]
    %v102 = vld [vmem:[%s0 + $0x80] sm:$0xf]
    %v103 = vld [vmem:[%s0 + $0x84] sm:$0xf]
    %v104 = vld [vmem:[%s0 + $0x88] sm:$0xf]
    %v105 = vld [vmem:[%s0 + $0x8c] sm:$0xf]
    %v106 = vld [vmem:[%s0 + $0x90] sm:$0xf]
    %v107 = vld [vmem:[%s0 + $0x94] sm:$0xf]
    %v108 = vld [vmem:[%s0 + $0x98] sm:$0xf]
    %v109 = vld [vmem:[%s0 + $0x9c] sm:$0xf]
    %v110 = vld [vmem:[%s0 + $0xa0] sm:$0xf]
    %v111 = vld [vmem:[%s0 + $0xa4] sm:$0xf]
    %v112 = vld [vmem:[%s0 + $0xa8] sm:$0xf]
    %v113 = vld [vmem:[%s0 + $0xac] sm:$0xf]
    %v114 = vld [vmem:[%s0 + $0xb0] sm:$0xf]
    %v115 = vld [vmem:[%s0 + $0xb4] sm:$0xf]
    %v116 = vld [vmem:[%s0 + $0xb8] sm:$0xf]
    %v117 = vld [vmem:[%s0 + $0xbc] sm:$0xf]
    %v118 = vld [vmem:[%s0 + $0xc0] sm:$0xf]
    %v119 = vld [vmem:[%s0 + $0xc4] sm:$0xf]
    %v120 = vld [vmem:[%s0 + $0xc8] sm:$0xf]
    %v121 = vld [vmem:[%s0 + $0xcc] sm:$0xf]
    %v122 = vld [vmem:[%s0 + $0xd0] sm:$0xf]
    %v123 = vld [vmem:[%s0 + $0xd4] sm:$0xf]
    %v124 = vld [vmem:[%s0 + $0xd8] sm:$0xf]
    %v125 = vld [vmem:[%s0 + $0xdc] sm:$0xf]
    %v126 = vld [vmem:[%s0 + $0xe0] sm:$0xf]
    %v127 = vld [vmem:[%s0 + $0xe4] sm:$0xf]
    %v128 = vld [vmem:[%s0 + $0xe8] sm:$0xf]
    %v129 = vld [vmem:[%s0 + $0xec] sm:$0xf]
    %v130 = vld [vmem:[%s0 + $0xf0] sm:$0xf]
    %v131 = vld [vmem:[%s0 + $0xf4] sm:$0xf]
    %v132 = vld [vmem:[%s0 + $0xf8] sm:$0xf]
    %v133 = vld [vmem:[%s0 + $0xfc] sm:$0xf]
    %v134 = vld [vmem:[%s1] sm:$0xf]
    %v135 = vld [vmem:[%s1 + $0x4] sm:$0xf]
    %v136 = vld [vmem:[%s1 + $0x8] sm:$0xf]
    %v137 = vld [vmem:[%s1 + $0xc] sm:$0xf]
    %v138 = vld [vmem:[%s1 + $0x10] sm:$0xf]
    %v139 = vld [vmem:[%s1 + $0x14] sm:$0xf]
    %v140 = vld [vmem:[%s1 + $0x18] sm:$0xf]
    %v141 = vld [vmem:[%s1 + $0x1c] sm:$0xf]
    %v142 = vld [vmem:[%s1 + $0x20] sm:$0xf]
    %v143 = vld [vmem:[%s1 + $0x24] sm:$0xf]
    %v144 = vld [vmem:[%s1 + $0x28] sm:$0xf]
    %v145 = vld [vmem:[%s1 + $0x2c] sm:$0xf]
    %v146 = vld [vmem:[%s1 + $0x30] sm:$0xf]
    %v147 = vld [vmem:[%s1 + $0x34] sm:$0xf]
    %v148 = vld [vmem:[%s1 + $0x38] sm:$0xf]
    %v149 = vld [vmem:[%s1 + $0x3c] sm:$0xf]
    %s150 = scalar_lea.vmem %s1, 64
    %v151 = vld [vmem:[%s150] sm:$0xf]
    %v152 = vld [vmem:[%s150 + $0x4] sm:$0xf]
    %v153 = vld [vmem:[%s150 + $0x8] sm:$0xf]
    %v154 = vld [vmem:[%s150 + $0xc] sm:$0xf]
    %v155 = vld [vmem:[%s150 + $0x10] sm:$0xf]
    %v156 = vld [vmem:[%s150 + $0x14] sm:$0xf]
    %v157 = vld [vmem:[%s150 + $0x18] sm:$0xf]
    %v158 = vld [vmem:[%s150 + $0x1c] sm:$0xf]
    %v159 = vld [vmem:[%s150 + $0x20] sm:$0xf]
    %v160 = vld [vmem:[%s150 + $0x24] sm:$0xf]
    %v161 = vld [vmem:[%s150 + $0x28] sm:$0xf]
    %v162 = vld [vmem:[%s150 + $0x2c] sm:$0xf]
    %v163 = vld [vmem:[%s150 + $0x30] sm:$0xf]
    %v164 = vld [vmem:[%s150 + $0x34] sm:$0xf]
    %v165 = vld [vmem:[%s150 + $0x38] sm:$0xf]
    %v166 = vld [vmem:[%s150 + $0x3c] sm:$0xf]
    %s167 = scalar_lea.vmem %s1, 128
    %v168 = vld [vmem:[%s167] sm:$0xf]
    %v169 = vld [vmem:[%s167 + $0x4] sm:$0xf]
    %v170 = vld [vmem:[%s167 + $0x8] sm:$0xf]
    %v171 = vld [vmem:[%s167 + $0xc] sm:$0xf]
    %v172 = vld [vmem:[%s167 + $0x10] sm:$0xf]
    %v173 = vld [vmem:[%s167 + $0x14] sm:$0xf]
    %v174 = vld [vmem:[%s167 + $0x18] sm:$0xf]
    %v175 = vld [vmem:[%s167 + $0x1c] sm:$0xf]
    %v176 = vld [vmem:[%s167 + $0x20] sm:$0xf]
    %v177 = vld [vmem:[%s167 + $0x24] sm:$0xf]
    %v178 = vld [vmem:[%s167 + $0x28] sm:$0xf]
    %v179 = vld [vmem:[%s167 + $0x2c] sm:$0xf]
    %v180 = vld [vmem:[%s167 + $0x30] sm:$0xf]
    %v181 = vld [vmem:[%s167 + $0x34] sm:$0xf]
    %v182 = vld [vmem:[%s167 + $0x38] sm:$0xf]
    %v183 = vld [vmem:[%s167 + $0x3c] sm:$0xf]
    %v240 = vunpack.c.l.b16 %v72
    %v241 = vunpack.c.l.b16 %v73
    %v242 = vunpack.c.l.b16 %v74
    %v243 = vunpack.c.l.b16 %v75
    %v244 = vunpack.c.l.b16 %v76
    %v245 = vunpack.c.l.b16 %v77
    %v246 = vunpack.c.l.b16 %v78
    %v247 = vunpack.c.l.b16 %v79
    %v248 = vunpack.c.l.b16 %v80
    %v249 = vunpack.c.l.b16 %v81
    %v250 = vunpack.c.l.b16 %v82
    %v251 = vunpack.c.l.b16 %v83
    %v252 = vunpack.c.l.b16 %v84
    %v253 = vunpack.c.l.b16 %v85
    %v254 = vunpack.c.l.b16 %v86
    %v255 = vunpack.c.l.b16 %v87
    %v256 = vunpack.c.l.b16 %v88
    %v257 = vunpack.c.l.b16 %v89
    %v258 = vunpack.c.l.b16 %v90
    %v259 = vunpack.c.l.b16 %v91
    %v260 = vunpack.c.l.b16 %v92
    %v261 = vunpack.c.l.b16 %v93
    %v262 = vunpack.c.l.b16 %v94
    %v263 = vunpack.c.l.b16 %v95
    %v264 = vunpack.c.l.b16 %v96
    %v265 = vunpack.c.l.b16 %v97
    %v266 = vunpack.c.l.b16 %v98
    %v267 = vunpack.c.l.b16 %v99
    %v268 = vunpack.c.l.b16 %v100
    %v269 = vunpack.c.l.b16 %v101
    %v270 = vunpack.c.l.b16 %v102
    %v271 = vunpack.c.l.b16 %v103
    %v272 = vunpack.c.l.b16 %v104
    %v273 = vunpack.c.l.b16 %v105
    %v274 = vunpack.c.l.b16 %v106
    %v275 = vunpack.c.l.b16 %v107
    %v276 = vunpack.c.l.b16 %v108
    %v277 = vunpack.c.l.b16 %v109
    %v278 = vunpack.c.l.b16 %v110
    %v279 = vunpack.c.l.b16 %v111
    %v280 = vunpack.c.l.b16 %v112
    %v281 = vunpack.c.l.b16 %v113
    %v282 = vunpack.c.l.b16 %v114
    %v283 = vunpack.c.l.b16 %v115
    %v284 = vunpack.c.l.b16 %v116
    %v285 = vunpack.c.l.b16 %v117
    %v286 = vunpack.c.l.b16 %v118
    %v287 = vunpack.c.l.b16 %v119
    %v288 = vunpack.c.l.b16 %v120
    %v289 = vunpack.c.l.b16 %v121
    %v290 = vunpack.c.l.b16 %v122
    %v291 = vunpack.c.l.b16 %v123
    %v292 = vunpack.c.l.b16 %v124
    %v293 = vunpack.c.l.b16 %v125
    %v294 = vunpack.c.l.b16 %v126
    %v295 = vunpack.c.l.b16 %v127
    %v296 = vpack.c.b16 %v241, %v240
    %v297 = vpack.c.b16 %v243, %v242
    %v298 = vpack.c.b16 %v245, %v244
    %v299 = vpack.c.b16 %v247, %v246
    %v300 = vpack.c.b16 %v249, %v248
    %v301 = vpack.c.b16 %v251, %v250
    %v302 = vpack.c.b16 %v253, %v252
    %v303 = vpack.c.b16 %v255, %v254
    %v304 = vpack.c.b16 %v257, %v256
    %v305 = vpack.c.b16 %v259, %v258
    %v306 = vpack.c.b16 %v261, %v260
    %v307 = vpack.c.b16 %v263, %v262
    %v308 = vpack.c.b16 %v265, %v264
    %v309 = vpack.c.b16 %v267, %v266
    %v310 = vpack.c.b16 %v269, %v268
    %v311 = vpack.c.b16 %v271, %v270
    %v312 = vpack.c.b16 %v273, %v272
    %v313 = vpack.c.b16 %v275, %v274
    %v314 = vpack.c.b16 %v277, %v276
    %v315 = vpack.c.b16 %v279, %v278
    %v316 = vpack.c.b16 %v281, %v280
    %v317 = vpack.c.b16 %v283, %v282
    %v318 = vpack.c.b16 %v285, %v284
    %v319 = vpack.c.b16 %v287, %v286
    %v320 = vpack.c.b16 %v289, %v288
    %v321 = vpack.c.b16 %v291, %v290
    %v322 = vpack.c.b16 %v293, %v292
    %v323 = vpack.c.b16 %v295, %v294
    %v368 = vunpack.c.l.b16 %v168
    %v369 = vunpack.c.l.b16 %v169
    %v370 = vunpack.c.l.b16 %v170
    %v371 = vunpack.c.l.b16 %v171
    %v372 = vunpack.c.l.b16 %v172
    %v373 = vunpack.c.l.b16 %v173
    %v374 = vunpack.c.l.b16 %v174
    %v375 = vunpack.c.l.b16 %v175
    %v376 = vunpack.c.l.b16 %v176
    %v377 = vunpack.c.l.b16 %v177
    %v378 = vunpack.c.l.b16 %v178
    %v379 = vunpack.c.l.b16 %v179
    %v380 = vunpack.c.l.b16 %v180
    %v381 = vunpack.c.l.b16 %v181
    %v382 = vunpack.c.l.b16 %v182
    %v383 = vunpack.c.l.b16 %v183
    %v384 = vpack.c.b16 %v369, %v368
    %v385 = vpack.c.b16 %v371, %v370
    %v386 = vpack.c.b16 %v373, %v372
    %v387 = vpack.c.b16 %v375, %v374
    %v388 = vpack.c.b16 %v377, %v376
    %v389 = vpack.c.b16 %v379, %v378
    %v390 = vpack.c.b16 %v381, %v380
    %v391 = vpack.c.b16 %v383, %v382
    %400 = vmatpush.bf16.msra.mxu0 %v391
    %401 = vmatpush.bf16.msra.mxu0 %v390
    %402 = vmatpush.bf16.msra.mxu0 %v389
    %403 = vmatpush.bf16.msra.mxu0 %v388
    %404 = vmatpush.bf16.msra.mxu0 %v387
    %405 = vmatpush.bf16.msra.mxu0 %v386
    %406 = vmatpush.bf16.msra.mxu0 %v385
    %407 = vmatpush.bf16.msra.mxu0 %v384
    %408 = vmatmul.bf16.gmra.mxu0 %v296
    %v409 = vpop.f32.mrf.mxu0
    %v410 = vadd.f32 0.0, %v409
    %v411 = vpop.f32.mrf.mxu0
    %v412 = vadd.f32 0.0, %v411
    %413 = vmatmul.bf16.gmra.mxu0 %v297
    %v414 = vpop.f32.mrf.mxu0
    %v415 = vadd.f32 0.0, %v414
    %v416 = vpop.f32.mrf.mxu0
    %v417 = vadd.f32 0.0, %v416
    %418 = vmatmul.bf16.gmra.mxu0 %v298
    %v419 = vpop.f32.mrf.mxu0
    %v420 = vadd.f32 0.0, %v419
    %v421 = vpop.f32.mrf.mxu0
    %v422 = vadd.f32 0.0, %v421
    %423 = vmatmul.bf16.gmra.mxu0 %v299
    %v424 = vpop.f32.mrf.mxu0
    %v425 = vadd.f32 0.0, %v424
    %v426 = vpop.f32.mrf.mxu0
    %v427 = vadd.f32 0.0, %v426
    %428 = vmatmul.bf16.gmra.mxu0 %v300
    %v429 = vpop.f32.mrf.mxu0
    %v430 = vadd.f32 0.0, %v429
    %v431 = vpop.f32.mrf.mxu0
    %v432 = vadd.f32 0.0, %v431
    %433 = vmatmul.bf16.gmra.mxu0 %v301
    %v434 = vpop.f32.mrf.mxu0
    %v435 = vadd.f32 0.0, %v434
    %v436 = vpop.f32.mrf.mxu0
    %v437 = vadd.f32 0.0, %v436
    %438 = vmatmul.bf16.gmra.mxu0 %v302
    %v439 = vpop.f32.mrf.mxu0
    %v440 = vadd.f32 0.0, %v439
    %v441 = vpop.f32.mrf.mxu0
    %v442 = vadd.f32 0.0, %v441
    %443 = vmatmul.bf16.gmra.mxu0 %v303
    %v444 = vpop.f32.mrf.mxu0
    %v445 = vadd.f32 0.0, %v444
    %v446 = vpop.f32.mrf.mxu0
    %v447 = vadd.f32 0.0, %v446
    %448 = vmatmul.bf16.gmra.mxu0 %v304
    %v449 = vpop.f32.mrf.mxu0
    %v450 = vadd.f32 0.0, %v449
    %v451 = vpop.f32.mrf.mxu0
    %v452 = vadd.f32 0.0, %v451
    %453 = vmatmul.bf16.gmra.mxu0 %v305
    %v454 = vpop.f32.mrf.mxu0
    %v455 = vadd.f32 0.0, %v454
    %v456 = vpop.f32.mrf.mxu0
    %v457 = vadd.f32 0.0, %v456
    %458 = vmatmul.bf16.gmra.mxu0 %v306
    %v459 = vpop.f32.mrf.mxu0
    %v460 = vadd.f32 0.0, %v459
    %v461 = vpop.f32.mrf.mxu0
    %v462 = vadd.f32 0.0, %v461
    %463 = vmatmul.bf16.gmra.mxu0 %v307
    %v464 = vpop.f32.mrf.mxu0
    %v465 = vadd.f32 0.0, %v464
    %v466 = vpop.f32.mrf.mxu0
    %v467 = vadd.f32 0.0, %v466
    %468 = vmatmul.bf16.gmra.mxu0 %v308
    %v469 = vpop.f32.mrf.mxu0
    %v470 = vadd.f32 0.0, %v469
    %v471 = vpop.f32.mrf.mxu0
    %v472 = vadd.f32 0.0, %v471
    %473 = vmatmul.bf16.gmra.mxu0 %v309
    %v474 = vpop.f32.mrf.mxu0
    %v475 = vadd.f32 0.0, %v474
    %v476 = vpop.f32.mrf.mxu0
    %v477 = vadd.f32 0.0, %v476
    %478 = vmatmul.bf16.gmra.mxu0 %v310
    %v479 = vpop.f32.mrf.mxu0
    %v480 = vadd.f32 0.0, %v479
    %v481 = vpop.f32.mrf.mxu0
    %v482 = vadd.f32 0.0, %v481
    %483 = vmatmul.bf16.gmra.mxu0 %v311
    %v484 = vpop.f32.mrf.mxu0
    %v485 = vadd.f32 0.0, %v484
    %v486 = vpop.f32.mrf.mxu0
    %v487 = vadd.f32 0.0, %v486
    %488 = vmatmul.bf16.gmra.mxu0 %v312
    %v489 = vpop.f32.mrf.mxu0
    %v490 = vadd.f32 0.0, %v489
    %v491 = vpop.f32.mrf.mxu0
    %v492 = vadd.f32 0.0, %v491
    %493 = vmatmul.bf16.gmra.mxu0 %v313
    %v494 = vpop.f32.mrf.mxu0
    %v495 = vadd.f32 0.0, %v494
    %v496 = vpop.f32.mrf.mxu0
    %v497 = vadd.f32 0.0, %v496
    %498 = vmatmul.bf16.gmra.mxu0 %v314
    %v499 = vpop.f32.mrf.mxu0
    %v500 = vadd.f32 0.0, %v499
    %v501 = vpop.f32.mrf.mxu0
    %v502 = vadd.f32 0.0, %v501
    %503 = vmatmul.bf16.gmra.mxu0 %v315
    %v504 = vpop.f32.mrf.mxu0
    %v505 = vadd.f32 0.0, %v504
    %v506 = vpop.f32.mrf.mxu0
    %v507 = vadd.f32 0.0, %v506
    %508 = vmatmul.bf16.gmra.mxu0 %v316
    %v509 = vpop.f32.mrf.mxu0
    %v510 = vadd.f32 0.0, %v509
    %v511 = vpop.f32.mrf.mxu0
    %v512 = vadd.f32 0.0, %v511
    %513 = vmatmul.bf16.gmra.mxu0 %v317
    %v514 = vpop.f32.mrf.mxu0
    %v515 = vadd.f32 0.0, %v514
    %v516 = vpop.f32.mrf.mxu0
    %v517 = vadd.f32 0.0, %v516
    %518 = vmatmul.bf16.gmra.mxu0 %v318
    %v519 = vpop.f32.mrf.mxu0
    %v520 = vadd.f32 0.0, %v519
    %v521 = vpop.f32.mrf.mxu0
    %v522 = vadd.f32 0.0, %v521
    %523 = vmatmul.bf16.gmra.mxu0 %v319
    %v524 = vpop.f32.mrf.mxu0
    %v525 = vadd.f32 0.0, %v524
    %v526 = vpop.f32.mrf.mxu0
    %v527 = vadd.f32 0.0, %v526
    %528 = vmatmul.bf16.gmra.mxu0 %v320
    %v529 = vpop.f32.mrf.mxu0
    %v530 = vadd.f32 0.0, %v529
    %v531 = vpop.f32.mrf.mxu0
    %v532 = vadd.f32 0.0, %v531
    %533 = vmatmul.bf16.gmra.mxu0 %v321
    %v534 = vpop.f32.mrf.mxu0
    %v535 = vadd.f32 0.0, %v534
    %v536 = vpop.f32.mrf.mxu0
    %v537 = vadd.f32 0.0, %v536
    %538 = vmatmul.bf16.gmra.mxu0 %v322
    %v539 = vpop.f32.mrf.mxu0
    %v540 = vadd.f32 0.0, %v539
    %v541 = vpop.f32.mrf.mxu0
    %v542 = vadd.f32 0.0, %v541
    %543 = vmatmul.bf16.gmra.mxu0 %v323
    %v544 = vpop.f32.mrf.mxu0
    %v545 = vadd.f32 0.0, %v544
    %v546 = vpop.f32.mrf.mxu0
    %v547 = vadd.f32 0.0, %v546
    %548 = vdwg.mxu0
    %v551 = vunpack.c.l.b16 %v70
    %v552 = vunpack.c.l.b16 %v71
    %v553 = vpack.c.b16 %v552, %v551
    %v571 = vunpack.c.l.b16 %v134
    %v572 = vunpack.c.l.b16 %v135
    %v573 = vunpack.c.l.b16 %v136
    %v574 = vunpack.c.l.b16 %v137
    %v575 = vunpack.c.l.b16 %v138
    %v576 = vunpack.c.l.b16 %v139
    %v577 = vunpack.c.l.b16 %v140
    %v578 = vunpack.c.l.b16 %v141
    %v579 = vunpack.c.l.b16 %v142
    %v580 = vunpack.c.l.b16 %v143
    %v581 = vunpack.c.l.b16 %v144
    %v582 = vunpack.c.l.b16 %v145
    %v583 = vunpack.c.l.b16 %v146
    %v584 = vunpack.c.l.b16 %v147
    %v585 = vunpack.c.l.b16 %v148
    %v586 = vunpack.c.l.b16 %v149
    %v587 = vpack.c.b16 %v572, %v571
    %v588 = vpack.c.b16 %v574, %v573
    %v589 = vpack.c.b16 %v576, %v575
    %v590 = vpack.c.b16 %v578, %v577
    %v591 = vpack.c.b16 %v580, %v579
    %v592 = vpack.c.b16 %v582, %v581
    %v593 = vpack.c.b16 %v584, %v583
    %v594 = vpack.c.b16 %v586, %v585
    %603 = vmatpush.bf16.msra.mxu0 %v594
    %604 = vmatpush.bf16.msra.mxu0 %v593
    %605 = vmatpush.bf16.msra.mxu0 %v592
    %606 = vmatpush.bf16.msra.mxu0 %v591
    %607 = vmatpush.bf16.msra.mxu0 %v590
    %608 = vmatpush.bf16.msra.mxu0 %v589
    %609 = vmatpush.bf16.msra.mxu0 %v588
    %610 = vmatpush.bf16.msra.mxu0 %v587
    %611 = vmatmul.bf16.gmra.mxu0 %v553
    %v612 = vpop.f32.mrf.mxu0
    %v613 = vadd.f32 %v410, %v612
    %v614 = vpop.f32.mrf.mxu0
    %v615 = vadd.f32 %v412, %v614
    %616 = vmatmul.bf16.gmra.mxu0 %v296
    %v617 = vpop.f32.mrf.mxu0
    %v618 = vadd.f32 %v415, %v617
    %v619 = vpop.f32.mrf.mxu0
    %v620 = vadd.f32 %v417, %v619
    %621 = vmatmul.bf16.gmra.mxu0 %v297
    %v622 = vpop.f32.mrf.mxu0
    %v623 = vadd.f32 %v420, %v622
    %v624 = vpop.f32.mrf.mxu0
    %v625 = vadd.f32 %v422, %v624
    %626 = vmatmul.bf16.gmra.mxu0 %v298
    %v627 = vpop.f32.mrf.mxu0
    %v628 = vadd.f32 %v425, %v627
    %v629 = vpop.f32.mrf.mxu0
    %v630 = vadd.f32 %v427, %v629
    %631 = vmatmul.bf16.gmra.mxu0 %v299
    %v632 = vpop.f32.mrf.mxu0
    %v633 = vadd.f32 %v430, %v632
    %v634 = vpop.f32.mrf.mxu0
    %v635 = vadd.f32 %v432, %v634
    %636 = vmatmul.bf16.gmra.mxu0 %v300
    %v637 = vpop.f32.mrf.mxu0
    %v638 = vadd.f32 %v435, %v637
    %v639 = vpop.f32.mrf.mxu0
    %v640 = vadd.f32 %v437, %v639
    %641 = vmatmul.bf16.gmra.mxu0 %v301
    %v642 = vpop.f32.mrf.mxu0
    %v643 = vadd.f32 %v440, %v642
    %v644 = vpop.f32.mrf.mxu0
    %v645 = vadd.f32 %v442, %v644
    %646 = vmatmul.bf16.gmra.mxu0 %v302
    %v647 = vpop.f32.mrf.mxu0
    %v648 = vadd.f32 %v445, %v647
    %v649 = vpop.f32.mrf.mxu0
    %v650 = vadd.f32 %v447, %v649
    %651 = vmatmul.bf16.gmra.mxu0 %v303
    %v652 = vpop.f32.mrf.mxu0
    %v653 = vadd.f32 %v450, %v652
    %v654 = vpop.f32.mrf.mxu0
    %v655 = vadd.f32 %v452, %v654
    %656 = vmatmul.bf16.gmra.mxu0 %v304
    %v657 = vpop.f32.mrf.mxu0
    %v658 = vadd.f32 %v455, %v657
    %v659 = vpop.f32.mrf.mxu0
    %v660 = vadd.f32 %v457, %v659
    %661 = vmatmul.bf16.gmra.mxu0 %v305
    %v662 = vpop.f32.mrf.mxu0
    %v663 = vadd.f32 %v460, %v662
    %v664 = vpop.f32.mrf.mxu0
    %v665 = vadd.f32 %v462, %v664
    %666 = vmatmul.bf16.gmra.mxu0 %v306
    %v667 = vpop.f32.mrf.mxu0
    %v668 = vadd.f32 %v465, %v667
    %v669 = vpop.f32.mrf.mxu0
    %v670 = vadd.f32 %v467, %v669
    %671 = vmatmul.bf16.gmra.mxu0 %v307
    %v672 = vpop.f32.mrf.mxu0
    %v673 = vadd.f32 %v470, %v672
    %v674 = vpop.f32.mrf.mxu0
    %v675 = vadd.f32 %v472, %v674
    %676 = vmatmul.bf16.gmra.mxu0 %v308
    %v677 = vpop.f32.mrf.mxu0
    %v678 = vadd.f32 %v475, %v677
    %v679 = vpop.f32.mrf.mxu0
    %v680 = vadd.f32 %v477, %v679
    %681 = vmatmul.bf16.gmra.mxu0 %v309
    %v682 = vpop.f32.mrf.mxu0
    %v683 = vadd.f32 %v480, %v682
    %v684 = vpop.f32.mrf.mxu0
    %v685 = vadd.f32 %v482, %v684
    %686 = vmatmul.bf16.gmra.mxu0 %v310
    %v687 = vpop.f32.mrf.mxu0
    %v688 = vadd.f32 %v485, %v687
    %v689 = vpop.f32.mrf.mxu0
    %v690 = vadd.f32 %v487, %v689
    %691 = vmatmul.bf16.gmra.mxu0 %v311
    %v692 = vpop.f32.mrf.mxu0
    %v693 = vadd.f32 %v490, %v692
    %v694 = vpop.f32.mrf.mxu0
    %v695 = vadd.f32 %v492, %v694
    %696 = vmatmul.bf16.gmra.mxu0 %v312
    %v697 = vpop.f32.mrf.mxu0
    %v698 = vadd.f32 %v495, %v697
    %v699 = vpop.f32.mrf.mxu0
    %v700 = vadd.f32 %v497, %v699
    %701 = vmatmul.bf16.gmra.mxu0 %v313
    %v702 = vpop.f32.mrf.mxu0
    %v703 = vadd.f32 %v500, %v702
    %v704 = vpop.f32.mrf.mxu0
    %v705 = vadd.f32 %v502, %v704
    %706 = vmatmul.bf16.gmra.mxu0 %v314
    %v707 = vpop.f32.mrf.mxu0
    %v708 = vadd.f32 %v505, %v707
    %v709 = vpop.f32.mrf.mxu0
    %v710 = vadd.f32 %v507, %v709
    %711 = vmatmul.bf16.gmra.mxu0 %v315
    %v712 = vpop.f32.mrf.mxu0
    %v713 = vadd.f32 %v510, %v712
    %v714 = vpop.f32.mrf.mxu0
    %v715 = vadd.f32 %v512, %v714
    %716 = vmatmul.bf16.gmra.mxu0 %v316
    %v717 = vpop.f32.mrf.mxu0
    %v718 = vadd.f32 %v515, %v717
    %v719 = vpop.f32.mrf.mxu0
    %v720 = vadd.f32 %v517, %v719
    %721 = vmatmul.bf16.gmra.mxu0 %v317
    %v722 = vpop.f32.mrf.mxu0
    %v723 = vadd.f32 %v520, %v722
    %v724 = vpop.f32.mrf.mxu0
    %v725 = vadd.f32 %v522, %v724
    %726 = vmatmul.bf16.gmra.mxu0 %v318
    %v727 = vpop.f32.mrf.mxu0
    %v728 = vadd.f32 %v525, %v727
    %v729 = vpop.f32.mrf.mxu0
    %v730 = vadd.f32 %v527, %v729
    %731 = vmatmul.bf16.gmra.mxu0 %v319
    %v732 = vpop.f32.mrf.mxu0
    %v733 = vadd.f32 %v530, %v732
    %v734 = vpop.f32.mrf.mxu0
    %v735 = vadd.f32 %v532, %v734
    %736 = vmatmul.bf16.gmra.mxu0 %v320
    %v737 = vpop.f32.mrf.mxu0
    %v738 = vadd.f32 %v535, %v737
    %v739 = vpop.f32.mrf.mxu0
    %v740 = vadd.f32 %v537, %v739
    %741 = vmatmul.bf16.gmra.mxu0 %v321
    %v742 = vpop.f32.mrf.mxu0
    %v743 = vadd.f32 %v540, %v742
    %v744 = vpop.f32.mrf.mxu0
    %v745 = vadd.f32 %v542, %v744
    %746 = vmatmul.bf16.gmra.mxu0 %v322
    %v747 = vpop.f32.mrf.mxu0
    %v748 = vadd.f32 %v545, %v747
    %v749 = vpop.f32.mrf.mxu0
    %v750 = vadd.f32 %v547, %v749
    %751 = vdwg.mxu0
    %s752 = scalar_lea.vmem %s1, 192
    %v753 = vld [vmem:[%s752] sm:$0xf]
    %v754 = vld [vmem:[%s752 + $0x4] sm:$0xf]
    %v755 = vld [vmem:[%s752 + $0x8] sm:$0xf]
    %v756 = vld [vmem:[%s752 + $0xc] sm:$0xf]
    %v757 = vld [vmem:[%s752 + $0x10] sm:$0xf]
    %v758 = vld [vmem:[%s752 + $0x14] sm:$0xf]
    %v759 = vld [vmem:[%s752 + $0x18] sm:$0xf]
    %v760 = vld [vmem:[%s752 + $0x1c] sm:$0xf]
    %v761 = vld [vmem:[%s752 + $0x20] sm:$0xf]
    %v762 = vld [vmem:[%s752 + $0x24] sm:$0xf]
    %v763 = vld [vmem:[%s752 + $0x28] sm:$0xf]
    %v764 = vld [vmem:[%s752 + $0x2c] sm:$0xf]
    %v765 = vld [vmem:[%s752 + $0x30] sm:$0xf]
    %v766 = vld [vmem:[%s752 + $0x34] sm:$0xf]
    %v767 = vld [vmem:[%s752 + $0x38] sm:$0xf]
    %v768 = vld [vmem:[%s752 + $0x3c] sm:$0xf]
    %v785 = vunpack.c.l.b16 %v753
    %v786 = vunpack.c.l.b16 %v754
    %v787 = vunpack.c.l.b16 %v755
    %v788 = vunpack.c.l.b16 %v756
    %v789 = vunpack.c.l.b16 %v757
    %v790 = vunpack.c.l.b16 %v758
    %v791 = vunpack.c.l.b16 %v759
    %v792 = vunpack.c.l.b16 %v760
    %v793 = vunpack.c.l.b16 %v761
    %v794 = vunpack.c.l.b16 %v762
    %v795 = vunpack.c.l.b16 %v763
    %v796 = vunpack.c.l.b16 %v764
    %v797 = vunpack.c.l.b16 %v765
    %v798 = vunpack.c.l.b16 %v766
    %v799 = vunpack.c.l.b16 %v767
    %v800 = vunpack.c.l.b16 %v768
    %v801 = vpack.c.b16 %v786, %v785
    %v802 = vpack.c.b16 %v788, %v787
    %v803 = vpack.c.b16 %v790, %v789
    %v804 = vpack.c.b16 %v792, %v791
    %v805 = vpack.c.b16 %v794, %v793
    %v806 = vpack.c.b16 %v796, %v795
    %v807 = vpack.c.b16 %v798, %v797
    %v808 = vpack.c.b16 %v800, %v799
    %817 = vmatpush.bf16.msra.mxu0 %v808
    %818 = vmatpush.bf16.msra.mxu0 %v807
    %819 = vmatpush.bf16.msra.mxu0 %v806
    %820 = vmatpush.bf16.msra.mxu0 %v805
    %821 = vmatpush.bf16.msra.mxu0 %v804
    %822 = vmatpush.bf16.msra.mxu0 %v803
    %823 = vmatpush.bf16.msra.mxu0 %v802
    %824 = vmatpush.bf16.msra.mxu0 %v801
    %825 = vmatmul.bf16.gmra.mxu0 %v296
    %v826 = vpop.f32.mrf.mxu0
    %v827 = vadd.f32 0.0, %v826
    %v828 = vpop.f32.mrf.mxu0
    %v829 = vadd.f32 0.0, %v828
    %830 = vmatmul.bf16.gmra.mxu0 %v297
    %v831 = vpop.f32.mrf.mxu0
    %v832 = vadd.f32 0.0, %v831
    %v833 = vpop.f32.mrf.mxu0
    %v834 = vadd.f32 0.0, %v833
    %835 = vmatmul.bf16.gmra.mxu0 %v298
    %v836 = vpop.f32.mrf.mxu0
    %v837 = vadd.f32 0.0, %v836
    %v838 = vpop.f32.mrf.mxu0
    %v839 = vadd.f32 0.0, %v838
    %840 = vmatmul.bf16.gmra.mxu0 %v299
    %v841 = vpop.f32.mrf.mxu0
    %v842 = vadd.f32 0.0, %v841
    %v843 = vpop.f32.mrf.mxu0
    %v844 = vadd.f32 0.0, %v843
    %845 = vmatmul.bf16.gmra.mxu0 %v300
    %v846 = vpop.f32.mrf.mxu0
    %v847 = vadd.f32 0.0, %v846
    %v848 = vpop.f32.mrf.mxu0
    %v849 = vadd.f32 0.0, %v848
    %850 = vmatmul.bf16.gmra.mxu0 %v301
    %v851 = vpop.f32.mrf.mxu0
    %v852 = vadd.f32 0.0, %v851
    %v853 = vpop.f32.mrf.mxu0
    %v854 = vadd.f32 0.0, %v853
    %855 = vmatmul.bf16.gmra.mxu0 %v302
    %v856 = vpop.f32.mrf.mxu0
    %v857 = vadd.f32 0.0, %v856
    %v858 = vpop.f32.mrf.mxu0
    %v859 = vadd.f32 0.0, %v858
    %860 = vmatmul.bf16.gmra.mxu0 %v303
    %v861 = vpop.f32.mrf.mxu0
    %v862 = vadd.f32 0.0, %v861
    %v863 = vpop.f32.mrf.mxu0
    %v864 = vadd.f32 0.0, %v863
    %865 = vmatmul.bf16.gmra.mxu0 %v304
    %v866 = vpop.f32.mrf.mxu0
    %v867 = vadd.f32 0.0, %v866
    %v868 = vpop.f32.mrf.mxu0
    %v869 = vadd.f32 0.0, %v868
    %870 = vmatmul.bf16.gmra.mxu0 %v305
    %v871 = vpop.f32.mrf.mxu0
    %v872 = vadd.f32 0.0, %v871
    %v873 = vpop.f32.mrf.mxu0
    %v874 = vadd.f32 0.0, %v873
    %875 = vmatmul.bf16.gmra.mxu0 %v306
    %v876 = vpop.f32.mrf.mxu0
    %v877 = vadd.f32 0.0, %v876
    %v878 = vpop.f32.mrf.mxu0
    %v879 = vadd.f32 0.0, %v878
    %880 = vmatmul.bf16.gmra.mxu0 %v307
    %v881 = vpop.f32.mrf.mxu0
    %v882 = vadd.f32 0.0, %v881
    %v883 = vpop.f32.mrf.mxu0
    %v884 = vadd.f32 0.0, %v883
    %885 = vmatmul.bf16.gmra.mxu0 %v308
    %v886 = vpop.f32.mrf.mxu0
    %v887 = vadd.f32 0.0, %v886
    %v888 = vpop.f32.mrf.mxu0
    %v889 = vadd.f32 0.0, %v888
    %890 = vmatmul.bf16.gmra.mxu0 %v309
    %v891 = vpop.f32.mrf.mxu0
    %v892 = vadd.f32 0.0, %v891
    %v893 = vpop.f32.mrf.mxu0
    %v894 = vadd.f32 0.0, %v893
    %895 = vmatmul.bf16.gmra.mxu0 %v310
    %v896 = vpop.f32.mrf.mxu0
    %v897 = vadd.f32 0.0, %v896
    %v898 = vpop.f32.mrf.mxu0
    %v899 = vadd.f32 0.0, %v898
    %900 = vmatmul.bf16.gmra.mxu0 %v311
    %v901 = vpop.f32.mrf.mxu0
    %v902 = vadd.f32 0.0, %v901
    %v903 = vpop.f32.mrf.mxu0
    %v904 = vadd.f32 0.0, %v903
    %905 = vmatmul.bf16.gmra.mxu0 %v312
    %v906 = vpop.f32.mrf.mxu0
    %v907 = vadd.f32 0.0, %v906
    %v908 = vpop.f32.mrf.mxu0
    %v909 = vadd.f32 0.0, %v908
    %910 = vmatmul.bf16.gmra.mxu0 %v313
    %v911 = vpop.f32.mrf.mxu0
    %v912 = vadd.f32 0.0, %v911
    %v913 = vpop.f32.mrf.mxu0
    %v914 = vadd.f32 0.0, %v913
    %915 = vmatmul.bf16.gmra.mxu0 %v314
    %v916 = vpop.f32.mrf.mxu0
    %v917 = vadd.f32 0.0, %v916
    %v918 = vpop.f32.mrf.mxu0
    %v919 = vadd.f32 0.0, %v918
    %920 = vmatmul.bf16.gmra.mxu0 %v315
    %v921 = vpop.f32.mrf.mxu0
    %v922 = vadd.f32 0.0, %v921
    %v923 = vpop.f32.mrf.mxu0
    %v924 = vadd.f32 0.0, %v923
    %925 = vmatmul.bf16.gmra.mxu0 %v316
    %v926 = vpop.f32.mrf.mxu0
    %v927 = vadd.f32 0.0, %v926
    %v928 = vpop.f32.mrf.mxu0
    %v929 = vadd.f32 0.0, %v928
    %930 = vmatmul.bf16.gmra.mxu0 %v317
    %v931 = vpop.f32.mrf.mxu0
    %v932 = vadd.f32 0.0, %v931
    %v933 = vpop.f32.mrf.mxu0
    %v934 = vadd.f32 0.0, %v933
    %935 = vmatmul.bf16.gmra.mxu0 %v318
    %v936 = vpop.f32.mrf.mxu0
    %v937 = vadd.f32 0.0, %v936
    %v938 = vpop.f32.mrf.mxu0
    %v939 = vadd.f32 0.0, %v938
    %940 = vmatmul.bf16.gmra.mxu0 %v319
    %v941 = vpop.f32.mrf.mxu0
    %v942 = vadd.f32 0.0, %v941
    %v943 = vpop.f32.mrf.mxu0
    %v944 = vadd.f32 0.0, %v943
    %945 = vmatmul.bf16.gmra.mxu0 %v320
    %v946 = vpop.f32.mrf.mxu0
    %v947 = vadd.f32 0.0, %v946
    %v948 = vpop.f32.mrf.mxu0
    %v949 = vadd.f32 0.0, %v948
    %950 = vmatmul.bf16.gmra.mxu0 %v321
    %v951 = vpop.f32.mrf.mxu0
    %v952 = vadd.f32 0.0, %v951
    %v953 = vpop.f32.mrf.mxu0
    %v954 = vadd.f32 0.0, %v953
    %955 = vmatmul.bf16.gmra.mxu0 %v322
    %v956 = vpop.f32.mrf.mxu0
    %v957 = vadd.f32 0.0, %v956
    %v958 = vpop.f32.mrf.mxu0
    %v959 = vadd.f32 0.0, %v958
    %960 = vmatmul.bf16.gmra.mxu0 %v323
    %v961 = vpop.f32.mrf.mxu0
    %v962 = vadd.f32 0.0, %v961
    %v963 = vpop.f32.mrf.mxu0
    %v964 = vadd.f32 0.0, %v963
    %965 = vdwg.mxu0
    %v982 = vunpack.c.l.b16 %v151
    %v983 = vunpack.c.l.b16 %v152
    %v984 = vunpack.c.l.b16 %v153
    %v985 = vunpack.c.l.b16 %v154
    %v986 = vunpack.c.l.b16 %v155
    %v987 = vunpack.c.l.b16 %v156
    %v988 = vunpack.c.l.b16 %v157
    %v989 = vunpack.c.l.b16 %v158
    %v990 = vunpack.c.l.b16 %v159
    %v991 = vunpack.c.l.b16 %v160
    %v992 = vunpack.c.l.b16 %v161
    %v993 = vunpack.c.l.b16 %v162
    %v994 = vunpack.c.l.b16 %v163
    %v995 = vunpack.c.l.b16 %v164
    %v996 = vunpack.c.l.b16 %v165
    %v997 = vunpack.c.l.b16 %v166
    %v998 = vpack.c.b16 %v983, %v982
    %v999 = vpack.c.b16 %v985, %v984
    %v1000 = vpack.c.b16 %v987, %v986
    %v1001 = vpack.c.b16 %v989, %v988
    %v1002 = vpack.c.b16 %v991, %v990
    %v1003 = vpack.c.b16 %v993, %v992
    %v1004 = vpack.c.b16 %v995, %v994
    %v1005 = vpack.c.b16 %v997, %v996
    %1014 = vmatpush.bf16.msra.mxu0 %v1005
    %1015 = vmatpush.bf16.msra.mxu0 %v1004
    %1016 = vmatpush.bf16.msra.mxu0 %v1003
    %1017 = vmatpush.bf16.msra.mxu0 %v1002
    %1018 = vmatpush.bf16.msra.mxu0 %v1001
    %1019 = vmatpush.bf16.msra.mxu0 %v1000
    %1020 = vmatpush.bf16.msra.mxu0 %v999
    %1021 = vmatpush.bf16.msra.mxu0 %v998
    %1022 = vmatmul.bf16.gmra.mxu0 %v553
    %v1023 = vpop.f32.mrf.mxu0
    %v1024 = vadd.f32 %v827, %v1023
    %v1025 = vpop.f32.mrf.mxu0
    %v1026 = vadd.f32 %v829, %v1025
    %1027 = vmatmul.bf16.gmra.mxu0 %v296
    %v1028 = vpop.f32.mrf.mxu0
    %v1029 = vadd.f32 %v832, %v1028
    %v1030 = vpop.f32.mrf.mxu0
    %v1031 = vadd.f32 %v834, %v1030
    %1032 = vmatmul.bf16.gmra.mxu0 %v297
    %v1033 = vpop.f32.mrf.mxu0
    %v1034 = vadd.f32 %v837, %v1033
    %v1035 = vpop.f32.mrf.mxu0
    %v1036 = vadd.f32 %v839, %v1035
    %1037 = vmatmul.bf16.gmra.mxu0 %v298
    %v1038 = vpop.f32.mrf.mxu0
    %v1039 = vadd.f32 %v842, %v1038
    %v1040 = vpop.f32.mrf.mxu0
    %v1041 = vadd.f32 %v844, %v1040
    %1042 = vmatmul.bf16.gmra.mxu0 %v299
    %v1043 = vpop.f32.mrf.mxu0
    %v1044 = vadd.f32 %v847, %v1043
    %v1045 = vpop.f32.mrf.mxu0
    %v1046 = vadd.f32 %v849, %v1045
    %1047 = vmatmul.bf16.gmra.mxu0 %v300
    %v1048 = vpop.f32.mrf.mxu0
    %v1049 = vadd.f32 %v852, %v1048
    %v1050 = vpop.f32.mrf.mxu0
    %v1051 = vadd.f32 %v854, %v1050
    %1052 = vmatmul.bf16.gmra.mxu0 %v301
    %v1053 = vpop.f32.mrf.mxu0
    %v1054 = vadd.f32 %v857, %v1053
    %v1055 = vpop.f32.mrf.mxu0
    %v1056 = vadd.f32 %v859, %v1055
    %1057 = vmatmul.bf16.gmra.mxu0 %v302
    %v1058 = vpop.f32.mrf.mxu0
    %v1059 = vadd.f32 %v862, %v1058
    %v1060 = vpop.f32.mrf.mxu0
    %v1061 = vadd.f32 %v864, %v1060
    %1062 = vmatmul.bf16.gmra.mxu0 %v303
    %v1063 = vpop.f32.mrf.mxu0
    %v1064 = vadd.f32 %v867, %v1063
    %v1065 = vpop.f32.mrf.mxu0
    %v1066 = vadd.f32 %v869, %v1065
    %1067 = vmatmul.bf16.gmra.mxu0 %v304
    %v1068 = vpop.f32.mrf.mxu0
    %v1069 = vadd.f32 %v872, %v1068
    %v1070 = vpop.f32.mrf.mxu0
    %v1071 = vadd.f32 %v874, %v1070
    %1072 = vmatmul.bf16.gmra.mxu0 %v305
    %v1073 = vpop.f32.mrf.mxu0
    %v1074 = vadd.f32 %v877, %v1073
    %v1075 = vpop.f32.mrf.mxu0
    %v1076 = vadd.f32 %v879, %v1075
    %1077 = vmatmul.bf16.gmra.mxu0 %v306
    %v1078 = vpop.f32.mrf.mxu0
    %v1079 = vadd.f32 %v882, %v1078
    %v1080 = vpop.f32.mrf.mxu0
    %v1081 = vadd.f32 %v884, %v1080
    %1082 = vmatmul.bf16.gmra.mxu0 %v307
    %v1083 = vpop.f32.mrf.mxu0
    %v1084 = vadd.f32 %v887, %v1083
    %v1085 = vpop.f32.mrf.mxu0
    %v1086 = vadd.f32 %v889, %v1085
    %1087 = vmatmul.bf16.gmra.mxu0 %v308
    %v1088 = vpop.f32.mrf.mxu0
    %v1089 = vadd.f32 %v892, %v1088
    %v1090 = vpop.f32.mrf.mxu0
    %v1091 = vadd.f32 %v894, %v1090
    %1092 = vmatmul.bf16.gmra.mxu0 %v309
    %v1093 = vpop.f32.mrf.mxu0
    %v1094 = vadd.f32 %v897, %v1093
    %v1095 = vpop.f32.mrf.mxu0
    %v1096 = vadd.f32 %v899, %v1095
    %1097 = vmatmul.bf16.gmra.mxu0 %v310
    %v1098 = vpop.f32.mrf.mxu0
    %v1099 = vadd.f32 %v902, %v1098
    %v1100 = vpop.f32.mrf.mxu0
    %v1101 = vadd.f32 %v904, %v1100
    %1102 = vmatmul.bf16.gmra.mxu0 %v311
    %v1103 = vpop.f32.mrf.mxu0
    %v1104 = vadd.f32 %v907, %v1103
    %v1105 = vpop.f32.mrf.mxu0
    %v1106 = vadd.f32 %v909, %v1105
    %1107 = vmatmul.bf16.gmra.mxu0 %v312
    %v1108 = vpop.f32.mrf.mxu0
    %v1109 = vadd.f32 %v912, %v1108
    %v1110 = vpop.f32.mrf.mxu0
    %v1111 = vadd.f32 %v914, %v1110
    %1112 = vmatmul.bf16.gmra.mxu0 %v313
    %v1113 = vpop.f32.mrf.mxu0
    %v1114 = vadd.f32 %v917, %v1113
    %v1115 = vpop.f32.mrf.mxu0
    %v1116 = vadd.f32 %v919, %v1115
    %1117 = vmatmul.bf16.gmra.mxu0 %v314
    %v1118 = vpop.f32.mrf.mxu0
    %v1119 = vadd.f32 %v922, %v1118
    %v1120 = vpop.f32.mrf.mxu0
    %v1121 = vadd.f32 %v924, %v1120
    %1122 = vmatmul.bf16.gmra.mxu0 %v315
    %v1123 = vpop.f32.mrf.mxu0
    %v1124 = vadd.f32 %v927, %v1123
    %v1125 = vpop.f32.mrf.mxu0
    %v1126 = vadd.f32 %v929, %v1125
    %1127 = vmatmul.bf16.gmra.mxu0 %v316
    %v1128 = vpop.f32.mrf.mxu0
    %v1129 = vadd.f32 %v932, %v1128
    %v1130 = vpop.f32.mrf.mxu0
    %v1131 = vadd.f32 %v934, %v1130
    %1132 = vmatmul.bf16.gmra.mxu0 %v317
    %v1133 = vpop.f32.mrf.mxu0
    %v1134 = vadd.f32 %v937, %v1133
    %v1135 = vpop.f32.mrf.mxu0
    %v1136 = vadd.f32 %v939, %v1135
    %1137 = vmatmul.bf16.gmra.mxu0 %v318
    %v1138 = vpop.f32.mrf.mxu0
    %v1139 = vadd.f32 %v942, %v1138
    %v1140 = vpop.f32.mrf.mxu0
    %v1141 = vadd.f32 %v944, %v1140
    %1142 = vmatmul.bf16.gmra.mxu0 %v319
    %v1143 = vpop.f32.mrf.mxu0
    %v1144 = vadd.f32 %v947, %v1143
    %v1145 = vpop.f32.mrf.mxu0
    %v1146 = vadd.f32 %v949, %v1145
    %1147 = vmatmul.bf16.gmra.mxu0 %v320
    %v1148 = vpop.f32.mrf.mxu0
    %v1149 = vadd.f32 %v952, %v1148
    %v1150 = vpop.f32.mrf.mxu0
    %v1151 = vadd.f32 %v954, %v1150
    %1152 = vmatmul.bf16.gmra.mxu0 %v321
    %v1153 = vpop.f32.mrf.mxu0
    %v1154 = vadd.f32 %v957, %v1153
    %v1155 = vpop.f32.mrf.mxu0
    %v1156 = vadd.f32 %v959, %v1155
    %1157 = vmatmul.bf16.gmra.mxu0 %v322
    %v1158 = vpop.f32.mrf.mxu0
    %v1159 = vadd.f32 %v962, %v1158
    %v1160 = vpop.f32.mrf.mxu0
    %v1161 = vadd.f32 %v964, %v1160
    %1162 = vdwg.mxu0
    %s1163 = scalar_lea.vmem %s1, 256
    %v1164 = vld [vmem:[%s1163] sm:$0xf]
    %v1165 = vld [vmem:[%s1163 + $0x4] sm:$0xf]
    %v1166 = vld [vmem:[%s1163 + $0x8] sm:$0xf]
    %v1167 = vld [vmem:[%s1163 + $0xc] sm:$0xf]
    %v1168 = vld [vmem:[%s1163 + $0x10] sm:$0xf]
    %v1169 = vld [vmem:[%s1163 + $0x14] sm:$0xf]
    %v1170 = vld [vmem:[%s1163 + $0x18] sm:$0xf]
    %v1171 = vld [vmem:[%s1163 + $0x1c] sm:$0xf]
    %v1172 = vld [vmem:[%s1163 + $0x20] sm:$0xf]
    %v1173 = vld [vmem:[%s1163 + $0x24] sm:$0xf]
    %v1174 = vld [vmem:[%s1163 + $0x28] sm:$0xf]
    %v1175 = vld [vmem:[%s1163 + $0x2c] sm:$0xf]
    %v1176 = vld [vmem:[%s1163 + $0x30] sm:$0xf]
    %v1177 = vld [vmem:[%s1163 + $0x34] sm:$0xf]
    %v1178 = vld [vmem:[%s1163 + $0x38] sm:$0xf]
    %v1179 = vld [vmem:[%s1163 + $0x3c] sm:$0xf]
    %v1182 = vunpack.c.l.b16 %v128
    %v1183 = vunpack.c.l.b16 %v129
    %v1184 = vpack.c.b16 %v1183, %v1182
    %v1202 = vunpack.c.l.b16 %v1164
    %v1203 = vunpack.c.l.b16 %v1165
    %v1204 = vunpack.c.l.b16 %v1166
    %v1205 = vunpack.c.l.b16 %v1167
    %v1206 = vunpack.c.l.b16 %v1168
    %v1207 = vunpack.c.l.b16 %v1169
    %v1208 = vunpack.c.l.b16 %v1170
    %v1209 = vunpack.c.l.b16 %v1171
    %v1210 = vunpack.c.l.b16 %v1172
    %v1211 = vunpack.c.l.b16 %v1173
    %v1212 = vunpack.c.l.b16 %v1174
    %v1213 = vunpack.c.l.b16 %v1175
    %v1214 = vunpack.c.l.b16 %v1176
    %v1215 = vunpack.c.l.b16 %v1177
    %v1216 = vunpack.c.l.b16 %v1178
    %v1217 = vunpack.c.l.b16 %v1179
    %v1218 = vpack.c.b16 %v1203, %v1202
    %v1219 = vpack.c.b16 %v1205, %v1204
    %v1220 = vpack.c.b16 %v1207, %v1206
    %v1221 = vpack.c.b16 %v1209, %v1208
    %v1222 = vpack.c.b16 %v1211, %v1210
    %v1223 = vpack.c.b16 %v1213, %v1212
    %v1224 = vpack.c.b16 %v1215, %v1214
    %v1225 = vpack.c.b16 %v1217, %v1216
    %1234 = vmatpush.bf16.msra.mxu0 %v1225
    %1235 = vmatpush.bf16.msra.mxu0 %v1224
    %1236 = vmatpush.bf16.msra.mxu0 %v1223
    %1237 = vmatpush.bf16.msra.mxu0 %v1222
    %1238 = vmatpush.bf16.msra.mxu0 %v1221
    %1239 = vmatpush.bf16.msra.mxu0 %v1220
    %1240 = vmatpush.bf16.msra.mxu0 %v1219
    %1241 = vmatpush.bf16.msra.mxu0 %v1218
    %1242 = vmatmul.bf16.gmra.mxu0 %v297
    %v1243 = vpop.f32.mrf.mxu0
    %v1244 = vadd.f32 0.0, %v1243
    %v1245 = vpop.f32.mrf.mxu0
    %v1246 = vadd.f32 0.0, %v1245
    %1247 = vmatmul.bf16.gmra.mxu0 %v298
    %v1248 = vpop.f32.mrf.mxu0
    %v1249 = vadd.f32 0.0, %v1248
    %v1250 = vpop.f32.mrf.mxu0
    %v1251 = vadd.f32 0.0, %v1250
    %1252 = vmatmul.bf16.gmra.mxu0 %v299
    %v1253 = vpop.f32.mrf.mxu0
    %v1254 = vadd.f32 0.0, %v1253
    %v1255 = vpop.f32.mrf.mxu0
    %v1256 = vadd.f32 0.0, %v1255
    %1257 = vmatmul.bf16.gmra.mxu0 %v300
    %v1258 = vpop.f32.mrf.mxu0
    %v1259 = vadd.f32 0.0, %v1258
    %v1260 = vpop.f32.mrf.mxu0
    %v1261 = vadd.f32 0.0, %v1260
    %1262 = vmatmul.bf16.gmra.mxu0 %v301
    %v1263 = vpop.f32.mrf.mxu0
    %v1264 = vadd.f32 0.0, %v1263
    %v1265 = vpop.f32.mrf.mxu0
    %v1266 = vadd.f32 0.0, %v1265
    %1267 = vmatmul.bf16.gmra.mxu0 %v302
    %v1268 = vpop.f32.mrf.mxu0
    %v1269 = vadd.f32 0.0, %v1268
    %v1270 = vpop.f32.mrf.mxu0
    %v1271 = vadd.f32 0.0, %v1270
    %1272 = vmatmul.bf16.gmra.mxu0 %v303
    %v1273 = vpop.f32.mrf.mxu0
    %v1274 = vadd.f32 0.0, %v1273
    %v1275 = vpop.f32.mrf.mxu0
    %v1276 = vadd.f32 0.0, %v1275
    %1277 = vmatmul.bf16.gmra.mxu0 %v304
    %v1278 = vpop.f32.mrf.mxu0
    %v1279 = vadd.f32 0.0, %v1278
    %v1280 = vpop.f32.mrf.mxu0
    %v1281 = vadd.f32 0.0, %v1280
    %1282 = vmatmul.bf16.gmra.mxu0 %v305
    %v1283 = vpop.f32.mrf.mxu0
    %v1284 = vadd.f32 0.0, %v1283
    %v1285 = vpop.f32.mrf.mxu0
    %v1286 = vadd.f32 0.0, %v1285
    %1287 = vmatmul.bf16.gmra.mxu0 %v306
    %v1288 = vpop.f32.mrf.mxu0
    %v1289 = vadd.f32 0.0, %v1288
    %v1290 = vpop.f32.mrf.mxu0
    %v1291 = vadd.f32 0.0, %v1290
    %1292 = vmatmul.bf16.gmra.mxu0 %v307
    %v1293 = vpop.f32.mrf.mxu0
    %v1294 = vadd.f32 0.0, %v1293
    %v1295 = vpop.f32.mrf.mxu0
    %v1296 = vadd.f32 0.0, %v1295
    %1297 = vmatmul.bf16.gmra.mxu0 %v308
    %v1298 = vpop.f32.mrf.mxu0
    %v1299 = vadd.f32 0.0, %v1298
    %v1300 = vpop.f32.mrf.mxu0
    %v1301 = vadd.f32 0.0, %v1300
    %1302 = vmatmul.bf16.gmra.mxu0 %v309
    %v1303 = vpop.f32.mrf.mxu0
    %v1304 = vadd.f32 0.0, %v1303
    %v1305 = vpop.f32.mrf.mxu0
    %v1306 = vadd.f32 0.0, %v1305
    %1307 = vmatmul.bf16.gmra.mxu0 %v310
    %v1308 = vpop.f32.mrf.mxu0
    %v1309 = vadd.f32 0.0, %v1308
    %v1310 = vpop.f32.mrf.mxu0
    %v1311 = vadd.f32 0.0, %v1310
    %1312 = vmatmul.bf16.gmra.mxu0 %v311
    %v1313 = vpop.f32.mrf.mxu0
    %v1314 = vadd.f32 0.0, %v1313
    %v1315 = vpop.f32.mrf.mxu0
    %v1316 = vadd.f32 0.0, %v1315
    %1317 = vmatmul.bf16.gmra.mxu0 %v312
    %v1318 = vpop.f32.mrf.mxu0
    %v1319 = vadd.f32 0.0, %v1318
    %v1320 = vpop.f32.mrf.mxu0
    %v1321 = vadd.f32 0.0, %v1320
    %1322 = vmatmul.bf16.gmra.mxu0 %v313
    %v1323 = vpop.f32.mrf.mxu0
    %v1324 = vadd.f32 0.0, %v1323
    %v1325 = vpop.f32.mrf.mxu0
    %v1326 = vadd.f32 0.0, %v1325
    %1327 = vmatmul.bf16.gmra.mxu0 %v314
    %v1328 = vpop.f32.mrf.mxu0
    %v1329 = vadd.f32 0.0, %v1328
    %v1330 = vpop.f32.mrf.mxu0
    %v1331 = vadd.f32 0.0, %v1330
    %1332 = vmatmul.bf16.gmra.mxu0 %v315
    %v1333 = vpop.f32.mrf.mxu0
    %v1334 = vadd.f32 0.0, %v1333
    %v1335 = vpop.f32.mrf.mxu0
    %v1336 = vadd.f32 0.0, %v1335
    %1337 = vmatmul.bf16.gmra.mxu0 %v316
    %v1338 = vpop.f32.mrf.mxu0
    %v1339 = vadd.f32 0.0, %v1338
    %v1340 = vpop.f32.mrf.mxu0
    %v1341 = vadd.f32 0.0, %v1340
    %1342 = vmatmul.bf16.gmra.mxu0 %v317
    %v1343 = vpop.f32.mrf.mxu0
    %v1344 = vadd.f32 0.0, %v1343
    %v1345 = vpop.f32.mrf.mxu0
    %v1346 = vadd.f32 0.0, %v1345
    %1347 = vmatmul.bf16.gmra.mxu0 %v318
    %v1348 = vpop.f32.mrf.mxu0
    %v1349 = vadd.f32 0.0, %v1348
    %v1350 = vpop.f32.mrf.mxu0
    %v1351 = vadd.f32 0.0, %v1350
    %1352 = vmatmul.bf16.gmra.mxu0 %v319
    %v1353 = vpop.f32.mrf.mxu0
    %v1354 = vadd.f32 0.0, %v1353
    %v1355 = vpop.f32.mrf.mxu0
    %v1356 = vadd.f32 0.0, %v1355
    %1357 = vmatmul.bf16.gmra.mxu0 %v320
    %v1358 = vpop.f32.mrf.mxu0
    %v1359 = vadd.f32 0.0, %v1358
    %v1360 = vpop.f32.mrf.mxu0
    %v1361 = vadd.f32 0.0, %v1360
    %1362 = vmatmul.bf16.gmra.mxu0 %v321
    %v1363 = vpop.f32.mrf.mxu0
    %v1364 = vadd.f32 0.0, %v1363
    %v1365 = vpop.f32.mrf.mxu0
    %v1366 = vadd.f32 0.0, %v1365
    %1367 = vmatmul.bf16.gmra.mxu0 %v322
    %v1368 = vpop.f32.mrf.mxu0
    %v1369 = vadd.f32 0.0, %v1368
    %v1370 = vpop.f32.mrf.mxu0
    %v1371 = vadd.f32 0.0, %v1370
    %1372 = vmatmul.bf16.gmra.mxu0 %v323
    %v1373 = vpop.f32.mrf.mxu0
    %v1374 = vadd.f32 0.0, %v1373
    %v1375 = vpop.f32.mrf.mxu0
    %v1376 = vadd.f32 0.0, %v1375
    %1377 = vmatmul.bf16.gmra.mxu0 %v1184
    %v1378 = vpop.f32.mrf.mxu0
    %v1379 = vadd.f32 0.0, %v1378
    %v1380 = vpop.f32.mrf.mxu0
    %v1381 = vadd.f32 0.0, %v1380
    %1382 = vdwg.mxu0
    %v1383 = vadd.f32 %v613, %v1244
    %v1384 = vadd.f32 %v615, %v1246
    %v1385 = vadd.f32 %v618, %v1249
    %v1386 = vadd.f32 %v620, %v1251
    %v1387 = vadd.f32 %v623, %v1254
    %v1388 = vadd.f32 %v625, %v1256
    %v1389 = vadd.f32 %v628, %v1259
    %v1390 = vadd.f32 %v630, %v1261
    %v1391 = vadd.f32 %v633, %v1264
    %v1392 = vadd.f32 %v635, %v1266
    %v1393 = vadd.f32 %v638, %v1269
    %v1394 = vadd.f32 %v640, %v1271
    %v1395 = vadd.f32 %v643, %v1274
    %v1396 = vadd.f32 %v645, %v1276
    %v1397 = vadd.f32 %v648, %v1279
    %v1398 = vadd.f32 %v650, %v1281
    %v1399 = vadd.f32 %v653, %v1284
    %v1400 = vadd.f32 %v655, %v1286
    %v1401 = vadd.f32 %v658, %v1289
    %v1402 = vadd.f32 %v660, %v1291
    %v1403 = vadd.f32 %v663, %v1294
    %v1404 = vadd.f32 %v665, %v1296
    %v1405 = vadd.f32 %v668, %v1299
    %v1406 = vadd.f32 %v670, %v1301
    %v1407 = vadd.f32 %v673, %v1304
    %v1408 = vadd.f32 %v675, %v1306
    %v1409 = vadd.f32 %v678, %v1309
    %v1410 = vadd.f32 %v680, %v1311
    %v1411 = vadd.f32 %v683, %v1314
    %v1412 = vadd.f32 %v685, %v1316
    %v1413 = vadd.f32 %v688, %v1319
    %v1414 = vadd.f32 %v690, %v1321
    %v1415 = vadd.f32 %v693, %v1324
    %v1416 = vadd.f32 %v695, %v1326
    %v1417 = vadd.f32 %v698, %v1329
    %v1418 = vadd.f32 %v700, %v1331
    %v1419 = vadd.f32 %v703, %v1334
    %v1420 = vadd.f32 %v705, %v1336
    %v1421 = vadd.f32 %v708, %v1339
    %v1422 = vadd.f32 %v710, %v1341
    %v1423 = vadd.f32 %v713, %v1344
    %v1424 = vadd.f32 %v715, %v1346
    %v1425 = vadd.f32 %v718, %v1349
    %v1426 = vadd.f32 %v720, %v1351
    %v1427 = vadd.f32 %v723, %v1354
    %v1428 = vadd.f32 %v725, %v1356
    %v1429 = vadd.f32 %v728, %v1359
    %v1430 = vadd.f32 %v730, %v1361
    %v1431 = vadd.f32 %v733, %v1364
    %v1432 = vadd.f32 %v735, %v1366
    %v1433 = vadd.f32 %v738, %v1369
    %v1434 = vadd.f32 %v740, %v1371
    %v1435 = vadd.f32 %v743, %v1374
    %v1436 = vadd.f32 %v745, %v1376
    %v1437 = vadd.f32 %v748, %v1379
    %v1438 = vadd.f32 %v750, %v1381
    %s1439 = scalar_lea.vmem %s1, 320
    %v1440 = vld [vmem:[%s1439] sm:$0xf]
    %v1441 = vld [vmem:[%s1439 + $0x4] sm:$0xf]
    %v1442 = vld [vmem:[%s1439 + $0x8] sm:$0xf]
    %v1443 = vld [vmem:[%s1439 + $0xc] sm:$0xf]
    %v1444 = vld [vmem:[%s1439 + $0x10] sm:$0xf]
    %v1445 = vld [vmem:[%s1439 + $0x14] sm:$0xf]
    %v1446 = vld [vmem:[%s1439 + $0x18] sm:$0xf]
    %v1447 = vld [vmem:[%s1439 + $0x1c] sm:$0xf]
    %v1448 = vld [vmem:[%s1439 + $0x20] sm:$0xf]
    %v1449 = vld [vmem:[%s1439 + $0x24] sm:$0xf]
    %v1450 = vld [vmem:[%s1439 + $0x28] sm:$0xf]
    %v1451 = vld [vmem:[%s1439 + $0x2c] sm:$0xf]
    %v1452 = vld [vmem:[%s1439 + $0x30] sm:$0xf]
    %v1453 = vld [vmem:[%s1439 + $0x34] sm:$0xf]
    %v1454 = vld [vmem:[%s1439 + $0x38] sm:$0xf]
    %v1455 = vld [vmem:[%s1439 + $0x3c] sm:$0xf]
    %v1472 = vunpack.c.l.b16 %v1440
    %v1473 = vunpack.c.l.b16 %v1441
    %v1474 = vunpack.c.l.b16 %v1442
    %v1475 = vunpack.c.l.b16 %v1443
    %v1476 = vunpack.c.l.b16 %v1444
    %v1477 = vunpack.c.l.b16 %v1445
    %v1478 = vunpack.c.l.b16 %v1446
    %v1479 = vunpack.c.l.b16 %v1447
    %v1480 = vunpack.c.l.b16 %v1448
    %v1481 = vunpack.c.l.b16 %v1449
    %v1482 = vunpack.c.l.b16 %v1450
    %v1483 = vunpack.c.l.b16 %v1451
    %v1484 = vunpack.c.l.b16 %v1452
    %v1485 = vunpack.c.l.b16 %v1453
    %v1486 = vunpack.c.l.b16 %v1454
    %v1487 = vunpack.c.l.b16 %v1455
    %v1488 = vpack.c.b16 %v1473, %v1472
    %v1489 = vpack.c.b16 %v1475, %v1474
    %v1490 = vpack.c.b16 %v1477, %v1476
    %v1491 = vpack.c.b16 %v1479, %v1478
    %v1492 = vpack.c.b16 %v1481, %v1480
    %v1493 = vpack.c.b16 %v1483, %v1482
    %v1494 = vpack.c.b16 %v1485, %v1484
    %v1495 = vpack.c.b16 %v1487, %v1486
    %1504 = vmatpush.bf16.msra.mxu0 %v1495
    %1505 = vmatpush.bf16.msra.mxu0 %v1494
    %1506 = vmatpush.bf16.msra.mxu0 %v1493
    %1507 = vmatpush.bf16.msra.mxu0 %v1492
    %1508 = vmatpush.bf16.msra.mxu0 %v1491
    %1509 = vmatpush.bf16.msra.mxu0 %v1490
    %1510 = vmatpush.bf16.msra.mxu0 %v1489
    %1511 = vmatpush.bf16.msra.mxu0 %v1488
    %1512 = vmatmul.bf16.gmra.mxu0 %v297
    %v1513 = vpop.f32.mrf.mxu0
    %v1514 = vadd.f32 0.0, %v1513
    %v1515 = vpop.f32.mrf.mxu0
    %v1516 = vadd.f32 0.0, %v1515
    %1517 = vmatmul.bf16.gmra.mxu0 %v298
    %v1518 = vpop.f32.mrf.mxu0
    %v1519 = vadd.f32 0.0, %v1518
    %v1520 = vpop.f32.mrf.mxu0
    %v1521 = vadd.f32 0.0, %v1520
    %1522 = vmatmul.bf16.gmra.mxu0 %v299
    %v1523 = vpop.f32.mrf.mxu0
    %v1524 = vadd.f32 0.0, %v1523
    %v1525 = vpop.f32.mrf.mxu0
    %v1526 = vadd.f32 0.0, %v1525
    %1527 = vmatmul.bf16.gmra.mxu0 %v300
    %v1528 = vpop.f32.mrf.mxu0
    %v1529 = vadd.f32 0.0, %v1528
    %v1530 = vpop.f32.mrf.mxu0
    %v1531 = vadd.f32 0.0, %v1530
    %1532 = vmatmul.bf16.gmra.mxu0 %v301
    %v1533 = vpop.f32.mrf.mxu0
    %v1534 = vadd.f32 0.0, %v1533
    %v1535 = vpop.f32.mrf.mxu0
    %v1536 = vadd.f32 0.0, %v1535
    %1537 = vmatmul.bf16.gmra.mxu0 %v302
    %v1538 = vpop.f32.mrf.mxu0
    %v1539 = vadd.f32 0.0, %v1538
    %v1540 = vpop.f32.mrf.mxu0
    %v1541 = vadd.f32 0.0, %v1540
    %1542 = vmatmul.bf16.gmra.mxu0 %v303
    %v1543 = vpop.f32.mrf.mxu0
    %v1544 = vadd.f32 0.0, %v1543
    %v1545 = vpop.f32.mrf.mxu0
    %v1546 = vadd.f32 0.0, %v1545
    %1547 = vmatmul.bf16.gmra.mxu0 %v304
    %v1548 = vpop.f32.mrf.mxu0
    %v1549 = vadd.f32 0.0, %v1548
    %v1550 = vpop.f32.mrf.mxu0
    %v1551 = vadd.f32 0.0, %v1550
    %1552 = vmatmul.bf16.gmra.mxu0 %v305
    %v1553 = vpop.f32.mrf.mxu0
    %v1554 = vadd.f32 0.0, %v1553
    %v1555 = vpop.f32.mrf.mxu0
    %v1556 = vadd.f32 0.0, %v1555
    %1557 = vmatmul.bf16.gmra.mxu0 %v306
    %v1558 = vpop.f32.mrf.mxu0
    %v1559 = vadd.f32 0.0, %v1558
    %v1560 = vpop.f32.mrf.mxu0
    %v1561 = vadd.f32 0.0, %v1560
    %1562 = vmatmul.bf16.gmra.mxu0 %v307
    %v1563 = vpop.f32.mrf.mxu0
    %v1564 = vadd.f32 0.0, %v1563
    %v1565 = vpop.f32.mrf.mxu0
    %v1566 = vadd.f32 0.0, %v1565
    %1567 = vmatmul.bf16.gmra.mxu0 %v308
    %v1568 = vpop.f32.mrf.mxu0
    %v1569 = vadd.f32 0.0, %v1568
    %v1570 = vpop.f32.mrf.mxu0
    %v1571 = vadd.f32 0.0, %v1570
    %1572 = vmatmul.bf16.gmra.mxu0 %v309
    %v1573 = vpop.f32.mrf.mxu0
    %v1574 = vadd.f32 0.0, %v1573
    %v1575 = vpop.f32.mrf.mxu0
    %v1576 = vadd.f32 0.0, %v1575
    %1577 = vmatmul.bf16.gmra.mxu0 %v310
    %v1578 = vpop.f32.mrf.mxu0
    %v1579 = vadd.f32 0.0, %v1578
    %v1580 = vpop.f32.mrf.mxu0
    %v1581 = vadd.f32 0.0, %v1580
    %1582 = vmatmul.bf16.gmra.mxu0 %v311
    %v1583 = vpop.f32.mrf.mxu0
    %v1584 = vadd.f32 0.0, %v1583
    %v1585 = vpop.f32.mrf.mxu0
    %v1586 = vadd.f32 0.0, %v1585
    %1587 = vmatmul.bf16.gmra.mxu0 %v312
    %v1588 = vpop.f32.mrf.mxu0
    %v1589 = vadd.f32 0.0, %v1588
    %v1590 = vpop.f32.mrf.mxu0
    %v1591 = vadd.f32 0.0, %v1590
    %1592 = vmatmul.bf16.gmra.mxu0 %v313
    %v1593 = vpop.f32.mrf.mxu0
    %v1594 = vadd.f32 0.0, %v1593
    %v1595 = vpop.f32.mrf.mxu0
    %v1596 = vadd.f32 0.0, %v1595
    %1597 = vmatmul.bf16.gmra.mxu0 %v314
    %v1598 = vpop.f32.mrf.mxu0
    %v1599 = vadd.f32 0.0, %v1598
    %v1600 = vpop.f32.mrf.mxu0
    %v1601 = vadd.f32 0.0, %v1600
    %1602 = vmatmul.bf16.gmra.mxu0 %v315
    %v1603 = vpop.f32.mrf.mxu0
    %v1604 = vadd.f32 0.0, %v1603
    %v1605 = vpop.f32.mrf.mxu0
    %v1606 = vadd.f32 0.0, %v1605
    %1607 = vmatmul.bf16.gmra.mxu0 %v316
    %v1608 = vpop.f32.mrf.mxu0
    %v1609 = vadd.f32 0.0, %v1608
    %v1610 = vpop.f32.mrf.mxu0
    %v1611 = vadd.f32 0.0, %v1610
    %1612 = vmatmul.bf16.gmra.mxu0 %v317
    %v1613 = vpop.f32.mrf.mxu0
    %v1614 = vadd.f32 0.0, %v1613
    %v1615 = vpop.f32.mrf.mxu0
    %v1616 = vadd.f32 0.0, %v1615
    %1617 = vmatmul.bf16.gmra.mxu0 %v318
    %v1618 = vpop.f32.mrf.mxu0
    %v1619 = vadd.f32 0.0, %v1618
    %v1620 = vpop.f32.mrf.mxu0
    %v1621 = vadd.f32 0.0, %v1620
    %1622 = vmatmul.bf16.gmra.mxu0 %v319
    %v1623 = vpop.f32.mrf.mxu0
    %v1624 = vadd.f32 0.0, %v1623
    %v1625 = vpop.f32.mrf.mxu0
    %v1626 = vadd.f32 0.0, %v1625
    %1627 = vmatmul.bf16.gmra.mxu0 %v320
    %v1628 = vpop.f32.mrf.mxu0
    %v1629 = vadd.f32 0.0, %v1628
    %v1630 = vpop.f32.mrf.mxu0
    %v1631 = vadd.f32 0.0, %v1630
    %1632 = vmatmul.bf16.gmra.mxu0 %v321
    %v1633 = vpop.f32.mrf.mxu0
    %v1634 = vadd.f32 0.0, %v1633
    %v1635 = vpop.f32.mrf.mxu0
    %v1636 = vadd.f32 0.0, %v1635
    %1637 = vmatmul.bf16.gmra.mxu0 %v322
    %v1638 = vpop.f32.mrf.mxu0
    %v1639 = vadd.f32 0.0, %v1638
    %v1640 = vpop.f32.mrf.mxu0
    %v1641 = vadd.f32 0.0, %v1640
    %1642 = vmatmul.bf16.gmra.mxu0 %v323
    %v1643 = vpop.f32.mrf.mxu0
    %v1644 = vadd.f32 0.0, %v1643
    %v1645 = vpop.f32.mrf.mxu0
    %v1646 = vadd.f32 0.0, %v1645
    %1647 = vmatmul.bf16.gmra.mxu0 %v1184
    %v1648 = vpop.f32.mrf.mxu0
    %v1649 = vadd.f32 0.0, %v1648
    %v1650 = vpop.f32.mrf.mxu0
    %v1651 = vadd.f32 0.0, %v1650
    %1652 = vdwg.mxu0
    %v1653 = vadd.f32 %v1024, %v1514
    %v1654 = vadd.f32 %v1026, %v1516
    %v1655 = vadd.f32 %v1029, %v1519
    %v1656 = vadd.f32 %v1031, %v1521
    %v1657 = vadd.f32 %v1034, %v1524
    %v1658 = vadd.f32 %v1036, %v1526
    %v1659 = vadd.f32 %v1039, %v1529
    %v1660 = vadd.f32 %v1041, %v1531
    %v1661 = vadd.f32 %v1044, %v1534
    %v1662 = vadd.f32 %v1046, %v1536
    %v1663 = vadd.f32 %v1049, %v1539
    %v1664 = vadd.f32 %v1051, %v1541
    %v1665 = vadd.f32 %v1054, %v1544
    %v1666 = vadd.f32 %v1056, %v1546
    %v1667 = vadd.f32 %v1059, %v1549
    %v1668 = vadd.f32 %v1061, %v1551
    %v1669 = vadd.f32 %v1064, %v1554
    %v1670 = vadd.f32 %v1066, %v1556
    %v1671 = vadd.f32 %v1069, %v1559
    %v1672 = vadd.f32 %v1071, %v1561
    %v1673 = vadd.f32 %v1074, %v1564
    %v1674 = vadd.f32 %v1076, %v1566
    %v1675 = vadd.f32 %v1079, %v1569
    %v1676 = vadd.f32 %v1081, %v1571
    %v1677 = vadd.f32 %v1084, %v1574
    %v1678 = vadd.f32 %v1086, %v1576
    %v1679 = vadd.f32 %v1089, %v1579
    %v1680 = vadd.f32 %v1091, %v1581
    %v1681 = vadd.f32 %v1094, %v1584
    %v1682 = vadd.f32 %v1096, %v1586
    %v1683 = vadd.f32 %v1099, %v1589
    %v1684 = vadd.f32 %v1101, %v1591
    %v1685 = vadd.f32 %v1104, %v1594
    %v1686 = vadd.f32 %v1106, %v1596
    %v1687 = vadd.f32 %v1109, %v1599
    %v1688 = vadd.f32 %v1111, %v1601
    %v1689 = vadd.f32 %v1114, %v1604
    %v1690 = vadd.f32 %v1116, %v1606
    %v1691 = vadd.f32 %v1119, %v1609
    %v1692 = vadd.f32 %v1121, %v1611
    %v1693 = vadd.f32 %v1124, %v1614
    %v1694 = vadd.f32 %v1126, %v1616
    %v1695 = vadd.f32 %v1129, %v1619
    %v1696 = vadd.f32 %v1131, %v1621
    %v1697 = vadd.f32 %v1134, %v1624
    %v1698 = vadd.f32 %v1136, %v1626
    %v1699 = vadd.f32 %v1139, %v1629
    %v1700 = vadd.f32 %v1141, %v1631
    %v1701 = vadd.f32 %v1144, %v1634
    %v1702 = vadd.f32 %v1146, %v1636
    %v1703 = vadd.f32 %v1149, %v1639
    %v1704 = vadd.f32 %v1151, %v1641
    %v1705 = vadd.f32 %v1154, %v1644
    %v1706 = vadd.f32 %v1156, %v1646
    %v1707 = vadd.f32 %v1159, %v1649
    %v1708 = vadd.f32 %v1161, %v1651
    %s1709 = scalar_lea.vmem %s1, 384
    %v1710 = vld [vmem:[%s1709] sm:$0xf]
    %v1711 = vld [vmem:[%s1709 + $0x4] sm:$0xf]
    %v1712 = vld [vmem:[%s1709 + $0x8] sm:$0xf]
    %v1713 = vld [vmem:[%s1709 + $0xc] sm:$0xf]
    %v1714 = vld [vmem:[%s1709 + $0x10] sm:$0xf]
    %v1715 = vld [vmem:[%s1709 + $0x14] sm:$0xf]
    %v1716 = vld [vmem:[%s1709 + $0x18] sm:$0xf]
    %v1717 = vld [vmem:[%s1709 + $0x1c] sm:$0xf]
    %v1718 = vld [vmem:[%s1709 + $0x20] sm:$0xf]
    %v1719 = vld [vmem:[%s1709 + $0x24] sm:$0xf]
    %v1720 = vld [vmem:[%s1709 + $0x28] sm:$0xf]
    %v1721 = vld [vmem:[%s1709 + $0x2c] sm:$0xf]
    %v1722 = vld [vmem:[%s1709 + $0x30] sm:$0xf]
    %v1723 = vld [vmem:[%s1709 + $0x34] sm:$0xf]
    %v1724 = vld [vmem:[%s1709 + $0x38] sm:$0xf]
    %v1725 = vld [vmem:[%s1709 + $0x3c] sm:$0xf]
    %v1728 = vunpack.c.l.b16 %v130
    %v1729 = vunpack.c.l.b16 %v131
    %v1730 = vpack.c.b16 %v1729, %v1728
    %v1748 = vunpack.c.l.b16 %v1710
    %v1749 = vunpack.c.l.b16 %v1711
    %v1750 = vunpack.c.l.b16 %v1712
    %v1751 = vunpack.c.l.b16 %v1713
    %v1752 = vunpack.c.l.b16 %v1714
    %v1753 = vunpack.c.l.b16 %v1715
    %v1754 = vunpack.c.l.b16 %v1716
    %v1755 = vunpack.c.l.b16 %v1717
    %v1756 = vunpack.c.l.b16 %v1718
    %v1757 = vunpack.c.l.b16 %v1719
    %v1758 = vunpack.c.l.b16 %v1720
    %v1759 = vunpack.c.l.b16 %v1721
    %v1760 = vunpack.c.l.b16 %v1722
    %v1761 = vunpack.c.l.b16 %v1723
    %v1762 = vunpack.c.l.b16 %v1724
    %v1763 = vunpack.c.l.b16 %v1725
    %v1764 = vpack.c.b16 %v1749, %v1748
    %v1765 = vpack.c.b16 %v1751, %v1750
    %v1766 = vpack.c.b16 %v1753, %v1752
    %v1767 = vpack.c.b16 %v1755, %v1754
    %v1768 = vpack.c.b16 %v1757, %v1756
    %v1769 = vpack.c.b16 %v1759, %v1758
    %v1770 = vpack.c.b16 %v1761, %v1760
    %v1771 = vpack.c.b16 %v1763, %v1762
    %1780 = vmatpush.bf16.msra.mxu0 %v1771
    %1781 = vmatpush.bf16.msra.mxu0 %v1770
    %1782 = vmatpush.bf16.msra.mxu0 %v1769
    %1783 = vmatpush.bf16.msra.mxu0 %v1768
    %1784 = vmatpush.bf16.msra.mxu0 %v1767
    %1785 = vmatpush.bf16.msra.mxu0 %v1766
    %1786 = vmatpush.bf16.msra.mxu0 %v1765
    %1787 = vmatpush.bf16.msra.mxu0 %v1764
    %1788 = vmatmul.bf16.gmra.mxu0 %v298
    %v1789 = vpop.f32.mrf.mxu0
    %v1790 = vadd.f32 0.0, %v1789
    %v1791 = vpop.f32.mrf.mxu0
    %v1792 = vadd.f32 0.0, %v1791
    %1793 = vmatmul.bf16.gmra.mxu0 %v299
    %v1794 = vpop.f32.mrf.mxu0
    %v1795 = vadd.f32 0.0, %v1794
    %v1796 = vpop.f32.mrf.mxu0
    %v1797 = vadd.f32 0.0, %v1796
    %1798 = vmatmul.bf16.gmra.mxu0 %v300
    %v1799 = vpop.f32.mrf.mxu0
    %v1800 = vadd.f32 0.0, %v1799
    %v1801 = vpop.f32.mrf.mxu0
    %v1802 = vadd.f32 0.0, %v1801
    %1803 = vmatmul.bf16.gmra.mxu0 %v301
    %v1804 = vpop.f32.mrf.mxu0
    %v1805 = vadd.f32 0.0, %v1804
    %v1806 = vpop.f32.mrf.mxu0
    %v1807 = vadd.f32 0.0, %v1806
    %1808 = vmatmul.bf16.gmra.mxu0 %v302
    %v1809 = vpop.f32.mrf.mxu0
    %v1810 = vadd.f32 0.0, %v1809
    %v1811 = vpop.f32.mrf.mxu0
    %v1812 = vadd.f32 0.0, %v1811
    %1813 = vmatmul.bf16.gmra.mxu0 %v303
    %v1814 = vpop.f32.mrf.mxu0
    %v1815 = vadd.f32 0.0, %v1814
    %v1816 = vpop.f32.mrf.mxu0
    %v1817 = vadd.f32 0.0, %v1816
    %1818 = vmatmul.bf16.gmra.mxu0 %v304
    %v1819 = vpop.f32.mrf.mxu0
    %v1820 = vadd.f32 0.0, %v1819
    %v1821 = vpop.f32.mrf.mxu0
    %v1822 = vadd.f32 0.0, %v1821
    %1823 = vmatmul.bf16.gmra.mxu0 %v305
    %v1824 = vpop.f32.mrf.mxu0
    %v1825 = vadd.f32 0.0, %v1824
    %v1826 = vpop.f32.mrf.mxu0
    %v1827 = vadd.f32 0.0, %v1826
    %1828 = vmatmul.bf16.gmra.mxu0 %v306
    %v1829 = vpop.f32.mrf.mxu0
    %v1830 = vadd.f32 0.0, %v1829
    %v1831 = vpop.f32.mrf.mxu0
    %v1832 = vadd.f32 0.0, %v1831
    %1833 = vmatmul.bf16.gmra.mxu0 %v307
    %v1834 = vpop.f32.mrf.mxu0
    %v1835 = vadd.f32 0.0, %v1834
    %v1836 = vpop.f32.mrf.mxu0
    %v1837 = vadd.f32 0.0, %v1836
    %1838 = vmatmul.bf16.gmra.mxu0 %v308
    %v1839 = vpop.f32.mrf.mxu0
    %v1840 = vadd.f32 0.0, %v1839
    %v1841 = vpop.f32.mrf.mxu0
    %v1842 = vadd.f32 0.0, %v1841
    %1843 = vmatmul.bf16.gmra.mxu0 %v309
    %v1844 = vpop.f32.mrf.mxu0
    %v1845 = vadd.f32 0.0, %v1844
    %v1846 = vpop.f32.mrf.mxu0
    %v1847 = vadd.f32 0.0, %v1846
    %1848 = vmatmul.bf16.gmra.mxu0 %v310
    %v1849 = vpop.f32.mrf.mxu0
    %v1850 = vadd.f32 0.0, %v1849
    %v1851 = vpop.f32.mrf.mxu0
    %v1852 = vadd.f32 0.0, %v1851
    %1853 = vmatmul.bf16.gmra.mxu0 %v311
    %v1854 = vpop.f32.mrf.mxu0
    %v1855 = vadd.f32 0.0, %v1854
    %v1856 = vpop.f32.mrf.mxu0
    %v1857 = vadd.f32 0.0, %v1856
    %1858 = vmatmul.bf16.gmra.mxu0 %v312
    %v1859 = vpop.f32.mrf.mxu0
    %v1860 = vadd.f32 0.0, %v1859
    %v1861 = vpop.f32.mrf.mxu0
    %v1862 = vadd.f32 0.0, %v1861
    %1863 = vmatmul.bf16.gmra.mxu0 %v313
    %v1864 = vpop.f32.mrf.mxu0
    %v1865 = vadd.f32 0.0, %v1864
    %v1866 = vpop.f32.mrf.mxu0
    %v1867 = vadd.f32 0.0, %v1866
    %1868 = vmatmul.bf16.gmra.mxu0 %v314
    %v1869 = vpop.f32.mrf.mxu0
    %v1870 = vadd.f32 0.0, %v1869
    %v1871 = vpop.f32.mrf.mxu0
    %v1872 = vadd.f32 0.0, %v1871
    %1873 = vmatmul.bf16.gmra.mxu0 %v315
    %v1874 = vpop.f32.mrf.mxu0
    %v1875 = vadd.f32 0.0, %v1874
    %v1876 = vpop.f32.mrf.mxu0
    %v1877 = vadd.f32 0.0, %v1876
    %1878 = vmatmul.bf16.gmra.mxu0 %v316
    %v1879 = vpop.f32.mrf.mxu0
    %v1880 = vadd.f32 0.0, %v1879
    %v1881 = vpop.f32.mrf.mxu0
    %v1882 = vadd.f32 0.0, %v1881
    %1883 = vmatmul.bf16.gmra.mxu0 %v317
    %v1884 = vpop.f32.mrf.mxu0
    %v1885 = vadd.f32 0.0, %v1884
    %v1886 = vpop.f32.mrf.mxu0
    %v1887 = vadd.f32 0.0, %v1886
    %1888 = vmatmul.bf16.gmra.mxu0 %v318
    %v1889 = vpop.f32.mrf.mxu0
    %v1890 = vadd.f32 0.0, %v1889
    %v1891 = vpop.f32.mrf.mxu0
    %v1892 = vadd.f32 0.0, %v1891
    %1893 = vmatmul.bf16.gmra.mxu0 %v319
    %v1894 = vpop.f32.mrf.mxu0
    %v1895 = vadd.f32 0.0, %v1894
    %v1896 = vpop.f32.mrf.mxu0
    %v1897 = vadd.f32 0.0, %v1896
    %1898 = vmatmul.bf16.gmra.mxu0 %v320
    %v1899 = vpop.f32.mrf.mxu0
    %v1900 = vadd.f32 0.0, %v1899
    %v1901 = vpop.f32.mrf.mxu0
    %v1902 = vadd.f32 0.0, %v1901
    %1903 = vmatmul.bf16.gmra.mxu0 %v321
    %v1904 = vpop.f32.mrf.mxu0
    %v1905 = vadd.f32 0.0, %v1904
    %v1906 = vpop.f32.mrf.mxu0
    %v1907 = vadd.f32 0.0, %v1906
    %1908 = vmatmul.bf16.gmra.mxu0 %v322
    %v1909 = vpop.f32.mrf.mxu0
    %v1910 = vadd.f32 0.0, %v1909
    %v1911 = vpop.f32.mrf.mxu0
    %v1912 = vadd.f32 0.0, %v1911
    %1913 = vmatmul.bf16.gmra.mxu0 %v323
    %v1914 = vpop.f32.mrf.mxu0
    %v1915 = vadd.f32 0.0, %v1914
    %v1916 = vpop.f32.mrf.mxu0
    %v1917 = vadd.f32 0.0, %v1916
    %1918 = vmatmul.bf16.gmra.mxu0 %v1184
    %v1919 = vpop.f32.mrf.mxu0
    %v1920 = vadd.f32 0.0, %v1919
    %v1921 = vpop.f32.mrf.mxu0
    %v1922 = vadd.f32 0.0, %v1921
    %1923 = vmatmul.bf16.gmra.mxu0 %v1730
    %v1924 = vpop.f32.mrf.mxu0
    %v1925 = vadd.f32 0.0, %v1924
    %v1926 = vpop.f32.mrf.mxu0
    %v1927 = vadd.f32 0.0, %v1926
    %1928 = vdwg.mxu0
    %v1929 = vadd.f32 %v1383, %v1790
    %v1930 = vadd.f32 %v1384, %v1792
    %v1931 = vadd.f32 %v1385, %v1795
    %v1932 = vadd.f32 %v1386, %v1797
    %v1933 = vadd.f32 %v1387, %v1800
    %v1934 = vadd.f32 %v1388, %v1802
    %v1935 = vadd.f32 %v1389, %v1805
    %v1936 = vadd.f32 %v1390, %v1807
    %v1937 = vadd.f32 %v1391, %v1810
    %v1938 = vadd.f32 %v1392, %v1812
    %v1939 = vadd.f32 %v1393, %v1815
    %v1940 = vadd.f32 %v1394, %v1817
    %v1941 = vadd.f32 %v1395, %v1820
    %v1942 = vadd.f32 %v1396, %v1822
    %v1943 = vadd.f32 %v1397, %v1825
    %v1944 = vadd.f32 %v1398, %v1827
    %v1945 = vadd.f32 %v1399, %v1830
    %v1946 = vadd.f32 %v1400, %v1832
    %v1947 = vadd.f32 %v1401, %v1835
    %v1948 = vadd.f32 %v1402, %v1837
    %v1949 = vadd.f32 %v1403, %v1840
    %v1950 = vadd.f32 %v1404, %v1842
    %v1951 = vadd.f32 %v1405, %v1845
    %v1952 = vadd.f32 %v1406, %v1847
    %v1953 = vadd.f32 %v1407, %v1850
    %v1954 = vadd.f32 %v1408, %v1852
    %v1955 = vadd.f32 %v1409, %v1855
    %v1956 = vadd.f32 %v1410, %v1857
    %v1957 = vadd.f32 %v1411, %v1860
    %v1958 = vadd.f32 %v1412, %v1862
    %v1959 = vadd.f32 %v1413, %v1865
    %v1960 = vadd.f32 %v1414, %v1867
    %v1961 = vadd.f32 %v1415, %v1870
    %v1962 = vadd.f32 %v1416, %v1872
    %v1963 = vadd.f32 %v1417, %v1875
    %v1964 = vadd.f32 %v1418, %v1877
    %v1965 = vadd.f32 %v1419, %v1880
    %v1966 = vadd.f32 %v1420, %v1882
    %v1967 = vadd.f32 %v1421, %v1885
    %v1968 = vadd.f32 %v1422, %v1887
    %v1969 = vadd.f32 %v1423, %v1890
    %v1970 = vadd.f32 %v1424, %v1892
    %v1971 = vadd.f32 %v1425, %v1895
    %v1972 = vadd.f32 %v1426, %v1897
    %v1973 = vadd.f32 %v1427, %v1900
    %v1974 = vadd.f32 %v1428, %v1902
    %v1975 = vadd.f32 %v1429, %v1905
    %v1976 = vadd.f32 %v1430, %v1907
    %v1977 = vadd.f32 %v1431, %v1910
    %v1978 = vadd.f32 %v1432, %v1912
    %v1979 = vadd.f32 %v1433, %v1915
    %v1980 = vadd.f32 %v1434, %v1917
    %v1981 = vadd.f32 %v1435, %v1920
    %v1982 = vadd.f32 %v1436, %v1922
    %v1983 = vadd.f32 %v1437, %v1925
    %v1984 = vadd.f32 %v1438, %v1927
    %s1985 = scalar_lea.vmem %s1, 448
    %v1986 = vld [vmem:[%s1985] sm:$0xf]
    %v1987 = vld [vmem:[%s1985 + $0x4] sm:$0xf]
    %v1988 = vld [vmem:[%s1985 + $0x8] sm:$0xf]
    %v1989 = vld [vmem:[%s1985 + $0xc] sm:$0xf]
    %v1990 = vld [vmem:[%s1985 + $0x10] sm:$0xf]
    %v1991 = vld [vmem:[%s1985 + $0x14] sm:$0xf]
    %v1992 = vld [vmem:[%s1985 + $0x18] sm:$0xf]
    %v1993 = vld [vmem:[%s1985 + $0x1c] sm:$0xf]
    %v1994 = vld [vmem:[%s1985 + $0x20] sm:$0xf]
    %v1995 = vld [vmem:[%s1985 + $0x24] sm:$0xf]
    %v1996 = vld [vmem:[%s1985 + $0x28] sm:$0xf]
    %v1997 = vld [vmem:[%s1985 + $0x2c] sm:$0xf]
    %v1998 = vld [vmem:[%s1985 + $0x30] sm:$0xf]
    %v1999 = vld [vmem:[%s1985 + $0x34] sm:$0xf]
    %v2000 = vld [vmem:[%s1985 + $0x38] sm:$0xf]
    %v2001 = vld [vmem:[%s1985 + $0x3c] sm:$0xf]
    %v2018 = vunpack.c.l.b16 %v1986
    %v2019 = vunpack.c.l.b16 %v1987
    %v2020 = vunpack.c.l.b16 %v1988
    %v2021 = vunpack.c.l.b16 %v1989
    %v2022 = vunpack.c.l.b16 %v1990
    %v2023 = vunpack.c.l.b16 %v1991
    %v2024 = vunpack.c.l.b16 %v1992
    %v2025 = vunpack.c.l.b16 %v1993
    %v2026 = vunpack.c.l.b16 %v1994
    %v2027 = vunpack.c.l.b16 %v1995
    %v2028 = vunpack.c.l.b16 %v1996
    %v2029 = vunpack.c.l.b16 %v1997
    %v2030 = vunpack.c.l.b16 %v1998
    %v2031 = vunpack.c.l.b16 %v1999
    %v2032 = vunpack.c.l.b16 %v2000
    %v2033 = vunpack.c.l.b16 %v2001
    %v2034 = vpack.c.b16 %v2019, %v2018
    %v2035 = vpack.c.b16 %v2021, %v2020
    %v2036 = vpack.c.b16 %v2023, %v2022
    %v2037 = vpack.c.b16 %v2025, %v2024
    %v2038 = vpack.c.b16 %v2027, %v2026
    %v2039 = vpack.c.b16 %v2029, %v2028
    %v2040 = vpack.c.b16 %v2031, %v2030
    %v2041 = vpack.c.b16 %v2033, %v2032
    %2050 = vmatpush.bf16.msra.mxu0 %v2041
    %2051 = vmatpush.bf16.msra.mxu0 %v2040
    %2052 = vmatpush.bf16.msra.mxu0 %v2039
    %2053 = vmatpush.bf16.msra.mxu0 %v2038
    %2054 = vmatpush.bf16.msra.mxu0 %v2037
    %2055 = vmatpush.bf16.msra.mxu0 %v2036
    %2056 = vmatpush.bf16.msra.mxu0 %v2035
    %2057 = vmatpush.bf16.msra.mxu0 %v2034
    %2058 = vmatmul.bf16.gmra.mxu0 %v298
    %v2059 = vpop.f32.mrf.mxu0
    %v2060 = vadd.f32 0.0, %v2059
    %v2061 = vpop.f32.mrf.mxu0
    %v2062 = vadd.f32 0.0, %v2061
    %2063 = vmatmul.bf16.gmra.mxu0 %v299
    %v2064 = vpop.f32.mrf.mxu0
    %v2065 = vadd.f32 0.0, %v2064
    %v2066 = vpop.f32.mrf.mxu0
    %v2067 = vadd.f32 0.0, %v2066
    %2068 = vmatmul.bf16.gmra.mxu0 %v300
    %v2069 = vpop.f32.mrf.mxu0
    %v2070 = vadd.f32 0.0, %v2069
    %v2071 = vpop.f32.mrf.mxu0
    %v2072 = vadd.f32 0.0, %v2071
    %2073 = vmatmul.bf16.gmra.mxu0 %v301
    %v2074 = vpop.f32.mrf.mxu0
    %v2075 = vadd.f32 0.0, %v2074
    %v2076 = vpop.f32.mrf.mxu0
    %v2077 = vadd.f32 0.0, %v2076
    %2078 = vmatmul.bf16.gmra.mxu0 %v302
    %v2079 = vpop.f32.mrf.mxu0
    %v2080 = vadd.f32 0.0, %v2079
    %v2081 = vpop.f32.mrf.mxu0
    %v2082 = vadd.f32 0.0, %v2081
    %2083 = vmatmul.bf16.gmra.mxu0 %v303
    %v2084 = vpop.f32.mrf.mxu0
    %v2085 = vadd.f32 0.0, %v2084
    %v2086 = vpop.f32.mrf.mxu0
    %v2087 = vadd.f32 0.0, %v2086
    %2088 = vmatmul.bf16.gmra.mxu0 %v304
    %v2089 = vpop.f32.mrf.mxu0
    %v2090 = vadd.f32 0.0, %v2089
    %v2091 = vpop.f32.mrf.mxu0
    %v2092 = vadd.f32 0.0, %v2091
    %2093 = vmatmul.bf16.gmra.mxu0 %v305
    %v2094 = vpop.f32.mrf.mxu0
    %v2095 = vadd.f32 0.0, %v2094
    %v2096 = vpop.f32.mrf.mxu0
    %v2097 = vadd.f32 0.0, %v2096
    %2098 = vmatmul.bf16.gmra.mxu0 %v306
    %v2099 = vpop.f32.mrf.mxu0
    %v2100 = vadd.f32 0.0, %v2099
    %v2101 = vpop.f32.mrf.mxu0
    %v2102 = vadd.f32 0.0, %v2101
    %2103 = vmatmul.bf16.gmra.mxu0 %v307
    %v2104 = vpop.f32.mrf.mxu0
    %v2105 = vadd.f32 0.0, %v2104
    %v2106 = vpop.f32.mrf.mxu0
    %v2107 = vadd.f32 0.0, %v2106
    %2108 = vmatmul.bf16.gmra.mxu0 %v308
    %v2109 = vpop.f32.mrf.mxu0
    %v2110 = vadd.f32 0.0, %v2109
    %v2111 = vpop.f32.mrf.mxu0
    %v2112 = vadd.f32 0.0, %v2111
    %2113 = vmatmul.bf16.gmra.mxu0 %v309
    %v2114 = vpop.f32.mrf.mxu0
    %v2115 = vadd.f32 0.0, %v2114
    %v2116 = vpop.f32.mrf.mxu0
    %v2117 = vadd.f32 0.0, %v2116
    %2118 = vmatmul.bf16.gmra.mxu0 %v310
    %v2119 = vpop.f32.mrf.mxu0
    %v2120 = vadd.f32 0.0, %v2119
    %v2121 = vpop.f32.mrf.mxu0
    %v2122 = vadd.f32 0.0, %v2121
    %2123 = vmatmul.bf16.gmra.mxu0 %v311
    %v2124 = vpop.f32.mrf.mxu0
    %v2125 = vadd.f32 0.0, %v2124
    %v2126 = vpop.f32.mrf.mxu0
    %v2127 = vadd.f32 0.0, %v2126
    %2128 = vmatmul.bf16.gmra.mxu0 %v312
    %v2129 = vpop.f32.mrf.mxu0
    %v2130 = vadd.f32 0.0, %v2129
    %v2131 = vpop.f32.mrf.mxu0
    %v2132 = vadd.f32 0.0, %v2131
    %2133 = vmatmul.bf16.gmra.mxu0 %v313
    %v2134 = vpop.f32.mrf.mxu0
    %v2135 = vadd.f32 0.0, %v2134
    %v2136 = vpop.f32.mrf.mxu0
    %v2137 = vadd.f32 0.0, %v2136
    %2138 = vmatmul.bf16.gmra.mxu0 %v314
    %v2139 = vpop.f32.mrf.mxu0
    %v2140 = vadd.f32 0.0, %v2139
    %v2141 = vpop.f32.mrf.mxu0
    %v2142 = vadd.f32 0.0, %v2141
    %2143 = vmatmul.bf16.gmra.mxu0 %v315
    %v2144 = vpop.f32.mrf.mxu0
    %v2145 = vadd.f32 0.0, %v2144
    %v2146 = vpop.f32.mrf.mxu0
    %v2147 = vadd.f32 0.0, %v2146
    %2148 = vmatmul.bf16.gmra.mxu0 %v316
    %v2149 = vpop.f32.mrf.mxu0
    %v2150 = vadd.f32 0.0, %v2149
    %v2151 = vpop.f32.mrf.mxu0
    %v2152 = vadd.f32 0.0, %v2151
    %2153 = vmatmul.bf16.gmra.mxu0 %v317
    %v2154 = vpop.f32.mrf.mxu0
    %v2155 = vadd.f32 0.0, %v2154
    %v2156 = vpop.f32.mrf.mxu0
    %v2157 = vadd.f32 0.0, %v2156
    %2158 = vmatmul.bf16.gmra.mxu0 %v318
    %v2159 = vpop.f32.mrf.mxu0
    %v2160 = vadd.f32 0.0, %v2159
    %v2161 = vpop.f32.mrf.mxu0
    %v2162 = vadd.f32 0.0, %v2161
    %2163 = vmatmul.bf16.gmra.mxu0 %v319
    %v2164 = vpop.f32.mrf.mxu0
    %v2165 = vadd.f32 0.0, %v2164
    %v2166 = vpop.f32.mrf.mxu0
    %v2167 = vadd.f32 0.0, %v2166
    %2168 = vmatmul.bf16.gmra.mxu0 %v320
    %v2169 = vpop.f32.mrf.mxu0
    %v2170 = vadd.f32 0.0, %v2169
    %v2171 = vpop.f32.mrf.mxu0
    %v2172 = vadd.f32 0.0, %v2171
    %2173 = vmatmul.bf16.gmra.mxu0 %v321
    %v2174 = vpop.f32.mrf.mxu0
    %v2175 = vadd.f32 0.0, %v2174
    %v2176 = vpop.f32.mrf.mxu0
    %v2177 = vadd.f32 0.0, %v2176
    %2178 = vmatmul.bf16.gmra.mxu0 %v322
    %v2179 = vpop.f32.mrf.mxu0
    %v2180 = vadd.f32 0.0, %v2179
    %v2181 = vpop.f32.mrf.mxu0
    %v2182 = vadd.f32 0.0, %v2181
    %2183 = vmatmul.bf16.gmra.mxu0 %v323
    %v2184 = vpop.f32.mrf.mxu0
    %v2185 = vadd.f32 0.0, %v2184
    %v2186 = vpop.f32.mrf.mxu0
    %v2187 = vadd.f32 0.0, %v2186
    %2188 = vmatmul.bf16.gmra.mxu0 %v1184
    %v2189 = vpop.f32.mrf.mxu0
    %v2190 = vadd.f32 0.0, %v2189
    %v2191 = vpop.f32.mrf.mxu0
    %v2192 = vadd.f32 0.0, %v2191
    %2193 = vmatmul.bf16.gmra.mxu0 %v1730
    %v2194 = vpop.f32.mrf.mxu0
    %v2195 = vadd.f32 0.0, %v2194
    %v2196 = vpop.f32.mrf.mxu0
    %v2197 = vadd.f32 0.0, %v2196
    %2198 = vdwg.mxu0
    %v2199 = vadd.f32 %v1653, %v2060
    %v2200 = vadd.f32 %v1654, %v2062
    %v2201 = vadd.f32 %v1655, %v2065
    %v2202 = vadd.f32 %v1656, %v2067
    %v2203 = vadd.f32 %v1657, %v2070
    %v2204 = vadd.f32 %v1658, %v2072
    %v2205 = vadd.f32 %v1659, %v2075
    %v2206 = vadd.f32 %v1660, %v2077
    %v2207 = vadd.f32 %v1661, %v2080
    %v2208 = vadd.f32 %v1662, %v2082
    %v2209 = vadd.f32 %v1663, %v2085
    %v2210 = vadd.f32 %v1664, %v2087
    %v2211 = vadd.f32 %v1665, %v2090
    %v2212 = vadd.f32 %v1666, %v2092
    %v2213 = vadd.f32 %v1667, %v2095
    %v2214 = vadd.f32 %v1668, %v2097
    %v2215 = vadd.f32 %v1669, %v2100
    %v2216 = vadd.f32 %v1670, %v2102
    %v2217 = vadd.f32 %v1671, %v2105
    %v2218 = vadd.f32 %v1672, %v2107
    %v2219 = vadd.f32 %v1673, %v2110
    %v2220 = vadd.f32 %v1674, %v2112
    %v2221 = vadd.f32 %v1675, %v2115
    %v2222 = vadd.f32 %v1676, %v2117
    %v2223 = vadd.f32 %v1677, %v2120
    %v2224 = vadd.f32 %v1678, %v2122
    %v2225 = vadd.f32 %v1679, %v2125
    %v2226 = vadd.f32 %v1680, %v2127
    %v2227 = vadd.f32 %v1681, %v2130
    %v2228 = vadd.f32 %v1682, %v2132
    %v2229 = vadd.f32 %v1683, %v2135
    %v2230 = vadd.f32 %v1684, %v2137
    %v2231 = vadd.f32 %v1685, %v2140
    %v2232 = vadd.f32 %v1686, %v2142
    %v2233 = vadd.f32 %v1687, %v2145
    %v2234 = vadd.f32 %v1688, %v2147
    %v2235 = vadd.f32 %v1689, %v2150
    %v2236 = vadd.f32 %v1690, %v2152
    %v2237 = vadd.f32 %v1691, %v2155
    %v2238 = vadd.f32 %v1692, %v2157
    %v2239 = vadd.f32 %v1693, %v2160
    %v2240 = vadd.f32 %v1694, %v2162
    %v2241 = vadd.f32 %v1695, %v2165
    %v2242 = vadd.f32 %v1696, %v2167
    %v2243 = vadd.f32 %v1697, %v2170
    %v2244 = vadd.f32 %v1698, %v2172
    %v2245 = vadd.f32 %v1699, %v2175
    %v2246 = vadd.f32 %v1700, %v2177
    %v2247 = vadd.f32 %v1701, %v2180
    %v2248 = vadd.f32 %v1702, %v2182
    %v2249 = vadd.f32 %v1703, %v2185
    %v2250 = vadd.f32 %v1704, %v2187
    %v2251 = vadd.f32 %v1705, %v2190
    %v2252 = vadd.f32 %v1706, %v2192
    %v2253 = vadd.f32 %v1707, %v2195
    %v2254 = vadd.f32 %v1708, %v2197
    %s2255 = scalar_lea.vmem %s1, 512
    %v2256 = vld [vmem:[%s2255] sm:$0xf]
    %v2257 = vld [vmem:[%s2255 + $0x4] sm:$0xf]
    %v2258 = vld [vmem:[%s2255 + $0x8] sm:$0xf]
    %v2259 = vld [vmem:[%s2255 + $0xc] sm:$0xf]
    %v2260 = vld [vmem:[%s2255 + $0x10] sm:$0xf]
    %v2261 = vld [vmem:[%s2255 + $0x14] sm:$0xf]
    %v2262 = vld [vmem:[%s2255 + $0x18] sm:$0xf]
    %v2263 = vld [vmem:[%s2255 + $0x1c] sm:$0xf]
    %v2264 = vld [vmem:[%s2255 + $0x20] sm:$0xf]
    %v2265 = vld [vmem:[%s2255 + $0x24] sm:$0xf]
    %v2266 = vld [vmem:[%s2255 + $0x28] sm:$0xf]
    %v2267 = vld [vmem:[%s2255 + $0x2c] sm:$0xf]
    %v2268 = vld [vmem:[%s2255 + $0x30] sm:$0xf]
    %v2269 = vld [vmem:[%s2255 + $0x34] sm:$0xf]
    %v2270 = vld [vmem:[%s2255 + $0x38] sm:$0xf]
    %v2271 = vld [vmem:[%s2255 + $0x3c] sm:$0xf]
    %v2274 = vunpack.c.l.b16 %v132
    %v2275 = vunpack.c.l.b16 %v133
    %v2276 = vpack.c.b16 %v2275, %v2274
    %v2294 = vunpack.c.l.b16 %v2256
    %v2295 = vunpack.c.l.b16 %v2257
    %v2296 = vunpack.c.l.b16 %v2258
    %v2297 = vunpack.c.l.b16 %v2259
    %v2298 = vunpack.c.l.b16 %v2260
    %v2299 = vunpack.c.l.b16 %v2261
    %v2300 = vunpack.c.l.b16 %v2262
    %v2301 = vunpack.c.l.b16 %v2263
    %v2302 = vunpack.c.l.b16 %v2264
    %v2303 = vunpack.c.l.b16 %v2265
    %v2304 = vunpack.c.l.b16 %v2266
    %v2305 = vunpack.c.l.b16 %v2267
    %v2306 = vunpack.c.l.b16 %v2268
    %v2307 = vunpack.c.l.b16 %v2269
    %v2308 = vunpack.c.l.b16 %v2270
    %v2309 = vunpack.c.l.b16 %v2271
    %v2310 = vpack.c.b16 %v2295, %v2294
    %v2311 = vpack.c.b16 %v2297, %v2296
    %v2312 = vpack.c.b16 %v2299, %v2298
    %v2313 = vpack.c.b16 %v2301, %v2300
    %v2314 = vpack.c.b16 %v2303, %v2302
    %v2315 = vpack.c.b16 %v2305, %v2304
    %v2316 = vpack.c.b16 %v2307, %v2306
    %v2317 = vpack.c.b16 %v2309, %v2308
    %2326 = vmatpush.bf16.msra.mxu0 %v2317
    %2327 = vmatpush.bf16.msra.mxu0 %v2316
    %2328 = vmatpush.bf16.msra.mxu0 %v2315
    %2329 = vmatpush.bf16.msra.mxu0 %v2314
    %2330 = vmatpush.bf16.msra.mxu0 %v2313
    %2331 = vmatpush.bf16.msra.mxu0 %v2312
    %2332 = vmatpush.bf16.msra.mxu0 %v2311
    %2333 = vmatpush.bf16.msra.mxu0 %v2310
    %2334 = vmatmul.bf16.gmra.mxu0 %v299
    %v2335 = vpop.f32.mrf.mxu0
    %v2336 = vadd.f32 0.0, %v2335
    %v2337 = vpop.f32.mrf.mxu0
    %v2338 = vadd.f32 0.0, %v2337
    %2339 = vmatmul.bf16.gmra.mxu0 %v300
    %v2340 = vpop.f32.mrf.mxu0
    %v2341 = vadd.f32 0.0, %v2340
    %v2342 = vpop.f32.mrf.mxu0
    %v2343 = vadd.f32 0.0, %v2342
    %2344 = vmatmul.bf16.gmra.mxu0 %v301
    %v2345 = vpop.f32.mrf.mxu0
    %v2346 = vadd.f32 0.0, %v2345
    %v2347 = vpop.f32.mrf.mxu0
    %v2348 = vadd.f32 0.0, %v2347
    %2349 = vmatmul.bf16.gmra.mxu0 %v302
    %v2350 = vpop.f32.mrf.mxu0
    %v2351 = vadd.f32 0.0, %v2350
    %v2352 = vpop.f32.mrf.mxu0
    %v2353 = vadd.f32 0.0, %v2352
    %2354 = vmatmul.bf16.gmra.mxu0 %v303
    %v2355 = vpop.f32.mrf.mxu0
    %v2356 = vadd.f32 0.0, %v2355
    %v2357 = vpop.f32.mrf.mxu0
    %v2358 = vadd.f32 0.0, %v2357
    %2359 = vmatmul.bf16.gmra.mxu0 %v304
    %v2360 = vpop.f32.mrf.mxu0
    %v2361 = vadd.f32 0.0, %v2360
    %v2362 = vpop.f32.mrf.mxu0
    %v2363 = vadd.f32 0.0, %v2362
    %2364 = vmatmul.bf16.gmra.mxu0 %v305
    %v2365 = vpop.f32.mrf.mxu0
    %v2366 = vadd.f32 0.0, %v2365
    %v2367 = vpop.f32.mrf.mxu0
    %v2368 = vadd.f32 0.0, %v2367
    %2369 = vmatmul.bf16.gmra.mxu0 %v306
    %v2370 = vpop.f32.mrf.mxu0
    %v2371 = vadd.f32 0.0, %v2370
    %v2372 = vpop.f32.mrf.mxu0
    %v2373 = vadd.f32 0.0, %v2372
    %2374 = vmatmul.bf16.gmra.mxu0 %v307
    %v2375 = vpop.f32.mrf.mxu0
    %v2376 = vadd.f32 0.0, %v2375
    %v2377 = vpop.f32.mrf.mxu0
    %v2378 = vadd.f32 0.0, %v2377
    %2379 = vmatmul.bf16.gmra.mxu0 %v308
    %v2380 = vpop.f32.mrf.mxu0
    %v2381 = vadd.f32 0.0, %v2380
    %v2382 = vpop.f32.mrf.mxu0
    %v2383 = vadd.f32 0.0, %v2382
    %2384 = vmatmul.bf16.gmra.mxu0 %v309
    %v2385 = vpop.f32.mrf.mxu0
    %v2386 = vadd.f32 0.0, %v2385
    %v2387 = vpop.f32.mrf.mxu0
    %v2388 = vadd.f32 0.0, %v2387
    %2389 = vmatmul.bf16.gmra.mxu0 %v310
    %v2390 = vpop.f32.mrf.mxu0
    %v2391 = vadd.f32 0.0, %v2390
    %v2392 = vpop.f32.mrf.mxu0
    %v2393 = vadd.f32 0.0, %v2392
    %2394 = vmatmul.bf16.gmra.mxu0 %v311
    %v2395 = vpop.f32.mrf.mxu0
    %v2396 = vadd.f32 0.0, %v2395
    %v2397 = vpop.f32.mrf.mxu0
    %v2398 = vadd.f32 0.0, %v2397
    %2399 = vmatmul.bf16.gmra.mxu0 %v312
    %v2400 = vpop.f32.mrf.mxu0
    %v2401 = vadd.f32 0.0, %v2400
    %v2402 = vpop.f32.mrf.mxu0
    %v2403 = vadd.f32 0.0, %v2402
    %2404 = vmatmul.bf16.gmra.mxu0 %v313
    %v2405 = vpop.f32.mrf.mxu0
    %v2406 = vadd.f32 0.0, %v2405
    %v2407 = vpop.f32.mrf.mxu0
    %v2408 = vadd.f32 0.0, %v2407
    %2409 = vmatmul.bf16.gmra.mxu0 %v314
    %v2410 = vpop.f32.mrf.mxu0
    %v2411 = vadd.f32 0.0, %v2410
    %v2412 = vpop.f32.mrf.mxu0
    %v2413 = vadd.f32 0.0, %v2412
    %2414 = vmatmul.bf16.gmra.mxu0 %v315
    %v2415 = vpop.f32.mrf.mxu0
    %v2416 = vadd.f32 0.0, %v2415
    %v2417 = vpop.f32.mrf.mxu0
    %v2418 = vadd.f32 0.0, %v2417
    %2419 = vmatmul.bf16.gmra.mxu0 %v316
    %v2420 = vpop.f32.mrf.mxu0
    %v2421 = vadd.f32 0.0, %v2420
    %v2422 = vpop.f32.mrf.mxu0
    %v2423 = vadd.f32 0.0, %v2422
    %2424 = vmatmul.bf16.gmra.mxu0 %v317
    %v2425 = vpop.f32.mrf.mxu0
    %v2426 = vadd.f32 0.0, %v2425
    %v2427 = vpop.f32.mrf.mxu0
    %v2428 = vadd.f32 0.0, %v2427
    %2429 = vmatmul.bf16.gmra.mxu0 %v318
    %v2430 = vpop.f32.mrf.mxu0
    %v2431 = vadd.f32 0.0, %v2430
    %v2432 = vpop.f32.mrf.mxu0
    %v2433 = vadd.f32 0.0, %v2432
    %2434 = vmatmul.bf16.gmra.mxu0 %v319
    %v2435 = vpop.f32.mrf.mxu0
    %v2436 = vadd.f32 0.0, %v2435
    %v2437 = vpop.f32.mrf.mxu0
    %v2438 = vadd.f32 0.0, %v2437
    %2439 = vmatmul.bf16.gmra.mxu0 %v320
    %v2440 = vpop.f32.mrf.mxu0
    %v2441 = vadd.f32 0.0, %v2440
    %v2442 = vpop.f32.mrf.mxu0
    %v2443 = vadd.f32 0.0, %v2442
    %2444 = vmatmul.bf16.gmra.mxu0 %v321
    %v2445 = vpop.f32.mrf.mxu0
    %v2446 = vadd.f32 0.0, %v2445
    %v2447 = vpop.f32.mrf.mxu0
    %v2448 = vadd.f32 0.0, %v2447
    %2449 = vmatmul.bf16.gmra.mxu0 %v322
    %v2450 = vpop.f32.mrf.mxu0
    %v2451 = vadd.f32 0.0, %v2450
    %v2452 = vpop.f32.mrf.mxu0
    %v2453 = vadd.f32 0.0, %v2452
    %2454 = vmatmul.bf16.gmra.mxu0 %v323
    %v2455 = vpop.f32.mrf.mxu0
    %v2456 = vadd.f32 0.0, %v2455
    %v2457 = vpop.f32.mrf.mxu0
    %v2458 = vadd.f32 0.0, %v2457
    %2459 = vmatmul.bf16.gmra.mxu0 %v1184
    %v2460 = vpop.f32.mrf.mxu0
    %v2461 = vadd.f32 0.0, %v2460
    %v2462 = vpop.f32.mrf.mxu0
    %v2463 = vadd.f32 0.0, %v2462
    %2464 = vmatmul.bf16.gmra.mxu0 %v1730
    %v2465 = vpop.f32.mrf.mxu0
    %v2466 = vadd.f32 0.0, %v2465
    %v2467 = vpop.f32.mrf.mxu0
    %v2468 = vadd.f32 0.0, %v2467
    %2469 = vmatmul.bf16.gmra.mxu0 %v2276
    %v2470 = vpop.f32.mrf.mxu0
    %v2471 = vadd.f32 0.0, %v2470
    %v2472 = vpop.f32.mrf.mxu0
    %v2473 = vadd.f32 0.0, %v2472
    %2474 = vdwg.mxu0
    %v2475 = vadd.f32 %v1929, %v2336
    %v2476 = vadd.f32 %v1930, %v2338
    %v2477 = vadd.f32 %v1931, %v2341
    %v2478 = vadd.f32 %v1932, %v2343
    %v2479 = vadd.f32 %v1933, %v2346
    %v2480 = vadd.f32 %v1934, %v2348
    %v2481 = vadd.f32 %v1935, %v2351
    %v2482 = vadd.f32 %v1936, %v2353
    %v2483 = vadd.f32 %v1937, %v2356
    %v2484 = vadd.f32 %v1938, %v2358
    %v2485 = vadd.f32 %v1939, %v2361
    %v2486 = vadd.f32 %v1940, %v2363
    %v2487 = vadd.f32 %v1941, %v2366
    %v2488 = vadd.f32 %v1942, %v2368
    %v2489 = vadd.f32 %v1943, %v2371
    %v2490 = vadd.f32 %v1944, %v2373
    %v2491 = vadd.f32 %v1945, %v2376
    %v2492 = vadd.f32 %v1946, %v2378
    %v2493 = vadd.f32 %v1947, %v2381
    %v2494 = vadd.f32 %v1948, %v2383
    %v2495 = vadd.f32 %v1949, %v2386
    %v2496 = vadd.f32 %v1950, %v2388
    %v2497 = vadd.f32 %v1951, %v2391
    %v2498 = vadd.f32 %v1952, %v2393
    %v2499 = vadd.f32 %v1953, %v2396
    %v2500 = vadd.f32 %v1954, %v2398
    %v2501 = vadd.f32 %v1955, %v2401
    %v2502 = vadd.f32 %v1956, %v2403
    %v2503 = vadd.f32 %v1957, %v2406
    %v2504 = vadd.f32 %v1958, %v2408
    %v2505 = vadd.f32 %v1959, %v2411
    %v2506 = vadd.f32 %v1960, %v2413
    %v2507 = vadd.f32 %v1961, %v2416
    %v2508 = vadd.f32 %v1962, %v2418
    %v2509 = vadd.f32 %v1963, %v2421
    %v2510 = vadd.f32 %v1964, %v2423
    %v2511 = vadd.f32 %v1965, %v2426
    %v2512 = vadd.f32 %v1966, %v2428
    %v2513 = vadd.f32 %v1967, %v2431
    %v2514 = vadd.f32 %v1968, %v2433
    %v2515 = vadd.f32 %v1969, %v2436
    %v2516 = vadd.f32 %v1970, %v2438
    %v2517 = vadd.f32 %v1971, %v2441
    %v2518 = vadd.f32 %v1972, %v2443
    %v2519 = vadd.f32 %v1973, %v2446
    %v2520 = vadd.f32 %v1974, %v2448
    %v2521 = vadd.f32 %v1975, %v2451
    %v2522 = vadd.f32 %v1976, %v2453
    %v2523 = vadd.f32 %v1977, %v2456
    %v2524 = vadd.f32 %v1978, %v2458
    %v2525 = vadd.f32 %v1979, %v2461
    %v2526 = vadd.f32 %v1980, %v2463
    %v2527 = vadd.f32 %v1981, %v2466
    %v2528 = vadd.f32 %v1982, %v2468
    %v2529 = vadd.f32 %v1983, %v2471
    %v2530 = vadd.f32 %v1984, %v2473
    %s2531 = scalar_lea.vmem %s1, 576
    %v2532 = vld [vmem:[%s2531] sm:$0xf]
    %v2533 = vld [vmem:[%s2531 + $0x4] sm:$0xf]
    %v2534 = vld [vmem:[%s2531 + $0x8] sm:$0xf]
    %v2535 = vld [vmem:[%s2531 + $0xc] sm:$0xf]
    %v2536 = vld [vmem:[%s2531 + $0x10] sm:$0xf]
    %v2537 = vld [vmem:[%s2531 + $0x14] sm:$0xf]
    %v2538 = vld [vmem:[%s2531 + $0x18] sm:$0xf]
    %v2539 = vld [vmem:[%s2531 + $0x1c] sm:$0xf]
    %v2540 = vld [vmem:[%s2531 + $0x20] sm:$0xf]
    %v2541 = vld [vmem:[%s2531 + $0x24] sm:$0xf]
    %v2542 = vld [vmem:[%s2531 + $0x28] sm:$0xf]
    %v2543 = vld [vmem:[%s2531 + $0x2c] sm:$0xf]
    %v2544 = vld [vmem:[%s2531 + $0x30] sm:$0xf]
    %v2545 = vld [vmem:[%s2531 + $0x34] sm:$0xf]
    %v2546 = vld [vmem:[%s2531 + $0x38] sm:$0xf]
    %v2547 = vld [vmem:[%s2531 + $0x3c] sm:$0xf]
    %v2564 = vunpack.c.l.b16 %v2532
    %v2565 = vunpack.c.l.b16 %v2533
    %v2566 = vunpack.c.l.b16 %v2534
    %v2567 = vunpack.c.l.b16 %v2535
    %v2568 = vunpack.c.l.b16 %v2536
    %v2569 = vunpack.c.l.b16 %v2537
    %v2570 = vunpack.c.l.b16 %v2538
    %v2571 = vunpack.c.l.b16 %v2539
    %v2572 = vunpack.c.l.b16 %v2540
    %v2573 = vunpack.c.l.b16 %v2541
    %v2574 = vunpack.c.l.b16 %v2542
    %v2575 = vunpack.c.l.b16 %v2543
    %v2576 = vunpack.c.l.b16 %v2544
    %v2577 = vunpack.c.l.b16 %v2545
    %v2578 = vunpack.c.l.b16 %v2546
    %v2579 = vunpack.c.l.b16 %v2547
    %v2580 = vpack.c.b16 %v2565, %v2564
    %v2581 = vpack.c.b16 %v2567, %v2566
    %v2582 = vpack.c.b16 %v2569, %v2568
    %v2583 = vpack.c.b16 %v2571, %v2570
    %v2584 = vpack.c.b16 %v2573, %v2572
    %v2585 = vpack.c.b16 %v2575, %v2574
    %v2586 = vpack.c.b16 %v2577, %v2576
    %v2587 = vpack.c.b16 %v2579, %v2578
    %2596 = vmatpush.bf16.msra.mxu0 %v2587
    %2597 = vmatpush.bf16.msra.mxu0 %v2586
    %2598 = vmatpush.bf16.msra.mxu0 %v2585
    %2599 = vmatpush.bf16.msra.mxu0 %v2584
    %2600 = vmatpush.bf16.msra.mxu0 %v2583
    %2601 = vmatpush.bf16.msra.mxu0 %v2582
    %2602 = vmatpush.bf16.msra.mxu0 %v2581
    %2603 = vmatpush.bf16.msra.mxu0 %v2580
    %2604 = vmatmul.bf16.gmra.mxu0 %v299
    %v2605 = vpop.f32.mrf.mxu0
    %v2606 = vadd.f32 0.0, %v2605
    %v2607 = vpop.f32.mrf.mxu0
    %v2608 = vadd.f32 0.0, %v2607
    %2609 = vmatmul.bf16.gmra.mxu0 %v300
    %v2610 = vpop.f32.mrf.mxu0
    %v2611 = vadd.f32 0.0, %v2610
    %v2612 = vpop.f32.mrf.mxu0
    %v2613 = vadd.f32 0.0, %v2612
    %2614 = vmatmul.bf16.gmra.mxu0 %v301
    %v2615 = vpop.f32.mrf.mxu0
    %v2616 = vadd.f32 0.0, %v2615
    %v2617 = vpop.f32.mrf.mxu0
    %v2618 = vadd.f32 0.0, %v2617
    %2619 = vmatmul.bf16.gmra.mxu0 %v302
    %v2620 = vpop.f32.mrf.mxu0
    %v2621 = vadd.f32 0.0, %v2620
    %v2622 = vpop.f32.mrf.mxu0
    %v2623 = vadd.f32 0.0, %v2622
    %2624 = vmatmul.bf16.gmra.mxu0 %v303
    %v2625 = vpop.f32.mrf.mxu0
    %v2626 = vadd.f32 0.0, %v2625
    %v2627 = vpop.f32.mrf.mxu0
    %v2628 = vadd.f32 0.0, %v2627
    %2629 = vmatmul.bf16.gmra.mxu0 %v304
    %v2630 = vpop.f32.mrf.mxu0
    %v2631 = vadd.f32 0.0, %v2630
    %v2632 = vpop.f32.mrf.mxu0
    %v2633 = vadd.f32 0.0, %v2632
    %2634 = vmatmul.bf16.gmra.mxu0 %v305
    %v2635 = vpop.f32.mrf.mxu0
    %v2636 = vadd.f32 0.0, %v2635
    %v2637 = vpop.f32.mrf.mxu0
    %v2638 = vadd.f32 0.0, %v2637
    %2639 = vmatmul.bf16.gmra.mxu0 %v306
    %v2640 = vpop.f32.mrf.mxu0
    %v2641 = vadd.f32 0.0, %v2640
    %v2642 = vpop.f32.mrf.mxu0
    %v2643 = vadd.f32 0.0, %v2642
    %2644 = vmatmul.bf16.gmra.mxu0 %v307
    %v2645 = vpop.f32.mrf.mxu0
    %v2646 = vadd.f32 0.0, %v2645
    %v2647 = vpop.f32.mrf.mxu0
    %v2648 = vadd.f32 0.0, %v2647
    %2649 = vmatmul.bf16.gmra.mxu0 %v308
    %v2650 = vpop.f32.mrf.mxu0
    %v2651 = vadd.f32 0.0, %v2650
    %v2652 = vpop.f32.mrf.mxu0
    %v2653 = vadd.f32 0.0, %v2652
    %2654 = vmatmul.bf16.gmra.mxu0 %v309
    %v2655 = vpop.f32.mrf.mxu0
    %v2656 = vadd.f32 0.0, %v2655
    %v2657 = vpop.f32.mrf.mxu0
    %v2658 = vadd.f32 0.0, %v2657
    %2659 = vmatmul.bf16.gmra.mxu0 %v310
    %v2660 = vpop.f32.mrf.mxu0
    %v2661 = vadd.f32 0.0, %v2660
    %v2662 = vpop.f32.mrf.mxu0
    %v2663 = vadd.f32 0.0, %v2662
    %2664 = vmatmul.bf16.gmra.mxu0 %v311
    %v2665 = vpop.f32.mrf.mxu0
    %v2666 = vadd.f32 0.0, %v2665
    %v2667 = vpop.f32.mrf.mxu0
    %v2668 = vadd.f32 0.0, %v2667
    %2669 = vmatmul.bf16.gmra.mxu0 %v312
    %v2670 = vpop.f32.mrf.mxu0
    %v2671 = vadd.f32 0.0, %v2670
    %v2672 = vpop.f32.mrf.mxu0
    %v2673 = vadd.f32 0.0, %v2672
    %2674 = vmatmul.bf16.gmra.mxu0 %v313
    %v2675 = vpop.f32.mrf.mxu0
    %v2676 = vadd.f32 0.0, %v2675
    %v2677 = vpop.f32.mrf.mxu0
    %v2678 = vadd.f32 0.0, %v2677
    %2679 = vmatmul.bf16.gmra.mxu0 %v314
    %v2680 = vpop.f32.mrf.mxu0
    %v2681 = vadd.f32 0.0, %v2680
    %v2682 = vpop.f32.mrf.mxu0
    %v2683 = vadd.f32 0.0, %v2682
    %2684 = vmatmul.bf16.gmra.mxu0 %v315
    %v2685 = vpop.f32.mrf.mxu0
    %v2686 = vadd.f32 0.0, %v2685
    %v2687 = vpop.f32.mrf.mxu0
    %v2688 = vadd.f32 0.0, %v2687
    %2689 = vmatmul.bf16.gmra.mxu0 %v316
    %v2690 = vpop.f32.mrf.mxu0
    %v2691 = vadd.f32 0.0, %v2690
    %v2692 = vpop.f32.mrf.mxu0
    %v2693 = vadd.f32 0.0, %v2692
    %2694 = vmatmul.bf16.gmra.mxu0 %v317
    %v2695 = vpop.f32.mrf.mxu0
    %v2696 = vadd.f32 0.0, %v2695
    %v2697 = vpop.f32.mrf.mxu0
    %v2698 = vadd.f32 0.0, %v2697
    %2699 = vmatmul.bf16.gmra.mxu0 %v318
    %v2700 = vpop.f32.mrf.mxu0
    %v2701 = vadd.f32 0.0, %v2700
    %v2702 = vpop.f32.mrf.mxu0
    %v2703 = vadd.f32 0.0, %v2702
    %2704 = vmatmul.bf16.gmra.mxu0 %v319
    %v2705 = vpop.f32.mrf.mxu0
    %v2706 = vadd.f32 0.0, %v2705
    %v2707 = vpop.f32.mrf.mxu0
    %v2708 = vadd.f32 0.0, %v2707
    %2709 = vmatmul.bf16.gmra.mxu0 %v320
    %v2710 = vpop.f32.mrf.mxu0
    %v2711 = vadd.f32 0.0, %v2710
    %v2712 = vpop.f32.mrf.mxu0
    %v2713 = vadd.f32 0.0, %v2712
    %2714 = vmatmul.bf16.gmra.mxu0 %v321
    %v2715 = vpop.f32.mrf.mxu0
    %v2716 = vadd.f32 0.0, %v2715
    %v2717 = vpop.f32.mrf.mxu0
    %v2718 = vadd.f32 0.0, %v2717
    %2719 = vmatmul.bf16.gmra.mxu0 %v322
    %v2720 = vpop.f32.mrf.mxu0
    %v2721 = vadd.f32 0.0, %v2720
    %v2722 = vpop.f32.mrf.mxu0
    %v2723 = vadd.f32 0.0, %v2722
    %2724 = vmatmul.bf16.gmra.mxu0 %v323
    %v2725 = vpop.f32.mrf.mxu0
    %v2726 = vadd.f32 0.0, %v2725
    %v2727 = vpop.f32.mrf.mxu0
    %v2728 = vadd.f32 0.0, %v2727
    %2729 = vmatmul.bf16.gmra.mxu0 %v1184
    %v2730 = vpop.f32.mrf.mxu0
    %v2731 = vadd.f32 0.0, %v2730
    %v2732 = vpop.f32.mrf.mxu0
    %v2733 = vadd.f32 0.0, %v2732
    %2734 = vmatmul.bf16.gmra.mxu0 %v1730
    %v2735 = vpop.f32.mrf.mxu0
    %v2736 = vadd.f32 0.0, %v2735
    %v2737 = vpop.f32.mrf.mxu0
    %v2738 = vadd.f32 0.0, %v2737
    %2739 = vmatmul.bf16.gmra.mxu0 %v2276
    %v2740 = vpop.f32.mrf.mxu0
    %v2741 = vadd.f32 0.0, %v2740
    %v2742 = vpop.f32.mrf.mxu0
    %v2743 = vadd.f32 0.0, %v2742
    %2744 = vdwg.mxu0
    %v2745 = vadd.f32 %v2199, %v2606
    %v2746 = vadd.f32 %v2200, %v2608
    %v2747 = vadd.f32 %v2201, %v2611
    %v2748 = vadd.f32 %v2202, %v2613
    %v2749 = vadd.f32 %v2203, %v2616
    %v2750 = vadd.f32 %v2204, %v2618
    %v2751 = vadd.f32 %v2205, %v2621
    %v2752 = vadd.f32 %v2206, %v2623
    %v2753 = vadd.f32 %v2207, %v2626
    %v2754 = vadd.f32 %v2208, %v2628
    %v2755 = vadd.f32 %v2209, %v2631
    %v2756 = vadd.f32 %v2210, %v2633
    %v2757 = vadd.f32 %v2211, %v2636
    %v2758 = vadd.f32 %v2212, %v2638
    %v2759 = vadd.f32 %v2213, %v2641
    %v2760 = vadd.f32 %v2214, %v2643
    %v2761 = vadd.f32 %v2215, %v2646
    %v2762 = vadd.f32 %v2216, %v2648
    %v2763 = vadd.f32 %v2217, %v2651
    %v2764 = vadd.f32 %v2218, %v2653
    %v2765 = vadd.f32 %v2219, %v2656
    %v2766 = vadd.f32 %v2220, %v2658
    %v2767 = vadd.f32 %v2221, %v2661
    %v2768 = vadd.f32 %v2222, %v2663
    %v2769 = vadd.f32 %v2223, %v2666
    %v2770 = vadd.f32 %v2224, %v2668
    %v2771 = vadd.f32 %v2225, %v2671
    %v2772 = vadd.f32 %v2226, %v2673
    %v2773 = vadd.f32 %v2227, %v2676
    %v2774 = vadd.f32 %v2228, %v2678
    %v2775 = vadd.f32 %v2229, %v2681
    %v2776 = vadd.f32 %v2230, %v2683
    %v2777 = vadd.f32 %v2231, %v2686
    %v2778 = vadd.f32 %v2232, %v2688
    %v2779 = vadd.f32 %v2233, %v2691
    %v2780 = vadd.f32 %v2234, %v2693
    %v2781 = vadd.f32 %v2235, %v2696
    %v2782 = vadd.f32 %v2236, %v2698
    %v2783 = vadd.f32 %v2237, %v2701
    %v2784 = vadd.f32 %v2238, %v2703
    %v2785 = vadd.f32 %v2239, %v2706
    %v2786 = vadd.f32 %v2240, %v2708
    %v2787 = vadd.f32 %v2241, %v2711
    %v2788 = vadd.f32 %v2242, %v2713
    %v2789 = vadd.f32 %v2243, %v2716
    %v2790 = vadd.f32 %v2244, %v2718
    %v2791 = vadd.f32 %v2245, %v2721
    %v2792 = vadd.f32 %v2246, %v2723
    %v2793 = vadd.f32 %v2247, %v2726
    %v2794 = vadd.f32 %v2248, %v2728
    %v2795 = vadd.f32 %v2249, %v2731
    %v2796 = vadd.f32 %v2250, %v2733
    %v2797 = vadd.f32 %v2251, %v2736
    %v2798 = vadd.f32 %v2252, %v2738
    %v2799 = vadd.f32 %v2253, %v2741
    %v2800 = vadd.f32 %v2254, %v2743
    %v2801 = vmax.f32 %v2475, %v2745
    %v2802 = vmax.f32 %v2476, %v2746
    %v2803 = vmax.f32 %v2477, %v2747
    %v2804 = vmax.f32 %v2478, %v2748
    %v2805 = vmax.f32 %v2479, %v2749
    %v2806 = vmax.f32 %v2480, %v2750
    %v2807 = vmax.f32 %v2481, %v2751
    %v2808 = vmax.f32 %v2482, %v2752
    %v2809 = vmax.f32 %v2483, %v2753
    %v2810 = vmax.f32 %v2484, %v2754
    %v2811 = vmax.f32 %v2485, %v2755
    %v2812 = vmax.f32 %v2486, %v2756
    %v2813 = vmax.f32 %v2487, %v2757
    %v2814 = vmax.f32 %v2488, %v2758
    %v2815 = vmax.f32 %v2489, %v2759
    %v2816 = vmax.f32 %v2490, %v2760
    %v2817 = vmax.f32 %v2491, %v2761
    %v2818 = vmax.f32 %v2492, %v2762
    %v2819 = vmax.f32 %v2493, %v2763
    %v2820 = vmax.f32 %v2494, %v2764
    %v2821 = vmax.f32 %v2495, %v2765
    %v2822 = vmax.f32 %v2496, %v2766
    %v2823 = vmax.f32 %v2497, %v2767
    %v2824 = vmax.f32 %v2498, %v2768
    %v2825 = vmax.f32 %v2499, %v2769
    %v2826 = vmax.f32 %v2500, %v2770
    %v2827 = vmax.f32 %v2501, %v2771
    %v2828 = vmax.f32 %v2502, %v2772
    %v2829 = vmax.f32 %v2503, %v2773
    %v2830 = vmax.f32 %v2504, %v2774
    %v2831 = vmax.f32 %v2505, %v2775
    %v2832 = vmax.f32 %v2506, %v2776
    %v2833 = vmax.f32 %v2507, %v2777
    %v2834 = vmax.f32 %v2508, %v2778
    %v2835 = vmax.f32 %v2509, %v2779
    %v2836 = vmax.f32 %v2510, %v2780
    %v2837 = vmax.f32 %v2511, %v2781
    %v2838 = vmax.f32 %v2512, %v2782
    %v2839 = vmax.f32 %v2513, %v2783
    %v2840 = vmax.f32 %v2514, %v2784
    %v2841 = vmax.f32 %v2515, %v2785
    %v2842 = vmax.f32 %v2516, %v2786
    %v2843 = vmax.f32 %v2517, %v2787
    %v2844 = vmax.f32 %v2518, %v2788
    %v2845 = vmax.f32 %v2519, %v2789
    %v2846 = vmax.f32 %v2520, %v2790
    %v2847 = vmax.f32 %v2521, %v2791
    %v2848 = vmax.f32 %v2522, %v2792
    %v2849 = vmax.f32 %v2523, %v2793
    %v2850 = vmax.f32 %v2524, %v2794
    %v2851 = vmax.f32 %v2525, %v2795
    %v2852 = vmax.f32 %v2526, %v2796
    %v2853 = vmax.f32 %v2527, %v2797
    %v2854 = vmax.f32 %v2528, %v2798
    %v2855 = vmax.f32 %v2529, %v2799
    %v2856 = vmax.f32 %v2530, %v2800
    %v2857 = vld [vmem:[%s2] sm:$0x1]
    %v2859 = vperm.slane %v2857, 0
    %v2861 = vadd.f32 %v2801, %v2859
    %v2862 = vadd.f32 %v2802, %v2859
    %v2863 = vadd.f32 %v2803, %v2859
    %v2864 = vadd.f32 %v2804, %v2859
    %v2865 = vadd.f32 %v2805, %v2859
    %v2866 = vadd.f32 %v2806, %v2859
    %v2867 = vadd.f32 %v2807, %v2859
    %v2868 = vadd.f32 %v2808, %v2859
    %v2869 = vadd.f32 %v2809, %v2859
    %v2870 = vadd.f32 %v2810, %v2859
    %v2871 = vadd.f32 %v2811, %v2859
    %v2872 = vadd.f32 %v2812, %v2859
    %v2873 = vadd.f32 %v2813, %v2859
    %v2874 = vadd.f32 %v2814, %v2859
    %v2875 = vadd.f32 %v2815, %v2859
    %v2876 = vadd.f32 %v2816, %v2859
    %v2877 = vadd.f32 %v2817, %v2859
    %v2878 = vadd.f32 %v2818, %v2859
    %v2879 = vadd.f32 %v2819, %v2859
    %v2880 = vadd.f32 %v2820, %v2859
    %v2881 = vadd.f32 %v2821, %v2859
    %v2882 = vadd.f32 %v2822, %v2859
    %v2883 = vadd.f32 %v2823, %v2859
    %v2884 = vadd.f32 %v2824, %v2859
    %v2885 = vadd.f32 %v2825, %v2859
    %v2886 = vadd.f32 %v2826, %v2859
    %v2887 = vadd.f32 %v2827, %v2859
    %v2888 = vadd.f32 %v2828, %v2859
    %v2889 = vadd.f32 %v2829, %v2859
    %v2890 = vadd.f32 %v2830, %v2859
    %v2891 = vadd.f32 %v2831, %v2859
    %v2892 = vadd.f32 %v2832, %v2859
    %v2893 = vadd.f32 %v2833, %v2859
    %v2894 = vadd.f32 %v2834, %v2859
    %v2895 = vadd.f32 %v2835, %v2859
    %v2896 = vadd.f32 %v2836, %v2859
    %v2897 = vadd.f32 %v2837, %v2859
    %v2898 = vadd.f32 %v2838, %v2859
    %v2899 = vadd.f32 %v2839, %v2859
    %v2900 = vadd.f32 %v2840, %v2859
    %v2901 = vadd.f32 %v2841, %v2859
    %v2902 = vadd.f32 %v2842, %v2859
    %v2903 = vadd.f32 %v2843, %v2859
    %v2904 = vadd.f32 %v2844, %v2859
    %v2905 = vadd.f32 %v2845, %v2859
    %v2906 = vadd.f32 %v2846, %v2859
    %v2907 = vadd.f32 %v2847, %v2859
    %v2908 = vadd.f32 %v2848, %v2859
    %v2909 = vadd.f32 %v2849, %v2859
    %v2910 = vadd.f32 %v2850, %v2859
    %v2911 = vadd.f32 %v2851, %v2859
    %v2912 = vadd.f32 %v2852, %v2859
    %v2913 = vadd.f32 %v2853, %v2859
    %v2914 = vadd.f32 %v2854, %v2859
    %v2915 = vadd.f32 %v2855, %v2859
    %v2916 = vadd.f32 %v2856, %v2859
    %v2917 = vmax.f32 %v2861, 0.0
    %v2918 = vmax.f32 %v2862, 0.0
    %v2919 = vmax.f32 %v2863, 0.0
    %v2920 = vmax.f32 %v2864, 0.0
    %v2921 = vmax.f32 %v2865, 0.0
    %v2922 = vmax.f32 %v2866, 0.0
    %v2923 = vmax.f32 %v2867, 0.0
    %v2924 = vmax.f32 %v2868, 0.0
    %v2925 = vmax.f32 %v2869, 0.0
    %v2926 = vmax.f32 %v2870, 0.0
    %v2927 = vmax.f32 %v2871, 0.0
    %v2928 = vmax.f32 %v2872, 0.0
    %v2929 = vmax.f32 %v2873, 0.0
    %v2930 = vmax.f32 %v2874, 0.0
    %v2931 = vmax.f32 %v2875, 0.0
    %v2932 = vmax.f32 %v2876, 0.0
    %v2933 = vmax.f32 %v2877, 0.0
    %v2934 = vmax.f32 %v2878, 0.0
    %v2935 = vmax.f32 %v2879, 0.0
    %v2936 = vmax.f32 %v2880, 0.0
    %v2937 = vmax.f32 %v2881, 0.0
    %v2938 = vmax.f32 %v2882, 0.0
    %v2939 = vmax.f32 %v2883, 0.0
    %v2940 = vmax.f32 %v2884, 0.0
    %v2941 = vmax.f32 %v2885, 0.0
    %v2942 = vmax.f32 %v2886, 0.0
    %v2943 = vmax.f32 %v2887, 0.0
    %v2944 = vmax.f32 %v2888, 0.0
    %v2945 = vmax.f32 %v2889, 0.0
    %v2946 = vmax.f32 %v2890, 0.0
    %v2947 = vmax.f32 %v2891, 0.0
    %v2948 = vmax.f32 %v2892, 0.0
    %v2949 = vmax.f32 %v2893, 0.0
    %v2950 = vmax.f32 %v2894, 0.0
    %v2951 = vmax.f32 %v2895, 0.0
    %v2952 = vmax.f32 %v2896, 0.0
    %v2953 = vmax.f32 %v2897, 0.0
    %v2954 = vmax.f32 %v2898, 0.0
    %v2955 = vmax.f32 %v2899, 0.0
    %v2956 = vmax.f32 %v2900, 0.0
    %v2957 = vmax.f32 %v2901, 0.0
    %v2958 = vmax.f32 %v2902, 0.0
    %v2959 = vmax.f32 %v2903, 0.0
    %v2960 = vmax.f32 %v2904, 0.0
    %v2961 = vmax.f32 %v2905, 0.0
    %v2962 = vmax.f32 %v2906, 0.0
    %v2963 = vmax.f32 %v2907, 0.0
    %v2964 = vmax.f32 %v2908, 0.0
    %v2965 = vmax.f32 %v2909, 0.0
    %v2966 = vmax.f32 %v2910, 0.0
    %v2967 = vmax.f32 %v2911, 0.0
    %v2968 = vmax.f32 %v2912, 0.0
    %v2969 = vmax.f32 %v2913, 0.0
    %v2970 = vmax.f32 %v2914, 0.0
    %v2971 = vmax.f32 %v2915, 0.0
    %v2972 = vmax.f32 %v2916, 0.0
    %v2973 = vmax.f32 %v2917, %v2919
    %v2974 = vmax.f32 %v2918, %v2920
    %v2975 = vmax.f32 %v2921, %v2923
    %v2976 = vmax.f32 %v2922, %v2924
    %v2977 = vmax.f32 %v2925, %v2927
    %v2978 = vmax.f32 %v2926, %v2928
    %v2979 = vmax.f32 %v2929, %v2931
    %v2980 = vmax.f32 %v2930, %v2932
    %v2981 = vmax.f32 %v2933, %v2935
    %v2982 = vmax.f32 %v2934, %v2936
    %v2983 = vmax.f32 %v2937, %v2939
    %v2984 = vmax.f32 %v2938, %v2940
    %v2985 = vmax.f32 %v2941, %v2943
    %v2986 = vmax.f32 %v2942, %v2944
    %v2987 = vmax.f32 %v2945, %v2947
    %v2988 = vmax.f32 %v2946, %v2948
    %v2989 = vmax.f32 %v2949, %v2951
    %v2990 = vmax.f32 %v2950, %v2952
    %v2991 = vmax.f32 %v2953, %v2955
    %v2992 = vmax.f32 %v2954, %v2956
    %v2993 = vmax.f32 %v2957, %v2959
    %v2994 = vmax.f32 %v2958, %v2960
    %v2995 = vmax.f32 %v2961, %v2963
    %v2996 = vmax.f32 %v2962, %v2964
    %v2997 = vmax.f32 %v2965, %v2967
    %v2998 = vmax.f32 %v2966, %v2968
    %v2999 = vmax.f32 %v2969, %v2971
    %v3000 = vmax.f32 %v2970, %v2972
    %v3001 = vpack.c.bf16 %v2973, %v2973
    %v3002 = vpack.c.bf16 %v2974, %v2974
    %v3003 = vpack.c.bf16 %v2975, %v2975
    %v3004 = vpack.c.bf16 %v2976, %v2976
    %v3005 = vpack.c.bf16 %v2977, %v2977
    %v3006 = vpack.c.bf16 %v2978, %v2978
    %v3007 = vpack.c.bf16 %v2979, %v2979
    %v3008 = vpack.c.bf16 %v2980, %v2980
    %v3009 = vpack.c.bf16 %v2981, %v2981
    %v3010 = vpack.c.bf16 %v2982, %v2982
    %v3011 = vpack.c.bf16 %v2983, %v2983
    %v3012 = vpack.c.bf16 %v2984, %v2984
    %v3013 = vpack.c.bf16 %v2985, %v2985
    %v3014 = vpack.c.bf16 %v2986, %v2986
    %v3015 = vpack.c.bf16 %v2987, %v2987
    %v3016 = vpack.c.bf16 %v2988, %v2988
    %v3017 = vpack.c.bf16 %v2989, %v2989
    %v3018 = vpack.c.bf16 %v2990, %v2990
    %v3019 = vpack.c.bf16 %v2991, %v2991
    %v3020 = vpack.c.bf16 %v2992, %v2992
    %v3021 = vpack.c.bf16 %v2993, %v2993
    %v3022 = vpack.c.bf16 %v2994, %v2994
    %v3023 = vpack.c.bf16 %v2995, %v2995
    %v3024 = vpack.c.bf16 %v2996, %v2996
    %v3025 = vpack.c.bf16 %v2997, %v2997
    %v3026 = vpack.c.bf16 %v2998, %v2998
    %v3027 = vpack.c.bf16 %v2999, %v2999
    %v3028 = vpack.c.bf16 %v3000, %v3000
    %v3029 = vld [vmem:[#allocation2] sm:$0xf]
    %v3030 = vld [vmem:[#allocation2 + $0x4] sm:$0xf]
    %v3031 = vld [vmem:[#allocation2 + $0x8] sm:$0xf]
    %v3032 = vld [vmem:[#allocation2 + $0xc] sm:$0xf]
    %v3033 = vld [vmem:[#allocation2 + $0x10] sm:$0xf]
    %v3034 = vld [vmem:[#allocation2 + $0x14] sm:$0xf]
    %v3035 = vld [vmem:[#allocation2 + $0x18] sm:$0xf]
    %v3036 = vld [vmem:[#allocation2 + $0x1c] sm:$0xf]
    %v3037 = vld [vmem:[#allocation2 + $0x20] sm:$0xf]
    %v3038 = vld [vmem:[#allocation2 + $0x24] sm:$0xf]
    %v3039 = vld [vmem:[#allocation2 + $0x28] sm:$0xf]
    %v3040 = vld [vmem:[#allocation2 + $0x2c] sm:$0xf]
    %v3041 = vld [vmem:[#allocation2 + $0x30] sm:$0xf]
    %v3042 = vld [vmem:[#allocation2 + $0x34] sm:$0xf]
    %v3043 = vld [vmem:[#allocation2 + $0x38] sm:$0xf]
    %v3044 = vld [vmem:[#allocation2 + $0x3c] sm:$0xf]
    %s3045 = scalar_lea.vmem [#allocation2], 64
    %v3046 = vld [vmem:[%s3045] sm:$0xf]
    %v3047 = vld [vmem:[%s3045 + $0x4] sm:$0xf]
    %v3048 = vld [vmem:[%s3045 + $0x8] sm:$0xf]
    %v3049 = vld [vmem:[%s3045 + $0xc] sm:$0xf]
    %v3050 = vld [vmem:[%s3045 + $0x10] sm:$0xf]
    %v3051 = vld [vmem:[%s3045 + $0x14] sm:$0xf]
    %v3052 = vld [vmem:[%s3045 + $0x18] sm:$0xf]
    %v3053 = vld [vmem:[%s3045 + $0x1c] sm:$0xf]
    %v3054 = vld [vmem:[%s3045 + $0x20] sm:$0xf]
    %v3055 = vld [vmem:[%s3045 + $0x24] sm:$0xf]
    %v3056 = vld [vmem:[%s3045 + $0x28] sm:$0xf]
    %v3057 = vld [vmem:[%s3045 + $0x2c] sm:$0xf]
    %v3058 = vld [vmem:[%s3045 + $0x30] sm:$0xf]
    %v3059 = vld [vmem:[%s3045 + $0x34] sm:$0xf]
    %v3060 = vld [vmem:[%s3045 + $0x38] sm:$0xf]
    %v3061 = vld [vmem:[%s3045 + $0x3c] sm:$0xf]
    %s3062 = scalar_lea.vmem [#allocation2], 128
    %v3063 = vld [vmem:[%s3062] sm:$0xf]
    %v3064 = vld [vmem:[%s3062 + $0x4] sm:$0xf]
    %v3065 = vld [vmem:[%s3062 + $0x8] sm:$0xf]
    %v3066 = vld [vmem:[%s3062 + $0xc] sm:$0xf]
    %v3067 = vld [vmem:[%s3062 + $0x10] sm:$0xf]
    %v3068 = vld [vmem:[%s3062 + $0x14] sm:$0xf]
    %v3069 = vld [vmem:[%s3062 + $0x18] sm:$0xf]
    %v3070 = vld [vmem:[%s3062 + $0x1c] sm:$0xf]
    %v3071 = vld [vmem:[%s3062 + $0x20] sm:$0xf]
    %v3072 = vld [vmem:[%s3062 + $0x24] sm:$0xf]
    %v3073 = vld [vmem:[%s3062 + $0x28] sm:$0xf]
    %v3074 = vld [vmem:[%s3062 + $0x2c] sm:$0xf]
    %v3075 = vld [vmem:[%s3062 + $0x30] sm:$0xf]
    %v3076 = vld [vmem:[%s3062 + $0x34] sm:$0xf]
    %v3077 = vld [vmem:[%s3062 + $0x38] sm:$0xf]
    %v3078 = vld [vmem:[%s3062 + $0x3c] sm:$0xf]
    %v3099 = vunpack.c.l.b16 %v3003
    %v3100 = vunpack.c.l.b16 %v3004
    %v3101 = vunpack.c.l.b16 %v3005
    %v3102 = vunpack.c.l.b16 %v3006
    %v3103 = vunpack.c.l.b16 %v3007
    %v3104 = vunpack.c.l.b16 %v3008
    %v3105 = vunpack.c.l.b16 %v3009
    %v3106 = vunpack.c.l.b16 %v3010
    %v3107 = vunpack.c.l.b16 %v3011
    %v3108 = vunpack.c.l.b16 %v3012
    %v3109 = vunpack.c.l.b16 %v3013
    %v3110 = vunpack.c.l.b16 %v3014
    %v3111 = vunpack.c.l.b16 %v3015
    %v3112 = vunpack.c.l.b16 %v3016
    %v3113 = vunpack.c.l.b16 %v3017
    %v3114 = vunpack.c.l.b16 %v3018
    %v3115 = vunpack.c.l.b16 %v3019
    %v3116 = vunpack.c.l.b16 %v3020
    %v3117 = vunpack.c.l.b16 %v3021
    %v3118 = vunpack.c.l.b16 %v3022
    %v3119 = vpack.c.b16 %v3100, %v3099
    %v3120 = vpack.c.b16 %v3102, %v3101
    %v3121 = vpack.c.b16 %v3104, %v3103
    %v3122 = vpack.c.b16 %v3106, %v3105
    %v3123 = vpack.c.b16 %v3108, %v3107
    %v3124 = vpack.c.b16 %v3110, %v3109
    %v3125 = vpack.c.b16 %v3112, %v3111
    %v3126 = vpack.c.b16 %v3114, %v3113
    %v3127 = vpack.c.b16 %v3116, %v3115
    %v3128 = vpack.c.b16 %v3118, %v3117
    %v3155 = vunpack.c.l.b16 %v3063
    %v3156 = vunpack.c.l.b16 %v3064
    %v3157 = vunpack.c.l.b16 %v3065
    %v3158 = vunpack.c.l.b16 %v3066
    %v3159 = vunpack.c.l.b16 %v3067
    %v3160 = vunpack.c.l.b16 %v3068
    %v3161 = vunpack.c.l.b16 %v3069
    %v3162 = vunpack.c.l.b16 %v3070
    %v3163 = vunpack.c.l.b16 %v3071
    %v3164 = vunpack.c.l.b16 %v3072
    %v3165 = vunpack.c.l.b16 %v3073
    %v3166 = vunpack.c.l.b16 %v3074
    %v3167 = vunpack.c.l.b16 %v3075
    %v3168 = vunpack.c.l.b16 %v3076
    %v3169 = vunpack.c.l.b16 %v3077
    %v3170 = vunpack.c.l.b16 %v3078
    %v3171 = vpack.c.b16 %v3156, %v3155
    %v3172 = vpack.c.b16 %v3158, %v3157
    %v3173 = vpack.c.b16 %v3160, %v3159
    %v3174 = vpack.c.b16 %v3162, %v3161
    %v3175 = vpack.c.b16 %v3164, %v3163
    %v3176 = vpack.c.b16 %v3166, %v3165
    %v3177 = vpack.c.b16 %v3168, %v3167
    %v3178 = vpack.c.b16 %v3170, %v3169
    %3187 = vmatpush.bf16.msra.mxu0 %v3178
    %3188 = vmatpush.bf16.msra.mxu0 %v3177
    %3189 = vmatpush.bf16.msra.mxu0 %v3176
    %3190 = vmatpush.bf16.msra.mxu0 %v3175
    %3191 = vmatpush.bf16.msra.mxu0 %v3174
    %3192 = vmatpush.bf16.msra.mxu0 %v3173
    %3193 = vmatpush.bf16.msra.mxu0 %v3172
    %3194 = vmatpush.bf16.msra.mxu0 %v3171
    %3195 = vmatmul.bf16.gmra.mxu0 %v3119
    %v3196 = vpop.f32.mrf.mxu0
    %v3197 = vadd.f32 0.0, %v3196
    %v3198 = vpop.f32.mrf.mxu0
    %v3199 = vadd.f32 0.0, %v3198
    %3200 = vmatmul.bf16.gmra.mxu0 %v3120
    %v3201 = vpop.f32.mrf.mxu0
    %v3202 = vadd.f32 0.0, %v3201
    %v3203 = vpop.f32.mrf.mxu0
    %v3204 = vadd.f32 0.0, %v3203
    %3205 = vmatmul.bf16.gmra.mxu0 %v3121
    %v3206 = vpop.f32.mrf.mxu0
    %v3207 = vadd.f32 0.0, %v3206
    %v3208 = vpop.f32.mrf.mxu0
    %v3209 = vadd.f32 0.0, %v3208
    %3210 = vmatmul.bf16.gmra.mxu0 %v3122
    %v3211 = vpop.f32.mrf.mxu0
    %v3212 = vadd.f32 0.0, %v3211
    %v3213 = vpop.f32.mrf.mxu0
    %v3214 = vadd.f32 0.0, %v3213
    %3215 = vmatmul.bf16.gmra.mxu0 %v3123
    %v3216 = vpop.f32.mrf.mxu0
    %v3217 = vadd.f32 0.0, %v3216
    %v3218 = vpop.f32.mrf.mxu0
    %v3219 = vadd.f32 0.0, %v3218
    %3220 = vmatmul.bf16.gmra.mxu0 %v3124
    %v3221 = vpop.f32.mrf.mxu0
    %v3222 = vadd.f32 0.0, %v3221
    %v3223 = vpop.f32.mrf.mxu0
    %v3224 = vadd.f32 0.0, %v3223
    %3225 = vmatmul.bf16.gmra.mxu0 %v3125
    %v3226 = vpop.f32.mrf.mxu0
    %v3227 = vadd.f32 0.0, %v3226
    %v3228 = vpop.f32.mrf.mxu0
    %v3229 = vadd.f32 0.0, %v3228
    %3230 = vmatmul.bf16.gmra.mxu0 %v3126
    %v3231 = vpop.f32.mrf.mxu0
    %v3232 = vadd.f32 0.0, %v3231
    %v3233 = vpop.f32.mrf.mxu0
    %v3234 = vadd.f32 0.0, %v3233
    %3235 = vmatmul.bf16.gmra.mxu0 %v3127
    %v3236 = vpop.f32.mrf.mxu0
    %v3237 = vadd.f32 0.0, %v3236
    %v3238 = vpop.f32.mrf.mxu0
    %v3239 = vadd.f32 0.0, %v3238
    %3240 = vmatmul.bf16.gmra.mxu0 %v3128
    %v3241 = vpop.f32.mrf.mxu0
    %v3242 = vadd.f32 0.0, %v3241
    %v3243 = vpop.f32.mrf.mxu0
    %v3244 = vadd.f32 0.0, %v3243
    %3245 = vdwg.mxu0
    %v3248 = vunpack.c.l.b16 %v3001
    %v3249 = vunpack.c.l.b16 %v3002
    %v3250 = vpack.c.b16 %v3249, %v3248
    %v3268 = vunpack.c.l.b16 %v3029
    %v3269 = vunpack.c.l.b16 %v3030
    %v3270 = vunpack.c.l.b16 %v3031
    %v3271 = vunpack.c.l.b16 %v3032
    %v3272 = vunpack.c.l.b16 %v3033
    %v3273 = vunpack.c.l.b16 %v3034
    %v3274 = vunpack.c.l.b16 %v3035
    %v3275 = vunpack.c.l.b16 %v3036
    %v3276 = vunpack.c.l.b16 %v3037
    %v3277 = vunpack.c.l.b16 %v3038
    %v3278 = vunpack.c.l.b16 %v3039
    %v3279 = vunpack.c.l.b16 %v3040
    %v3280 = vunpack.c.l.b16 %v3041
    %v3281 = vunpack.c.l.b16 %v3042
    %v3282 = vunpack.c.l.b16 %v3043
    %v3283 = vunpack.c.l.b16 %v3044
    %v3284 = vpack.c.b16 %v3269, %v3268
    %v3285 = vpack.c.b16 %v3271, %v3270
    %v3286 = vpack.c.b16 %v3273, %v3272
    %v3287 = vpack.c.b16 %v3275, %v3274
    %v3288 = vpack.c.b16 %v3277, %v3276
    %v3289 = vpack.c.b16 %v3279, %v3278
    %v3290 = vpack.c.b16 %v3281, %v3280
    %v3291 = vpack.c.b16 %v3283, %v3282
    %3300 = vmatpush.bf16.msra.mxu0 %v3291
    %3301 = vmatpush.bf16.msra.mxu0 %v3290
    %3302 = vmatpush.bf16.msra.mxu0 %v3289
    %3303 = vmatpush.bf16.msra.mxu0 %v3288
    %3304 = vmatpush.bf16.msra.mxu0 %v3287
    %3305 = vmatpush.bf16.msra.mxu0 %v3286
    %3306 = vmatpush.bf16.msra.mxu0 %v3285
    %3307 = vmatpush.bf16.msra.mxu0 %v3284
    %3308 = vmatmul.bf16.gmra.mxu0 %v3250
    %v3309 = vpop.f32.mrf.mxu0
    %v3310 = vadd.f32 %v3197, %v3309
    %v3311 = vpop.f32.mrf.mxu0
    %v3312 = vadd.f32 %v3199, %v3311
    %3313 = vmatmul.bf16.gmra.mxu0 %v3119
    %v3314 = vpop.f32.mrf.mxu0
    %v3315 = vadd.f32 %v3202, %v3314
    %v3316 = vpop.f32.mrf.mxu0
    %v3317 = vadd.f32 %v3204, %v3316
    %3318 = vmatmul.bf16.gmra.mxu0 %v3120
    %v3319 = vpop.f32.mrf.mxu0
    %v3320 = vadd.f32 %v3207, %v3319
    %v3321 = vpop.f32.mrf.mxu0
    %v3322 = vadd.f32 %v3209, %v3321
    %3323 = vmatmul.bf16.gmra.mxu0 %v3121
    %v3324 = vpop.f32.mrf.mxu0
    %v3325 = vadd.f32 %v3212, %v3324
    %v3326 = vpop.f32.mrf.mxu0
    %v3327 = vadd.f32 %v3214, %v3326
    %3328 = vmatmul.bf16.gmra.mxu0 %v3122
    %v3329 = vpop.f32.mrf.mxu0
    %v3330 = vadd.f32 %v3217, %v3329
    %v3331 = vpop.f32.mrf.mxu0
    %v3332 = vadd.f32 %v3219, %v3331
    %3333 = vmatmul.bf16.gmra.mxu0 %v3123
    %v3334 = vpop.f32.mrf.mxu0
    %v3335 = vadd.f32 %v3222, %v3334
    %v3336 = vpop.f32.mrf.mxu0
    %v3337 = vadd.f32 %v3224, %v3336
    %3338 = vmatmul.bf16.gmra.mxu0 %v3124
    %v3339 = vpop.f32.mrf.mxu0
    %v3340 = vadd.f32 %v3227, %v3339
    %v3341 = vpop.f32.mrf.mxu0
    %v3342 = vadd.f32 %v3229, %v3341
    %3343 = vmatmul.bf16.gmra.mxu0 %v3125
    %v3344 = vpop.f32.mrf.mxu0
    %v3345 = vadd.f32 %v3232, %v3344
    %v3346 = vpop.f32.mrf.mxu0
    %v3347 = vadd.f32 %v3234, %v3346
    %3348 = vmatmul.bf16.gmra.mxu0 %v3126
    %v3349 = vpop.f32.mrf.mxu0
    %v3350 = vadd.f32 %v3237, %v3349
    %v3351 = vpop.f32.mrf.mxu0
    %v3352 = vadd.f32 %v3239, %v3351
    %3353 = vmatmul.bf16.gmra.mxu0 %v3127
    %v3354 = vpop.f32.mrf.mxu0
    %v3355 = vadd.f32 %v3242, %v3354
    %v3356 = vpop.f32.mrf.mxu0
    %v3357 = vadd.f32 %v3244, %v3356
    %3358 = vdwg.mxu0
    %s3359 = scalar_lea.vmem [#allocation2], 192
    %v3360 = vld [vmem:[%s3359] sm:$0xf]
    %v3361 = vld [vmem:[%s3359 + $0x4] sm:$0xf]
    %v3362 = vld [vmem:[%s3359 + $0x8] sm:$0xf]
    %v3363 = vld [vmem:[%s3359 + $0xc] sm:$0xf]
    %v3364 = vld [vmem:[%s3359 + $0x10] sm:$0xf]
    %v3365 = vld [vmem:[%s3359 + $0x14] sm:$0xf]
    %v3366 = vld [vmem:[%s3359 + $0x18] sm:$0xf]
    %v3367 = vld [vmem:[%s3359 + $0x1c] sm:$0xf]
    %v3368 = vld [vmem:[%s3359 + $0x20] sm:$0xf]
    %v3369 = vld [vmem:[%s3359 + $0x24] sm:$0xf]
    %v3370 = vld [vmem:[%s3359 + $0x28] sm:$0xf]
    %v3371 = vld [vmem:[%s3359 + $0x2c] sm:$0xf]
    %v3372 = vld [vmem:[%s3359 + $0x30] sm:$0xf]
    %v3373 = vld [vmem:[%s3359 + $0x34] sm:$0xf]
    %v3374 = vld [vmem:[%s3359 + $0x38] sm:$0xf]
    %v3375 = vld [vmem:[%s3359 + $0x3c] sm:$0xf]
    %v3392 = vunpack.c.l.b16 %v3360
    %v3393 = vunpack.c.l.b16 %v3361
    %v3394 = vunpack.c.l.b16 %v3362
    %v3395 = vunpack.c.l.b16 %v3363
    %v3396 = vunpack.c.l.b16 %v3364
    %v3397 = vunpack.c.l.b16 %v3365
    %v3398 = vunpack.c.l.b16 %v3366
    %v3399 = vunpack.c.l.b16 %v3367
    %v3400 = vunpack.c.l.b16 %v3368
    %v3401 = vunpack.c.l.b16 %v3369
    %v3402 = vunpack.c.l.b16 %v3370
    %v3403 = vunpack.c.l.b16 %v3371
    %v3404 = vunpack.c.l.b16 %v3372
    %v3405 = vunpack.c.l.b16 %v3373
    %v3406 = vunpack.c.l.b16 %v3374
    %v3407 = vunpack.c.l.b16 %v3375
    %v3408 = vpack.c.b16 %v3393, %v3392
    %v3409 = vpack.c.b16 %v3395, %v3394
    %v3410 = vpack.c.b16 %v3397, %v3396
    %v3411 = vpack.c.b16 %v3399, %v3398
    %v3412 = vpack.c.b16 %v3401, %v3400
    %v3413 = vpack.c.b16 %v3403, %v3402
    %v3414 = vpack.c.b16 %v3405, %v3404
    %v3415 = vpack.c.b16 %v3407, %v3406
    %3424 = vmatpush.bf16.msra.mxu0 %v3415
    %3425 = vmatpush.bf16.msra.mxu0 %v3414
    %3426 = vmatpush.bf16.msra.mxu0 %v3413
    %3427 = vmatpush.bf16.msra.mxu0 %v3412
    %3428 = vmatpush.bf16.msra.mxu0 %v3411
    %3429 = vmatpush.bf16.msra.mxu0 %v3410
    %3430 = vmatpush.bf16.msra.mxu0 %v3409
    %3431 = vmatpush.bf16.msra.mxu0 %v3408
    %3432 = vmatmul.bf16.gmra.mxu0 %v3119
    %v3433 = vpop.f32.mrf.mxu0
    %v3434 = vadd.f32 0.0, %v3433
    %v3435 = vpop.f32.mrf.mxu0
    %v3436 = vadd.f32 0.0, %v3435
    %3437 = vmatmul.bf16.gmra.mxu0 %v3120
    %v3438 = vpop.f32.mrf.mxu0
    %v3439 = vadd.f32 0.0, %v3438
    %v3440 = vpop.f32.mrf.mxu0
    %v3441 = vadd.f32 0.0, %v3440
    %3442 = vmatmul.bf16.gmra.mxu0 %v3121
    %v3443 = vpop.f32.mrf.mxu0
    %v3444 = vadd.f32 0.0, %v3443
    %v3445 = vpop.f32.mrf.mxu0
    %v3446 = vadd.f32 0.0, %v3445
    %3447 = vmatmul.bf16.gmra.mxu0 %v3122
    %v3448 = vpop.f32.mrf.mxu0
    %v3449 = vadd.f32 0.0, %v3448
    %v3450 = vpop.f32.mrf.mxu0
    %v3451 = vadd.f32 0.0, %v3450
    %3452 = vmatmul.bf16.gmra.mxu0 %v3123
    %v3453 = vpop.f32.mrf.mxu0
    %v3454 = vadd.f32 0.0, %v3453
    %v3455 = vpop.f32.mrf.mxu0
    %v3456 = vadd.f32 0.0, %v3455
    %3457 = vmatmul.bf16.gmra.mxu0 %v3124
    %v3458 = vpop.f32.mrf.mxu0
    %v3459 = vadd.f32 0.0, %v3458
    %v3460 = vpop.f32.mrf.mxu0
    %v3461 = vadd.f32 0.0, %v3460
    %3462 = vmatmul.bf16.gmra.mxu0 %v3125
    %v3463 = vpop.f32.mrf.mxu0
    %v3464 = vadd.f32 0.0, %v3463
    %v3465 = vpop.f32.mrf.mxu0
    %v3466 = vadd.f32 0.0, %v3465
    %3467 = vmatmul.bf16.gmra.mxu0 %v3126
    %v3468 = vpop.f32.mrf.mxu0
    %v3469 = vadd.f32 0.0, %v3468
    %v3470 = vpop.f32.mrf.mxu0
    %v3471 = vadd.f32 0.0, %v3470
    %3472 = vmatmul.bf16.gmra.mxu0 %v3127
    %v3473 = vpop.f32.mrf.mxu0
    %v3474 = vadd.f32 0.0, %v3473
    %v3475 = vpop.f32.mrf.mxu0
    %v3476 = vadd.f32 0.0, %v3475
    %3477 = vmatmul.bf16.gmra.mxu0 %v3128
    %v3478 = vpop.f32.mrf.mxu0
    %v3479 = vadd.f32 0.0, %v3478
    %v3480 = vpop.f32.mrf.mxu0
    %v3481 = vadd.f32 0.0, %v3480
    %3482 = vdwg.mxu0
    %v3499 = vunpack.c.l.b16 %v3046
    %v3500 = vunpack.c.l.b16 %v3047
    %v3501 = vunpack.c.l.b16 %v3048
    %v3502 = vunpack.c.l.b16 %v3049
    %v3503 = vunpack.c.l.b16 %v3050
    %v3504 = vunpack.c.l.b16 %v3051
    %v3505 = vunpack.c.l.b16 %v3052
    %v3506 = vunpack.c.l.b16 %v3053
    %v3507 = vunpack.c.l.b16 %v3054
    %v3508 = vunpack.c.l.b16 %v3055
    %v3509 = vunpack.c.l.b16 %v3056
    %v3510 = vunpack.c.l.b16 %v3057
    %v3511 = vunpack.c.l.b16 %v3058
    %v3512 = vunpack.c.l.b16 %v3059
    %v3513 = vunpack.c.l.b16 %v3060
    %v3514 = vunpack.c.l.b16 %v3061
    %v3515 = vpack.c.b16 %v3500, %v3499
    %v3516 = vpack.c.b16 %v3502, %v3501
    %v3517 = vpack.c.b16 %v3504, %v3503
    %v3518 = vpack.c.b16 %v3506, %v3505
    %v3519 = vpack.c.b16 %v3508, %v3507
    %v3520 = vpack.c.b16 %v3510, %v3509
    %v3521 = vpack.c.b16 %v3512, %v3511
    %v3522 = vpack.c.b16 %v3514, %v3513
    %3531 = vmatpush.bf16.msra.mxu0 %v3522
    %3532 = vmatpush.bf16.msra.mxu0 %v3521
    %3533 = vmatpush.bf16.msra.mxu0 %v3520
    %3534 = vmatpush.bf16.msra.mxu0 %v3519
    %3535 = vmatpush.bf16.msra.mxu0 %v3518
    %3536 = vmatpush.bf16.msra.mxu0 %v3517
    %3537 = vmatpush.bf16.msra.mxu0 %v3516
    %3538 = vmatpush.bf16.msra.mxu0 %v3515
    %3539 = vmatmul.bf16.gmra.mxu0 %v3250
    %v3540 = vpop.f32.mrf.mxu0
    %v3541 = vadd.f32 %v3434, %v3540
    %v3542 = vpop.f32.mrf.mxu0
    %v3543 = vadd.f32 %v3436, %v3542
    %3544 = vmatmul.bf16.gmra.mxu0 %v3119
    %v3545 = vpop.f32.mrf.mxu0
    %v3546 = vadd.f32 %v3439, %v3545
    %v3547 = vpop.f32.mrf.mxu0
    %v3548 = vadd.f32 %v3441, %v3547
    %3549 = vmatmul.bf16.gmra.mxu0 %v3120
    %v3550 = vpop.f32.mrf.mxu0
    %v3551 = vadd.f32 %v3444, %v3550
    %v3552 = vpop.f32.mrf.mxu0
    %v3553 = vadd.f32 %v3446, %v3552
    %3554 = vmatmul.bf16.gmra.mxu0 %v3121
    %v3555 = vpop.f32.mrf.mxu0
    %v3556 = vadd.f32 %v3449, %v3555
    %v3557 = vpop.f32.mrf.mxu0
    %v3558 = vadd.f32 %v3451, %v3557
    %3559 = vmatmul.bf16.gmra.mxu0 %v3122
    %v3560 = vpop.f32.mrf.mxu0
    %v3561 = vadd.f32 %v3454, %v3560
    %v3562 = vpop.f32.mrf.mxu0
    %v3563 = vadd.f32 %v3456, %v3562
    %3564 = vmatmul.bf16.gmra.mxu0 %v3123
    %v3565 = vpop.f32.mrf.mxu0
    %v3566 = vadd.f32 %v3459, %v3565
    %v3567 = vpop.f32.mrf.mxu0
    %v3568 = vadd.f32 %v3461, %v3567
    %3569 = vmatmul.bf16.gmra.mxu0 %v3124
    %v3570 = vpop.f32.mrf.mxu0
    %v3571 = vadd.f32 %v3464, %v3570
    %v3572 = vpop.f32.mrf.mxu0
    %v3573 = vadd.f32 %v3466, %v3572
    %3574 = vmatmul.bf16.gmra.mxu0 %v3125
    %v3575 = vpop.f32.mrf.mxu0
    %v3576 = vadd.f32 %v3469, %v3575
    %v3577 = vpop.f32.mrf.mxu0
    %v3578 = vadd.f32 %v3471, %v3577
    %3579 = vmatmul.bf16.gmra.mxu0 %v3126
    %v3580 = vpop.f32.mrf.mxu0
    %v3581 = vadd.f32 %v3474, %v3580
    %v3582 = vpop.f32.mrf.mxu0
    %v3583 = vadd.f32 %v3476, %v3582
    %3584 = vmatmul.bf16.gmra.mxu0 %v3127
    %v3585 = vpop.f32.mrf.mxu0
    %v3586 = vadd.f32 %v3479, %v3585
    %v3587 = vpop.f32.mrf.mxu0
    %v3588 = vadd.f32 %v3481, %v3587
    %3589 = vdwg.mxu0
    %s3590 = scalar_lea.vmem [#allocation2], 256
    %v3591 = vld [vmem:[%s3590] sm:$0xf]
    %v3592 = vld [vmem:[%s3590 + $0x4] sm:$0xf]
    %v3593 = vld [vmem:[%s3590 + $0x8] sm:$0xf]
    %v3594 = vld [vmem:[%s3590 + $0xc] sm:$0xf]
    %v3595 = vld [vmem:[%s3590 + $0x10] sm:$0xf]
    %v3596 = vld [vmem:[%s3590 + $0x14] sm:$0xf]
    %v3597 = vld [vmem:[%s3590 + $0x18] sm:$0xf]
    %v3598 = vld [vmem:[%s3590 + $0x1c] sm:$0xf]
    %v3599 = vld [vmem:[%s3590 + $0x20] sm:$0xf]
    %v3600 = vld [vmem:[%s3590 + $0x24] sm:$0xf]
    %v3601 = vld [vmem:[%s3590 + $0x28] sm:$0xf]
    %v3602 = vld [vmem:[%s3590 + $0x2c] sm:$0xf]
    %v3603 = vld [vmem:[%s3590 + $0x30] sm:$0xf]
    %v3604 = vld [vmem:[%s3590 + $0x34] sm:$0xf]
    %v3605 = vld [vmem:[%s3590 + $0x38] sm:$0xf]
    %v3606 = vld [vmem:[%s3590 + $0x3c] sm:$0xf]
    %v3609 = vunpack.c.l.b16 %v3023
    %v3610 = vunpack.c.l.b16 %v3024
    %v3611 = vpack.c.b16 %v3610, %v3609
    %v3629 = vunpack.c.l.b16 %v3591
    %v3630 = vunpack.c.l.b16 %v3592
    %v3631 = vunpack.c.l.b16 %v3593
    %v3632 = vunpack.c.l.b16 %v3594
    %v3633 = vunpack.c.l.b16 %v3595
    %v3634 = vunpack.c.l.b16 %v3596
    %v3635 = vunpack.c.l.b16 %v3597
    %v3636 = vunpack.c.l.b16 %v3598
    %v3637 = vunpack.c.l.b16 %v3599
    %v3638 = vunpack.c.l.b16 %v3600
    %v3639 = vunpack.c.l.b16 %v3601
    %v3640 = vunpack.c.l.b16 %v3602
    %v3641 = vunpack.c.l.b16 %v3603
    %v3642 = vunpack.c.l.b16 %v3604
    %v3643 = vunpack.c.l.b16 %v3605
    %v3644 = vunpack.c.l.b16 %v3606
    %v3645 = vpack.c.b16 %v3630, %v3629
    %v3646 = vpack.c.b16 %v3632, %v3631
    %v3647 = vpack.c.b16 %v3634, %v3633
    %v3648 = vpack.c.b16 %v3636, %v3635
    %v3649 = vpack.c.b16 %v3638, %v3637
    %v3650 = vpack.c.b16 %v3640, %v3639
    %v3651 = vpack.c.b16 %v3642, %v3641
    %v3652 = vpack.c.b16 %v3644, %v3643
    %3661 = vmatpush.bf16.msra.mxu0 %v3652
    %3662 = vmatpush.bf16.msra.mxu0 %v3651
    %3663 = vmatpush.bf16.msra.mxu0 %v3650
    %3664 = vmatpush.bf16.msra.mxu0 %v3649
    %3665 = vmatpush.bf16.msra.mxu0 %v3648
    %3666 = vmatpush.bf16.msra.mxu0 %v3647
    %3667 = vmatpush.bf16.msra.mxu0 %v3646
    %3668 = vmatpush.bf16.msra.mxu0 %v3645
    %3669 = vmatmul.bf16.gmra.mxu0 %v3120
    %v3670 = vpop.f32.mrf.mxu0
    %v3671 = vadd.f32 0.0, %v3670
    %v3672 = vpop.f32.mrf.mxu0
    %v3673 = vadd.f32 0.0, %v3672
    %3674 = vmatmul.bf16.gmra.mxu0 %v3121
    %v3675 = vpop.f32.mrf.mxu0
    %v3676 = vadd.f32 0.0, %v3675
    %v3677 = vpop.f32.mrf.mxu0
    %v3678 = vadd.f32 0.0, %v3677
    %3679 = vmatmul.bf16.gmra.mxu0 %v3122
    %v3680 = vpop.f32.mrf.mxu0
    %v3681 = vadd.f32 0.0, %v3680
    %v3682 = vpop.f32.mrf.mxu0
    %v3683 = vadd.f32 0.0, %v3682
    %3684 = vmatmul.bf16.gmra.mxu0 %v3123
    %v3685 = vpop.f32.mrf.mxu0
    %v3686 = vadd.f32 0.0, %v3685
    %v3687 = vpop.f32.mrf.mxu0
    %v3688 = vadd.f32 0.0, %v3687
    %3689 = vmatmul.bf16.gmra.mxu0 %v3124
    %v3690 = vpop.f32.mrf.mxu0
    %v3691 = vadd.f32 0.0, %v3690
    %v3692 = vpop.f32.mrf.mxu0
    %v3693 = vadd.f32 0.0, %v3692
    %3694 = vmatmul.bf16.gmra.mxu0 %v3125
    %v3695 = vpop.f32.mrf.mxu0
    %v3696 = vadd.f32 0.0, %v3695
    %v3697 = vpop.f32.mrf.mxu0
    %v3698 = vadd.f32 0.0, %v3697
    %3699 = vmatmul.bf16.gmra.mxu0 %v3126
    %v3700 = vpop.f32.mrf.mxu0
    %v3701 = vadd.f32 0.0, %v3700
    %v3702 = vpop.f32.mrf.mxu0
    %v3703 = vadd.f32 0.0, %v3702
    %3704 = vmatmul.bf16.gmra.mxu0 %v3127
    %v3705 = vpop.f32.mrf.mxu0
    %v3706 = vadd.f32 0.0, %v3705
    %v3707 = vpop.f32.mrf.mxu0
    %v3708 = vadd.f32 0.0, %v3707
    %3709 = vmatmul.bf16.gmra.mxu0 %v3128
    %v3710 = vpop.f32.mrf.mxu0
    %v3711 = vadd.f32 0.0, %v3710
    %v3712 = vpop.f32.mrf.mxu0
    %v3713 = vadd.f32 0.0, %v3712
    %3714 = vmatmul.bf16.gmra.mxu0 %v3611
    %v3715 = vpop.f32.mrf.mxu0
    %v3716 = vadd.f32 0.0, %v3715
    %v3717 = vpop.f32.mrf.mxu0
    %v3718 = vadd.f32 0.0, %v3717
    %3719 = vdwg.mxu0
    %v3720 = vadd.f32 %v3310, %v3671
    %v3721 = vadd.f32 %v3312, %v3673
    %v3722 = vadd.f32 %v3315, %v3676
    %v3723 = vadd.f32 %v3317, %v3678
    %v3724 = vadd.f32 %v3320, %v3681
    %v3725 = vadd.f32 %v3322, %v3683
    %v3726 = vadd.f32 %v3325, %v3686
    %v3727 = vadd.f32 %v3327, %v3688
    %v3728 = vadd.f32 %v3330, %v3691
    %v3729 = vadd.f32 %v3332, %v3693
    %v3730 = vadd.f32 %v3335, %v3696
    %v3731 = vadd.f32 %v3337, %v3698
    %v3732 = vadd.f32 %v3340, %v3701
    %v3733 = vadd.f32 %v3342, %v3703
    %v3734 = vadd.f32 %v3345, %v3706
    %v3735 = vadd.f32 %v3347, %v3708
    %v3736 = vadd.f32 %v3350, %v3711
    %v3737 = vadd.f32 %v3352, %v3713
    %v3738 = vadd.f32 %v3355, %v3716
    %v3739 = vadd.f32 %v3357, %v3718
    %s3740 = scalar_lea.vmem [#allocation2], 320
    %v3741 = vld [vmem:[%s3740] sm:$0xf]
    %v3742 = vld [vmem:[%s3740 + $0x4] sm:$0xf]
    %v3743 = vld [vmem:[%s3740 + $0x8] sm:$0xf]
    %v3744 = vld [vmem:[%s3740 + $0xc] sm:$0xf]
    %v3745 = vld [vmem:[%s3740 + $0x10] sm:$0xf]
    %v3746 = vld [vmem:[%s3740 + $0x14] sm:$0xf]
    %v3747 = vld [vmem:[%s3740 + $0x18] sm:$0xf]
    %v3748 = vld [vmem:[%s3740 + $0x1c] sm:$0xf]
    %v3749 = vld [vmem:[%s3740 + $0x20] sm:$0xf]
    %v3750 = vld [vmem:[%s3740 + $0x24] sm:$0xf]
    %v3751 = vld [vmem:[%s3740 + $0x28] sm:$0xf]
    %v3752 = vld [vmem:[%s3740 + $0x2c] sm:$0xf]
    %v3753 = vld [vmem:[%s3740 + $0x30] sm:$0xf]
    %v3754 = vld [vmem:[%s3740 + $0x34] sm:$0xf]
    %v3755 = vld [vmem:[%s3740 + $0x38] sm:$0xf]
    %v3756 = vld [vmem:[%s3740 + $0x3c] sm:$0xf]
    %v3773 = vunpack.c.l.b16 %v3741
    %v3774 = vunpack.c.l.b16 %v3742
    %v3775 = vunpack.c.l.b16 %v3743
    %v3776 = vunpack.c.l.b16 %v3744
    %v3777 = vunpack.c.l.b16 %v3745
    %v3778 = vunpack.c.l.b16 %v3746
    %v3779 = vunpack.c.l.b16 %v3747
    %v3780 = vunpack.c.l.b16 %v3748
    %v3781 = vunpack.c.l.b16 %v3749
    %v3782 = vunpack.c.l.b16 %v3750
    %v3783 = vunpack.c.l.b16 %v3751
    %v3784 = vunpack.c.l.b16 %v3752
    %v3785 = vunpack.c.l.b16 %v3753
    %v3786 = vunpack.c.l.b16 %v3754
    %v3787 = vunpack.c.l.b16 %v3755
    %v3788 = vunpack.c.l.b16 %v3756
    %v3789 = vpack.c.b16 %v3774, %v3773
    %v3790 = vpack.c.b16 %v3776, %v3775
    %v3791 = vpack.c.b16 %v3778, %v3777
    %v3792 = vpack.c.b16 %v3780, %v3779
    %v3793 = vpack.c.b16 %v3782, %v3781
    %v3794 = vpack.c.b16 %v3784, %v3783
    %v3795 = vpack.c.b16 %v3786, %v3785
    %v3796 = vpack.c.b16 %v3788, %v3787
    %3805 = vmatpush.bf16.msra.mxu0 %v3796
    %3806 = vmatpush.bf16.msra.mxu0 %v3795
    %3807 = vmatpush.bf16.msra.mxu0 %v3794
    %3808 = vmatpush.bf16.msra.mxu0 %v3793
    %3809 = vmatpush.bf16.msra.mxu0 %v3792
    %3810 = vmatpush.bf16.msra.mxu0 %v3791
    %3811 = vmatpush.bf16.msra.mxu0 %v3790
    %3812 = vmatpush.bf16.msra.mxu0 %v3789
    %3813 = vmatmul.bf16.gmra.mxu0 %v3120
    %v3814 = vpop.f32.mrf.mxu0
    %v3815 = vadd.f32 0.0, %v3814
    %v3816 = vpop.f32.mrf.mxu0
    %v3817 = vadd.f32 0.0, %v3816
    %3818 = vmatmul.bf16.gmra.mxu0 %v3121
    %v3819 = vpop.f32.mrf.mxu0
    %v3820 = vadd.f32 0.0, %v3819
    %v3821 = vpop.f32.mrf.mxu0
    %v3822 = vadd.f32 0.0, %v3821
    %3823 = vmatmul.bf16.gmra.mxu0 %v3122
    %v3824 = vpop.f32.mrf.mxu0
    %v3825 = vadd.f32 0.0, %v3824
    %v3826 = vpop.f32.mrf.mxu0
    %v3827 = vadd.f32 0.0, %v3826
    %3828 = vmatmul.bf16.gmra.mxu0 %v3123
    %v3829 = vpop.f32.mrf.mxu0
    %v3830 = vadd.f32 0.0, %v3829
    %v3831 = vpop.f32.mrf.mxu0
    %v3832 = vadd.f32 0.0, %v3831
    %3833 = vmatmul.bf16.gmra.mxu0 %v3124
    %v3834 = vpop.f32.mrf.mxu0
    %v3835 = vadd.f32 0.0, %v3834
    %v3836 = vpop.f32.mrf.mxu0
    %v3837 = vadd.f32 0.0, %v3836
    %3838 = vmatmul.bf16.gmra.mxu0 %v3125
    %v3839 = vpop.f32.mrf.mxu0
    %v3840 = vadd.f32 0.0, %v3839
    %v3841 = vpop.f32.mrf.mxu0
    %v3842 = vadd.f32 0.0, %v3841
    %3843 = vmatmul.bf16.gmra.mxu0 %v3126
    %v3844 = vpop.f32.mrf.mxu0
    %v3845 = vadd.f32 0.0, %v3844
    %v3846 = vpop.f32.mrf.mxu0
    %v3847 = vadd.f32 0.0, %v3846
    %3848 = vmatmul.bf16.gmra.mxu0 %v3127
    %v3849 = vpop.f32.mrf.mxu0
    %v3850 = vadd.f32 0.0, %v3849
    %v3851 = vpop.f32.mrf.mxu0
    %v3852 = vadd.f32 0.0, %v3851
    %3853 = vmatmul.bf16.gmra.mxu0 %v3128
    %v3854 = vpop.f32.mrf.mxu0
    %v3855 = vadd.f32 0.0, %v3854
    %v3856 = vpop.f32.mrf.mxu0
    %v3857 = vadd.f32 0.0, %v3856
    %3858 = vmatmul.bf16.gmra.mxu0 %v3611
    %v3859 = vpop.f32.mrf.mxu0
    %v3860 = vadd.f32 0.0, %v3859
    %v3861 = vpop.f32.mrf.mxu0
    %v3862 = vadd.f32 0.0, %v3861
    %3863 = vdwg.mxu0
    %v3864 = vadd.f32 %v3541, %v3815
    %v3865 = vadd.f32 %v3543, %v3817
    %v3866 = vadd.f32 %v3546, %v3820
    %v3867 = vadd.f32 %v3548, %v3822
    %v3868 = vadd.f32 %v3551, %v3825
    %v3869 = vadd.f32 %v3553, %v3827
    %v3870 = vadd.f32 %v3556, %v3830
    %v3871 = vadd.f32 %v3558, %v3832
    %v3872 = vadd.f32 %v3561, %v3835
    %v3873 = vadd.f32 %v3563, %v3837
    %v3874 = vadd.f32 %v3566, %v3840
    %v3875 = vadd.f32 %v3568, %v3842
    %v3876 = vadd.f32 %v3571, %v3845
    %v3877 = vadd.f32 %v3573, %v3847
    %v3878 = vadd.f32 %v3576, %v3850
    %v3879 = vadd.f32 %v3578, %v3852
    %v3880 = vadd.f32 %v3581, %v3855
    %v3881 = vadd.f32 %v3583, %v3857
    %v3882 = vadd.f32 %v3586, %v3860
    %v3883 = vadd.f32 %v3588, %v3862
    %s3884 = scalar_lea.vmem [#allocation2], 384
    %v3885 = vld [vmem:[%s3884] sm:$0xf]
    %v3886 = vld [vmem:[%s3884 + $0x4] sm:$0xf]
    %v3887 = vld [vmem:[%s3884 + $0x8] sm:$0xf]
    %v3888 = vld [vmem:[%s3884 + $0xc] sm:$0xf]
    %v3889 = vld [vmem:[%s3884 + $0x10] sm:$0xf]
    %v3890 = vld [vmem:[%s3884 + $0x14] sm:$0xf]
    %v3891 = vld [vmem:[%s3884 + $0x18] sm:$0xf]
    %v3892 = vld [vmem:[%s3884 + $0x1c] sm:$0xf]
    %v3893 = vld [vmem:[%s3884 + $0x20] sm:$0xf]
    %v3894 = vld [vmem:[%s3884 + $0x24] sm:$0xf]
    %v3895 = vld [vmem:[%s3884 + $0x28] sm:$0xf]
    %v3896 = vld [vmem:[%s3884 + $0x2c] sm:$0xf]
    %v3897 = vld [vmem:[%s3884 + $0x30] sm:$0xf]
    %v3898 = vld [vmem:[%s3884 + $0x34] sm:$0xf]
    %v3899 = vld [vmem:[%s3884 + $0x38] sm:$0xf]
    %v3900 = vld [vmem:[%s3884 + $0x3c] sm:$0xf]
    %v3903 = vunpack.c.l.b16 %v3025
    %v3904 = vunpack.c.l.b16 %v3026
    %v3905 = vpack.c.b16 %v3904, %v3903
    %v3923 = vunpack.c.l.b16 %v3885
    %v3924 = vunpack.c.l.b16 %v3886
    %v3925 = vunpack.c.l.b16 %v3887
    %v3926 = vunpack.c.l.b16 %v3888
    %v3927 = vunpack.c.l.b16 %v3889
    %v3928 = vunpack.c.l.b16 %v3890
    %v3929 = vunpack.c.l.b16 %v3891
    %v3930 = vunpack.c.l.b16 %v3892
    %v3931 = vunpack.c.l.b16 %v3893
    %v3932 = vunpack.c.l.b16 %v3894
    %v3933 = vunpack.c.l.b16 %v3895
    %v3934 = vunpack.c.l.b16 %v3896
    %v3935 = vunpack.c.l.b16 %v3897
    %v3936 = vunpack.c.l.b16 %v3898
    %v3937 = vunpack.c.l.b16 %v3899
    %v3938 = vunpack.c.l.b16 %v3900
    %v3939 = vpack.c.b16 %v3924, %v3923
    %v3940 = vpack.c.b16 %v3926, %v3925
    %v3941 = vpack.c.b16 %v3928, %v3927
    %v3942 = vpack.c.b16 %v3930, %v3929
    %v3943 = vpack.c.b16 %v3932, %v3931
    %v3944 = vpack.c.b16 %v3934, %v3933
    %v3945 = vpack.c.b16 %v3936, %v3935
    %v3946 = vpack.c.b16 %v3938, %v3937
    %3955 = vmatpush.bf16.msra.mxu0 %v3946
    %3956 = vmatpush.bf16.msra.mxu0 %v3945
    %3957 = vmatpush.bf16.msra.mxu0 %v3944
    %3958 = vmatpush.bf16.msra.mxu0 %v3943
    %3959 = vmatpush.bf16.msra.mxu0 %v3942
    %3960 = vmatpush.bf16.msra.mxu0 %v3941
    %3961 = vmatpush.bf16.msra.mxu0 %v3940
    %3962 = vmatpush.bf16.msra.mxu0 %v3939
    %3963 = vmatmul.bf16.gmra.mxu0 %v3121
    %v3964 = vpop.f32.mrf.mxu0
    %v3965 = vadd.f32 0.0, %v3964
    %v3966 = vpop.f32.mrf.mxu0
    %v3967 = vadd.f32 0.0, %v3966
    %3968 = vmatmul.bf16.gmra.mxu0 %v3122
    %v3969 = vpop.f32.mrf.mxu0
    %v3970 = vadd.f32 0.0, %v3969
    %v3971 = vpop.f32.mrf.mxu0
    %v3972 = vadd.f32 0.0, %v3971
    %3973 = vmatmul.bf16.gmra.mxu0 %v3123
    %v3974 = vpop.f32.mrf.mxu0
    %v3975 = vadd.f32 0.0, %v3974
    %v3976 = vpop.f32.mrf.mxu0
    %v3977 = vadd.f32 0.0, %v3976
    %3978 = vmatmul.bf16.gmra.mxu0 %v3124
    %v3979 = vpop.f32.mrf.mxu0
    %v3980 = vadd.f32 0.0, %v3979
    %v3981 = vpop.f32.mrf.mxu0
    %v3982 = vadd.f32 0.0, %v3981
    %3983 = vmatmul.bf16.gmra.mxu0 %v3125
    %v3984 = vpop.f32.mrf.mxu0
    %v3985 = vadd.f32 0.0, %v3984
    %v3986 = vpop.f32.mrf.mxu0
    %v3987 = vadd.f32 0.0, %v3986
    %3988 = vmatmul.bf16.gmra.mxu0 %v3126
    %v3989 = vpop.f32.mrf.mxu0
    %v3990 = vadd.f32 0.0, %v3989
    %v3991 = vpop.f32.mrf.mxu0
    %v3992 = vadd.f32 0.0, %v3991
    %3993 = vmatmul.bf16.gmra.mxu0 %v3127
    %v3994 = vpop.f32.mrf.mxu0
    %v3995 = vadd.f32 0.0, %v3994
    %v3996 = vpop.f32.mrf.mxu0
    %v3997 = vadd.f32 0.0, %v3996
    %3998 = vmatmul.bf16.gmra.mxu0 %v3128
    %v3999 = vpop.f32.mrf.mxu0
    %v4000 = vadd.f32 0.0, %v3999
    %v4001 = vpop.f32.mrf.mxu0
    %v4002 = vadd.f32 0.0, %v4001
    %4003 = vmatmul.bf16.gmra.mxu0 %v3611
    %v4004 = vpop.f32.mrf.mxu0
    %v4005 = vadd.f32 0.0, %v4004
    %v4006 = vpop.f32.mrf.mxu0
    %v4007 = vadd.f32 0.0, %v4006
    %4008 = vmatmul.bf16.gmra.mxu0 %v3905
    %v4009 = vpop.f32.mrf.mxu0
    %v4010 = vadd.f32 0.0, %v4009
    %v4011 = vpop.f32.mrf.mxu0
    %v4012 = vadd.f32 0.0, %v4011
    %4013 = vdwg.mxu0
    %v4014 = vadd.f32 %v3720, %v3965
    %v4015 = vadd.f32 %v3721, %v3967
    %v4016 = vadd.f32 %v3722, %v3970
    %v4017 = vadd.f32 %v3723, %v3972
    %v4018 = vadd.f32 %v3724, %v3975
    %v4019 = vadd.f32 %v3725, %v3977
    %v4020 = vadd.f32 %v3726, %v3980
    %v4021 = vadd.f32 %v3727, %v3982
    %v4022 = vadd.f32 %v3728, %v3985
    %v4023 = vadd.f32 %v3729, %v3987
    %v4024 = vadd.f32 %v3730, %v3990
    %v4025 = vadd.f32 %v3731, %v3992
    %v4026 = vadd.f32 %v3732, %v3995
    %v4027 = vadd.f32 %v3733, %v3997
    %v4028 = vadd.f32 %v3734, %v4000
    %v4029 = vadd.f32 %v3735, %v4002
    %v4030 = vadd.f32 %v3736, %v4005
    %v4031 = vadd.f32 %v3737, %v4007
    %v4032 = vadd.f32 %v3738, %v4010
    %v4033 = vadd.f32 %v3739, %v4012
    %s4034 = scalar_lea.vmem [#allocation2], 448
    %v4035 = vld [vmem:[%s4034] sm:$0xf]
    %v4036 = vld [vmem:[%s4034 + $0x4] sm:$0xf]
    %v4037 = vld [vmem:[%s4034 + $0x8] sm:$0xf]
    %v4038 = vld [vmem:[%s4034 + $0xc] sm:$0xf]
    %v4039 = vld [vmem:[%s4034 + $0x10] sm:$0xf]
    %v4040 = vld [vmem:[%s4034 + $0x14] sm:$0xf]
    %v4041 = vld [vmem:[%s4034 + $0x18] sm:$0xf]
    %v4042 = vld [vmem:[%s4034 + $0x1c] sm:$0xf]
    %v4043 = vld [vmem:[%s4034 + $0x20] sm:$0xf]
    %v4044 = vld [vmem:[%s4034 + $0x24] sm:$0xf]
    %v4045 = vld [vmem:[%s4034 + $0x28] sm:$0xf]
    %v4046 = vld [vmem:[%s4034 + $0x2c] sm:$0xf]
    %v4047 = vld [vmem:[%s4034 + $0x30] sm:$0xf]
    %v4048 = vld [vmem:[%s4034 + $0x34] sm:$0xf]
    %v4049 = vld [vmem:[%s4034 + $0x38] sm:$0xf]
    %v4050 = vld [vmem:[%s4034 + $0x3c] sm:$0xf]
    %v4067 = vunpack.c.l.b16 %v4035
    %v4068 = vunpack.c.l.b16 %v4036
    %v4069 = vunpack.c.l.b16 %v4037
    %v4070 = vunpack.c.l.b16 %v4038
    %v4071 = vunpack.c.l.b16 %v4039
    %v4072 = vunpack.c.l.b16 %v4040
    %v4073 = vunpack.c.l.b16 %v4041
    %v4074 = vunpack.c.l.b16 %v4042
    %v4075 = vunpack.c.l.b16 %v4043
    %v4076 = vunpack.c.l.b16 %v4044
    %v4077 = vunpack.c.l.b16 %v4045
    %v4078 = vunpack.c.l.b16 %v4046
    %v4079 = vunpack.c.l.b16 %v4047
    %v4080 = vunpack.c.l.b16 %v4048
    %v4081 = vunpack.c.l.b16 %v4049
    %v4082 = vunpack.c.l.b16 %v4050
    %v4083 = vpack.c.b16 %v4068, %v4067
    %v4084 = vpack.c.b16 %v4070, %v4069
    %v4085 = vpack.c.b16 %v4072, %v4071
    %v4086 = vpack.c.b16 %v4074, %v4073
    %v4087 = vpack.c.b16 %v4076, %v4075
    %v4088 = vpack.c.b16 %v4078, %v4077
    %v4089 = vpack.c.b16 %v4080, %v4079
    %v4090 = vpack.c.b16 %v4082, %v4081
    %4099 = vmatpush.bf16.msra.mxu0 %v4090
    %4100 = vmatpush.bf16.msra.mxu0 %v4089
    %4101 = vmatpush.bf16.msra.mxu0 %v4088
    %4102 = vmatpush.bf16.msra.mxu0 %v4087
    %4103 = vmatpush.bf16.msra.mxu0 %v4086
    %4104 = vmatpush.bf16.msra.mxu0 %v4085
    %4105 = vmatpush.bf16.msra.mxu0 %v4084
    %4106 = vmatpush.bf16.msra.mxu0 %v4083
    %4107 = vmatmul.bf16.gmra.mxu0 %v3121
    %v4108 = vpop.f32.mrf.mxu0
    %v4109 = vadd.f32 0.0, %v4108
    %v4110 = vpop.f32.mrf.mxu0
    %v4111 = vadd.f32 0.0, %v4110
    %4112 = vmatmul.bf16.gmra.mxu0 %v3122
    %v4113 = vpop.f32.mrf.mxu0
    %v4114 = vadd.f32 0.0, %v4113
    %v4115 = vpop.f32.mrf.mxu0
    %v4116 = vadd.f32 0.0, %v4115
    %4117 = vmatmul.bf16.gmra.mxu0 %v3123
    %v4118 = vpop.f32.mrf.mxu0
    %v4119 = vadd.f32 0.0, %v4118
    %v4120 = vpop.f32.mrf.mxu0
    %v4121 = vadd.f32 0.0, %v4120
    %4122 = vmatmul.bf16.gmra.mxu0 %v3124
    %v4123 = vpop.f32.mrf.mxu0
    %v4124 = vadd.f32 0.0, %v4123
    %v4125 = vpop.f32.mrf.mxu0
    %v4126 = vadd.f32 0.0, %v4125
    %4127 = vmatmul.bf16.gmra.mxu0 %v3125
    %v4128 = vpop.f32.mrf.mxu0
    %v4129 = vadd.f32 0.0, %v4128
    %v4130 = vpop.f32.mrf.mxu0
    %v4131 = vadd.f32 0.0, %v4130
    %4132 = vmatmul.bf16.gmra.mxu0 %v3126
    %v4133 = vpop.f32.mrf.mxu0
    %v4134 = vadd.f32 0.0, %v4133
    %v4135 = vpop.f32.mrf.mxu0
    %v4136 = vadd.f32 0.0, %v4135
    %4137 = vmatmul.bf16.gmra.mxu0 %v3127
    %v4138 = vpop.f32.mrf.mxu0
    %v4139 = vadd.f32 0.0, %v4138
    %v4140 = vpop.f32.mrf.mxu0
    %v4141 = vadd.f32 0.0, %v4140
    %4142 = vmatmul.bf16.gmra.mxu0 %v3128
    %v4143 = vpop.f32.mrf.mxu0
    %v4144 = vadd.f32 0.0, %v4143
    %v4145 = vpop.f32.mrf.mxu0
    %v4146 = vadd.f32 0.0, %v4145
    %4147 = vmatmul.bf16.gmra.mxu0 %v3611
    %v4148 = vpop.f32.mrf.mxu0
    %v4149 = vadd.f32 0.0, %v4148
    %v4150 = vpop.f32.mrf.mxu0
    %v4151 = vadd.f32 0.0, %v4150
    %4152 = vmatmul.bf16.gmra.mxu0 %v3905
    %v4153 = vpop.f32.mrf.mxu0
    %v4154 = vadd.f32 0.0, %v4153
    %v4155 = vpop.f32.mrf.mxu0
    %v4156 = vadd.f32 0.0, %v4155
    %4157 = vdwg.mxu0
    %v4158 = vadd.f32 %v3864, %v4109
    %v4159 = vadd.f32 %v3865, %v4111
    %v4160 = vadd.f32 %v3866, %v4114
    %v4161 = vadd.f32 %v3867, %v4116
    %v4162 = vadd.f32 %v3868, %v4119
    %v4163 = vadd.f32 %v3869, %v4121
    %v4164 = vadd.f32 %v3870, %v4124
    %v4165 = vadd.f32 %v3871, %v4126
    %v4166 = vadd.f32 %v3872, %v4129
    %v4167 = vadd.f32 %v3873, %v4131
    %v4168 = vadd.f32 %v3874, %v4134
    %v4169 = vadd.f32 %v3875, %v4136
    %v4170 = vadd.f32 %v3876, %v4139
    %v4171 = vadd.f32 %v3877, %v4141
    %v4172 = vadd.f32 %v3878, %v4144
    %v4173 = vadd.f32 %v3879, %v4146
    %v4174 = vadd.f32 %v3880, %v4149
    %v4175 = vadd.f32 %v3881, %v4151
    %v4176 = vadd.f32 %v3882, %v4154
    %v4177 = vadd.f32 %v3883, %v4156
    %s4178 = scalar_lea.vmem [#allocation2], 512
    %v4179 = vld [vmem:[%s4178] sm:$0xf]
    %v4180 = vld [vmem:[%s4178 + $0x4] sm:$0xf]
    %v4181 = vld [vmem:[%s4178 + $0x8] sm:$0xf]
    %v4182 = vld [vmem:[%s4178 + $0xc] sm:$0xf]
    %v4183 = vld [vmem:[%s4178 + $0x10] sm:$0xf]
    %v4184 = vld [vmem:[%s4178 + $0x14] sm:$0xf]
    %v4185 = vld [vmem:[%s4178 + $0x18] sm:$0xf]
    %v4186 = vld [vmem:[%s4178 + $0x1c] sm:$0xf]
    %v4187 = vld [vmem:[%s4178 + $0x20] sm:$0xf]
    %v4188 = vld [vmem:[%s4178 + $0x24] sm:$0xf]
    %v4189 = vld [vmem:[%s4178 + $0x28] sm:$0xf]
    %v4190 = vld [vmem:[%s4178 + $0x2c] sm:$0xf]
    %v4191 = vld [vmem:[%s4178 + $0x30] sm:$0xf]
    %v4192 = vld [vmem:[%s4178 + $0x34] sm:$0xf]
    %v4193 = vld [vmem:[%s4178 + $0x38] sm:$0xf]
    %v4194 = vld [vmem:[%s4178 + $0x3c] sm:$0xf]
    %v4197 = vunpack.c.l.b16 %v3027
    %v4198 = vunpack.c.l.b16 %v3028
    %v4199 = vpack.c.b16 %v4198, %v4197
    %v4217 = vunpack.c.l.b16 %v4179
    %v4218 = vunpack.c.l.b16 %v4180
    %v4219 = vunpack.c.l.b16 %v4181
    %v4220 = vunpack.c.l.b16 %v4182
    %v4221 = vunpack.c.l.b16 %v4183
    %v4222 = vunpack.c.l.b16 %v4184
    %v4223 = vunpack.c.l.b16 %v4185
    %v4224 = vunpack.c.l.b16 %v4186
    %v4225 = vunpack.c.l.b16 %v4187
    %v4226 = vunpack.c.l.b16 %v4188
    %v4227 = vunpack.c.l.b16 %v4189
    %v4228 = vunpack.c.l.b16 %v4190
    %v4229 = vunpack.c.l.b16 %v4191
    %v4230 = vunpack.c.l.b16 %v4192
    %v4231 = vunpack.c.l.b16 %v4193
    %v4232 = vunpack.c.l.b16 %v4194
    %v4233 = vpack.c.b16 %v4218, %v4217
    %v4234 = vpack.c.b16 %v4220, %v4219
    %v4235 = vpack.c.b16 %v4222, %v4221
    %v4236 = vpack.c.b16 %v4224, %v4223
    %v4237 = vpack.c.b16 %v4226, %v4225
    %v4238 = vpack.c.b16 %v4228, %v4227
    %v4239 = vpack.c.b16 %v4230, %v4229
    %v4240 = vpack.c.b16 %v4232, %v4231
    %4249 = vmatpush.bf16.msra.mxu0 %v4240
    %4250 = vmatpush.bf16.msra.mxu0 %v4239
    %4251 = vmatpush.bf16.msra.mxu0 %v4238
    %4252 = vmatpush.bf16.msra.mxu0 %v4237
    %4253 = vmatpush.bf16.msra.mxu0 %v4236
    %4254 = vmatpush.bf16.msra.mxu0 %v4235
    %4255 = vmatpush.bf16.msra.mxu0 %v4234
    %4256 = vmatpush.bf16.msra.mxu0 %v4233
    %4257 = vmatmul.bf16.gmra.mxu0 %v3122
    %v4258 = vpop.f32.mrf.mxu0
    %v4259 = vadd.f32 0.0, %v4258
    %v4260 = vpop.f32.mrf.mxu0
    %v4261 = vadd.f32 0.0, %v4260
    %4262 = vmatmul.bf16.gmra.mxu0 %v3123
    %v4263 = vpop.f32.mrf.mxu0
    %v4264 = vadd.f32 0.0, %v4263
    %v4265 = vpop.f32.mrf.mxu0
    %v4266 = vadd.f32 0.0, %v4265
    %4267 = vmatmul.bf16.gmra.mxu0 %v3124
    %v4268 = vpop.f32.mrf.mxu0
    %v4269 = vadd.f32 0.0, %v4268
    %v4270 = vpop.f32.mrf.mxu0
    %v4271 = vadd.f32 0.0, %v4270
    %4272 = vmatmul.bf16.gmra.mxu0 %v3125
    %v4273 = vpop.f32.mrf.mxu0
    %v4274 = vadd.f32 0.0, %v4273
    %v4275 = vpop.f32.mrf.mxu0
    %v4276 = vadd.f32 0.0, %v4275
    %4277 = vmatmul.bf16.gmra.mxu0 %v3126
    %v4278 = vpop.f32.mrf.mxu0
    %v4279 = vadd.f32 0.0, %v4278
    %v4280 = vpop.f32.mrf.mxu0
    %v4281 = vadd.f32 0.0, %v4280
    %4282 = vmatmul.bf16.gmra.mxu0 %v3127
    %v4283 = vpop.f32.mrf.mxu0
    %v4284 = vadd.f32 0.0, %v4283
    %v4285 = vpop.f32.mrf.mxu0
    %v4286 = vadd.f32 0.0, %v4285
    %4287 = vmatmul.bf16.gmra.mxu0 %v3128
    %v4288 = vpop.f32.mrf.mxu0
    %v4289 = vadd.f32 0.0, %v4288
    %v4290 = vpop.f32.mrf.mxu0
    %v4291 = vadd.f32 0.0, %v4290
    %4292 = vmatmul.bf16.gmra.mxu0 %v3611
    %v4293 = vpop.f32.mrf.mxu0
    %v4294 = vadd.f32 0.0, %v4293
    %v4295 = vpop.f32.mrf.mxu0
    %v4296 = vadd.f32 0.0, %v4295
    %4297 = vmatmul.bf16.gmra.mxu0 %v3905
    %v4298 = vpop.f32.mrf.mxu0
    %v4299 = vadd.f32 0.0, %v4298
    %v4300 = vpop.f32.mrf.mxu0
    %v4301 = vadd.f32 0.0, %v4300
    %4302 = vmatmul.bf16.gmra.mxu0 %v4199
    %v4303 = vpop.f32.mrf.mxu0
    %v4304 = vadd.f32 0.0, %v4303
    %v4305 = vpop.f32.mrf.mxu0
    %v4306 = vadd.f32 0.0, %v4305
    %4307 = vdwg.mxu0
    %v4308 = vadd.f32 %v4014, %v4259
    %v4309 = vadd.f32 %v4015, %v4261
    %v4310 = vadd.f32 %v4016, %v4264
    %v4311 = vadd.f32 %v4017, %v4266
    %v4312 = vadd.f32 %v4018, %v4269
    %v4313 = vadd.f32 %v4019, %v4271
    %v4314 = vadd.f32 %v4020, %v4274
    %v4315 = vadd.f32 %v4021, %v4276
    %v4316 = vadd.f32 %v4022, %v4279
    %v4317 = vadd.f32 %v4023, %v4281
    %v4318 = vadd.f32 %v4024, %v4284
    %v4319 = vadd.f32 %v4025, %v4286
    %v4320 = vadd.f32 %v4026, %v4289
    %v4321 = vadd.f32 %v4027, %v4291
    %v4322 = vadd.f32 %v4028, %v4294
    %v4323 = vadd.f32 %v4029, %v4296
    %v4324 = vadd.f32 %v4030, %v4299
    %v4325 = vadd.f32 %v4031, %v4301
    %v4326 = vadd.f32 %v4032, %v4304
    %v4327 = vadd.f32 %v4033, %v4306
    %s4328 = scalar_lea.vmem [#allocation2], 576
    %v4329 = vld [vmem:[%s4328] sm:$0xf]
    %v4330 = vld [vmem:[%s4328 + $0x4] sm:$0xf]
    %v4331 = vld [vmem:[%s4328 + $0x8] sm:$0xf]
    %v4332 = vld [vmem:[%s4328 + $0xc] sm:$0xf]
    %v4333 = vld [vmem:[%s4328 + $0x10] sm:$0xf]
    %v4334 = vld [vmem:[%s4328 + $0x14] sm:$0xf]
    %v4335 = vld [vmem:[%s4328 + $0x18] sm:$0xf]
    %v4336 = vld [vmem:[%s4328 + $0x1c] sm:$0xf]
    %v4337 = vld [vmem:[%s4328 + $0x20] sm:$0xf]
    %v4338 = vld [vmem:[%s4328 + $0x24] sm:$0xf]
    %v4339 = vld [vmem:[%s4328 + $0x28] sm:$0xf]
    %v4340 = vld [vmem:[%s4328 + $0x2c] sm:$0xf]
    %v4341 = vld [vmem:[%s4328 + $0x30] sm:$0xf]
    %v4342 = vld [vmem:[%s4328 + $0x34] sm:$0xf]
    %v4343 = vld [vmem:[%s4328 + $0x38] sm:$0xf]
    %v4344 = vld [vmem:[%s4328 + $0x3c] sm:$0xf]
    %v4361 = vunpack.c.l.b16 %v4329
    %v4362 = vunpack.c.l.b16 %v4330
    %v4363 = vunpack.c.l.b16 %v4331
    %v4364 = vunpack.c.l.b16 %v4332
    %v4365 = vunpack.c.l.b16 %v4333
    %v4366 = vunpack.c.l.b16 %v4334
    %v4367 = vunpack.c.l.b16 %v4335
    %v4368 = vunpack.c.l.b16 %v4336
    %v4369 = vunpack.c.l.b16 %v4337
    %v4370 = vunpack.c.l.b16 %v4338
    %v4371 = vunpack.c.l.b16 %v4339
    %v4372 = vunpack.c.l.b16 %v4340
    %v4373 = vunpack.c.l.b16 %v4341
    %v4374 = vunpack.c.l.b16 %v4342
    %v4375 = vunpack.c.l.b16 %v4343
    %v4376 = vunpack.c.l.b16 %v4344
    %v4377 = vpack.c.b16 %v4362, %v4361
    %v4378 = vpack.c.b16 %v4364, %v4363
    %v4379 = vpack.c.b16 %v4366, %v4365
    %v4380 = vpack.c.b16 %v4368, %v4367
    %v4381 = vpack.c.b16 %v4370, %v4369
    %v4382 = vpack.c.b16 %v4372, %v4371
    %v4383 = vpack.c.b16 %v4374, %v4373
    %v4384 = vpack.c.b16 %v4376, %v4375
    %4393 = vmatpush.bf16.msra.mxu0 %v4384
    %4394 = vmatpush.bf16.msra.mxu0 %v4383
    %4395 = vmatpush.bf16.msra.mxu0 %v4382
    %4396 = vmatpush.bf16.msra.mxu0 %v4381
    %4397 = vmatpush.bf16.msra.mxu0 %v4380
    %4398 = vmatpush.bf16.msra.mxu0 %v4379
    %4399 = vmatpush.bf16.msra.mxu0 %v4378
    %4400 = vmatpush.bf16.msra.mxu0 %v4377
    %4401 = vmatmul.bf16.gmra.mxu0 %v3122
    %v4402 = vpop.f32.mrf.mxu0
    %v4403 = vadd.f32 0.0, %v4402
    %v4404 = vpop.f32.mrf.mxu0
    %v4405 = vadd.f32 0.0, %v4404
    %4406 = vmatmul.bf16.gmra.mxu0 %v3123
    %v4407 = vpop.f32.mrf.mxu0
    %v4408 = vadd.f32 0.0, %v4407
    %v4409 = vpop.f32.mrf.mxu0
    %v4410 = vadd.f32 0.0, %v4409
    %4411 = vmatmul.bf16.gmra.mxu0 %v3124
    %v4412 = vpop.f32.mrf.mxu0
    %v4413 = vadd.f32 0.0, %v4412
    %v4414 = vpop.f32.mrf.mxu0
    %v4415 = vadd.f32 0.0, %v4414
    %4416 = vmatmul.bf16.gmra.mxu0 %v3125
    %v4417 = vpop.f32.mrf.mxu0
    %v4418 = vadd.f32 0.0, %v4417
    %v4419 = vpop.f32.mrf.mxu0
    %v4420 = vadd.f32 0.0, %v4419
    %4421 = vmatmul.bf16.gmra.mxu0 %v3126
    %v4422 = vpop.f32.mrf.mxu0
    %v4423 = vadd.f32 0.0, %v4422
    %v4424 = vpop.f32.mrf.mxu0
    %v4425 = vadd.f32 0.0, %v4424
    %4426 = vmatmul.bf16.gmra.mxu0 %v3127
    %v4427 = vpop.f32.mrf.mxu0
    %v4428 = vadd.f32 0.0, %v4427
    %v4429 = vpop.f32.mrf.mxu0
    %v4430 = vadd.f32 0.0, %v4429
    %4431 = vmatmul.bf16.gmra.mxu0 %v3128
    %v4432 = vpop.f32.mrf.mxu0
    %v4433 = vadd.f32 0.0, %v4432
    %v4434 = vpop.f32.mrf.mxu0
    %v4435 = vadd.f32 0.0, %v4434
    %4436 = vmatmul.bf16.gmra.mxu0 %v3611
    %v4437 = vpop.f32.mrf.mxu0
    %v4438 = vadd.f32 0.0, %v4437
    %v4439 = vpop.f32.mrf.mxu0
    %v4440 = vadd.f32 0.0, %v4439
    %4441 = vmatmul.bf16.gmra.mxu0 %v3905
    %v4442 = vpop.f32.mrf.mxu0
    %v4443 = vadd.f32 0.0, %v4442
    %v4444 = vpop.f32.mrf.mxu0
    %v4445 = vadd.f32 0.0, %v4444
    %4446 = vmatmul.bf16.gmra.mxu0 %v4199
    %v4447 = vpop.f32.mrf.mxu0
    %v4448 = vadd.f32 0.0, %v4447
    %v4449 = vpop.f32.mrf.mxu0
    %v4450 = vadd.f32 0.0, %v4449
    %4451 = vdwg.mxu0
    %v4452 = vadd.f32 %v4158, %v4403
    %v4453 = vadd.f32 %v4159, %v4405
    %v4454 = vadd.f32 %v4160, %v4408
    %v4455 = vadd.f32 %v4161, %v4410
    %v4456 = vadd.f32 %v4162, %v4413
    %v4457 = vadd.f32 %v4163, %v4415
    %v4458 = vadd.f32 %v4164, %v4418
    %v4459 = vadd.f32 %v4165, %v4420
    %v4460 = vadd.f32 %v4166, %v4423
    %v4461 = vadd.f32 %v4167, %v4425
    %v4462 = vadd.f32 %v4168, %v4428
    %v4463 = vadd.f32 %v4169, %v4430
    %v4464 = vadd.f32 %v4170, %v4433
    %v4465 = vadd.f32 %v4171, %v4435
    %v4466 = vadd.f32 %v4172, %v4438
    %v4467 = vadd.f32 %v4173, %v4440
    %v4468 = vadd.f32 %v4174, %v4443
    %v4469 = vadd.f32 %v4175, %v4445
    %v4470 = vadd.f32 %v4176, %v4448
    %v4471 = vadd.f32 %v4177, %v4450
    %v4472 = vmax.f32 %v4308, %v4452
    %v4473 = vmax.f32 %v4309, %v4453
    %v4474 = vmax.f32 %v4310, %v4454
    %v4475 = vmax.f32 %v4311, %v4455
    %v4476 = vmax.f32 %v4312, %v4456
    %v4477 = vmax.f32 %v4313, %v4457
    %v4478 = vmax.f32 %v4314, %v4458
    %v4479 = vmax.f32 %v4315, %v4459
    %v4480 = vmax.f32 %v4316, %v4460
    %v4481 = vmax.f32 %v4317, %v4461
    %v4482 = vmax.f32 %v4318, %v4462
    %v4483 = vmax.f32 %v4319, %v4463
    %v4484 = vmax.f32 %v4320, %v4464
    %v4485 = vmax.f32 %v4321, %v4465
    %v4486 = vmax.f32 %v4322, %v4466
    %v4487 = vmax.f32 %v4323, %v4467
    %v4488 = vmax.f32 %v4324, %v4468
    %v4489 = vmax.f32 %v4325, %v4469
    %v4490 = vmax.f32 %v4326, %v4470
    %v4491 = vmax.f32 %v4327, %v4471
    %v4492 = vld [vmem:[%s4] sm:$0x1]
    %v4494 = vperm.slane %v4492, 0
    %v4496 = vadd.f32 %v4472, %v4494
    %v4497 = vadd.f32 %v4473, %v4494
    %v4498 = vadd.f32 %v4474, %v4494
    %v4499 = vadd.f32 %v4475, %v4494
    %v4500 = vadd.f32 %v4476, %v4494
    %v4501 = vadd.f32 %v4477, %v4494
    %v4502 = vadd.f32 %v4478, %v4494
    %v4503 = vadd.f32 %v4479, %v4494
    %v4504 = vadd.f32 %v4480, %v4494
    %v4505 = vadd.f32 %v4481, %v4494
    %v4506 = vadd.f32 %v4482, %v4494
    %v4507 = vadd.f32 %v4483, %v4494
    %v4508 = vadd.f32 %v4484, %v4494
    %v4509 = vadd.f32 %v4485, %v4494
    %v4510 = vadd.f32 %v4486, %v4494
    %v4511 = vadd.f32 %v4487, %v4494
    %v4512 = vadd.f32 %v4488, %v4494
    %v4513 = vadd.f32 %v4489, %v4494
    %v4514 = vadd.f32 %v4490, %v4494
    %v4515 = vadd.f32 %v4491, %v4494
    %v4516 = vmax.f32 %v4496, 0.0
    %v4517 = vmax.f32 %v4497, 0.0
    %v4518 = vmax.f32 %v4498, 0.0
    %v4519 = vmax.f32 %v4499, 0.0
    %v4520 = vmax.f32 %v4500, 0.0
    %v4521 = vmax.f32 %v4501, 0.0
    %v4522 = vmax.f32 %v4502, 0.0
    %v4523 = vmax.f32 %v4503, 0.0
    %v4524 = vmax.f32 %v4504, 0.0
    %v4525 = vmax.f32 %v4505, 0.0
    %v4526 = vmax.f32 %v4506, 0.0
    %v4527 = vmax.f32 %v4507, 0.0
    %v4528 = vmax.f32 %v4508, 0.0
    %v4529 = vmax.f32 %v4509, 0.0
    %v4530 = vmax.f32 %v4510, 0.0
    %v4531 = vmax.f32 %v4511, 0.0
    %v4532 = vmax.f32 %v4512, 0.0
    %v4533 = vmax.f32 %v4513, 0.0
    %v4534 = vmax.f32 %v4514, 0.0
    %v4535 = vmax.f32 %v4515, 0.0
    %v4536 = vmax.f32 %v4516, %v4518
    %v4537 = vmax.f32 %v4517, %v4519
    %v4538 = vmax.f32 %v4520, %v4522
    %v4539 = vmax.f32 %v4521, %v4523
    %v4540 = vmax.f32 %v4524, %v4526
    %v4541 = vmax.f32 %v4525, %v4527
    %v4542 = vmax.f32 %v4528, %v4530
    %v4543 = vmax.f32 %v4529, %v4531
    %v4544 = vmax.f32 %v4532, %v4534
    %v4545 = vmax.f32 %v4533, %v4535
    %v4546 = vpack.c.bf16 %v4536, %v4536
    %v4547 = vpack.c.bf16 %v4537, %v4537
    %v4548 = vpack.c.bf16 %v4538, %v4538
    %v4549 = vpack.c.bf16 %v4539, %v4539
    %v4550 = vpack.c.bf16 %v4540, %v4540
    %v4551 = vpack.c.bf16 %v4541, %v4541
    %v4552 = vpack.c.bf16 %v4542, %v4542
    %v4553 = vpack.c.bf16 %v4543, %v4543
    %v4554 = vpack.c.bf16 %v4544, %v4544
    %v4555 = vpack.c.bf16 %v4545, %v4545
    %v4556 = vld [vmem:[#allocation4] sm:$0xf]
    %v4557 = vld [vmem:[#allocation4 + $0x4] sm:$0xf]
    %v4558 = vld [vmem:[#allocation4 + $0x8] sm:$0xf]
    %v4559 = vld [vmem:[#allocation4 + $0xc] sm:$0xf]
    %v4560 = vld [vmem:[#allocation4 + $0x10] sm:$0xf]
    %v4561 = vld [vmem:[#allocation4 + $0x14] sm:$0xf]
    %v4562 = vld [vmem:[#allocation4 + $0x18] sm:$0xf]
    %v4563 = vld [vmem:[#allocation4 + $0x1c] sm:$0xf]
    %v4564 = vld [vmem:[#allocation4 + $0x20] sm:$0xf]
    %v4565 = vld [vmem:[#allocation4 + $0x24] sm:$0xf]
    %v4566 = vld [vmem:[#allocation4 + $0x28] sm:$0xf]
    %v4567 = vld [vmem:[#allocation4 + $0x2c] sm:$0xf]
    %v4568 = vld [vmem:[#allocation4 + $0x30] sm:$0xf]
    %v4569 = vld [vmem:[#allocation4 + $0x34] sm:$0xf]
    %v4570 = vld [vmem:[#allocation4 + $0x38] sm:$0xf]
    %v4571 = vld [vmem:[#allocation4 + $0x3c] sm:$0xf]
    %s4572 = scalar_lea.vmem [#allocation4], 64
    %v4573 = vld [vmem:[%s4572] sm:$0xf]
    %v4574 = vld [vmem:[%s4572 + $0x4] sm:$0xf]
    %v4575 = vld [vmem:[%s4572 + $0x8] sm:$0xf]
    %v4576 = vld [vmem:[%s4572 + $0xc] sm:$0xf]
    %v4577 = vld [vmem:[%s4572 + $0x10] sm:$0xf]
    %v4578 = vld [vmem:[%s4572 + $0x14] sm:$0xf]
    %v4579 = vld [vmem:[%s4572 + $0x18] sm:$0xf]
    %v4580 = vld [vmem:[%s4572 + $0x1c] sm:$0xf]
    %v4581 = vld [vmem:[%s4572 + $0x20] sm:$0xf]
    %v4582 = vld [vmem:[%s4572 + $0x24] sm:$0xf]
    %v4583 = vld [vmem:[%s4572 + $0x28] sm:$0xf]
    %v4584 = vld [vmem:[%s4572 + $0x2c] sm:$0xf]
    %v4585 = vld [vmem:[%s4572 + $0x30] sm:$0xf]
    %v4586 = vld [vmem:[%s4572 + $0x34] sm:$0xf]
    %v4587 = vld [vmem:[%s4572 + $0x38] sm:$0xf]
    %v4588 = vld [vmem:[%s4572 + $0x3c] sm:$0xf]
    %v4591 = vunpack.c.l.b16 %v4548
    %v4592 = vunpack.c.l.b16 %v4549
    %v4593 = vpack.c.b16 %v4592, %v4591
    %v4611 = vunpack.c.l.b16 %v4573
    %v4612 = vunpack.c.l.b16 %v4574
    %v4613 = vunpack.c.l.b16 %v4575
    %v4614 = vunpack.c.l.b16 %v4576
    %v4615 = vunpack.c.l.b16 %v4577
    %v4616 = vunpack.c.l.b16 %v4578
    %v4617 = vunpack.c.l.b16 %v4579
    %v4618 = vunpack.c.l.b16 %v4580
    %v4619 = vunpack.c.l.b16 %v4581
    %v4620 = vunpack.c.l.b16 %v4582
    %v4621 = vunpack.c.l.b16 %v4583
    %v4622 = vunpack.c.l.b16 %v4584
    %v4623 = vunpack.c.l.b16 %v4585
    %v4624 = vunpack.c.l.b16 %v4586
    %v4625 = vunpack.c.l.b16 %v4587
    %v4626 = vunpack.c.l.b16 %v4588
    %v4627 = vpack.c.b16 %v4612, %v4611
    %v4628 = vpack.c.b16 %v4614, %v4613
    %v4629 = vpack.c.b16 %v4616, %v4615
    %v4630 = vpack.c.b16 %v4618, %v4617
    %v4631 = vpack.c.b16 %v4620, %v4619
    %v4632 = vpack.c.b16 %v4622, %v4621
    %v4633 = vpack.c.b16 %v4624, %v4623
    %v4634 = vpack.c.b16 %v4626, %v4625
    %4643 = vmatpush.bf16.msra.mxu0 %v4634
    %4644 = vmatpush.bf16.msra.mxu0 %v4633
    %4645 = vmatpush.bf16.msra.mxu0 %v4632
    %4646 = vmatpush.bf16.msra.mxu0 %v4631
    %4647 = vmatpush.bf16.msra.mxu0 %v4630
    %4648 = vmatpush.bf16.msra.mxu0 %v4629
    %4649 = vmatpush.bf16.msra.mxu0 %v4628
    %4650 = vmatpush.bf16.msra.mxu0 %v4627
    %4651 = vmatmul.bf16.gmra.mxu0 %v4593
    %v4652 = vpop.f32.mrf.mxu0
    %v4653 = vadd.f32 0.0, %v4652
    %v4654 = vpop.f32.mrf.mxu0
    %v4655 = vadd.f32 0.0, %v4654
    %4656 = vdwg.mxu0
    %v4659 = vunpack.c.l.b16 %v4546
    %v4660 = vunpack.c.l.b16 %v4547
    %v4661 = vpack.c.b16 %v4660, %v4659
    %v4679 = vunpack.c.l.b16 %v4556
    %v4680 = vunpack.c.l.b16 %v4557
    %v4681 = vunpack.c.l.b16 %v4558
    %v4682 = vunpack.c.l.b16 %v4559
    %v4683 = vunpack.c.l.b16 %v4560
    %v4684 = vunpack.c.l.b16 %v4561
    %v4685 = vunpack.c.l.b16 %v4562
    %v4686 = vunpack.c.l.b16 %v4563
    %v4687 = vunpack.c.l.b16 %v4564
    %v4688 = vunpack.c.l.b16 %v4565
    %v4689 = vunpack.c.l.b16 %v4566
    %v4690 = vunpack.c.l.b16 %v4567
    %v4691 = vunpack.c.l.b16 %v4568
    %v4692 = vunpack.c.l.b16 %v4569
    %v4693 = vunpack.c.l.b16 %v4570
    %v4694 = vunpack.c.l.b16 %v4571
    %v4695 = vpack.c.b16 %v4680, %v4679
    %v4696 = vpack.c.b16 %v4682, %v4681
    %v4697 = vpack.c.b16 %v4684, %v4683
    %v4698 = vpack.c.b16 %v4686, %v4685
    %v4699 = vpack.c.b16 %v4688, %v4687
    %v4700 = vpack.c.b16 %v4690, %v4689
    %v4701 = vpack.c.b16 %v4692, %v4691
    %v4702 = vpack.c.b16 %v4694, %v4693
    %4711 = vmatpush.bf16.msra.mxu0 %v4702
    %4712 = vmatpush.bf16.msra.mxu0 %v4701
    %4713 = vmatpush.bf16.msra.mxu0 %v4700
    %4714 = vmatpush.bf16.msra.mxu0 %v4699
    %4715 = vmatpush.bf16.msra.mxu0 %v4698
    %4716 = vmatpush.bf16.msra.mxu0 %v4697
    %4717 = vmatpush.bf16.msra.mxu0 %v4696
    %4718 = vmatpush.bf16.msra.mxu0 %v4695
    %4719 = vmatmul.bf16.gmra.mxu0 %v4661
    %v4720 = vpop.f32.mrf.mxu0
    %v4721 = vadd.f32 %v4653, %v4720
    %v4722 = vpop.f32.mrf.mxu0
    %v4723 = vadd.f32 %v4655, %v4722
    %4724 = vdwg.mxu0
    %s4725 = scalar_lea.vmem [#allocation4], 128
    %v4726 = vld [vmem:[%s4725] sm:$0xf]
    %v4727 = vld [vmem:[%s4725 + $0x4] sm:$0xf]
    %v4728 = vld [vmem:[%s4725 + $0x8] sm:$0xf]
    %v4729 = vld [vmem:[%s4725 + $0xc] sm:$0xf]
    %v4730 = vld [vmem:[%s4725 + $0x10] sm:$0xf]
    %v4731 = vld [vmem:[%s4725 + $0x14] sm:$0xf]
    %v4732 = vld [vmem:[%s4725 + $0x18] sm:$0xf]
    %v4733 = vld [vmem:[%s4725 + $0x1c] sm:$0xf]
    %v4734 = vld [vmem:[%s4725 + $0x20] sm:$0xf]
    %v4735 = vld [vmem:[%s4725 + $0x24] sm:$0xf]
    %v4736 = vld [vmem:[%s4725 + $0x28] sm:$0xf]
    %v4737 = vld [vmem:[%s4725 + $0x2c] sm:$0xf]
    %v4738 = vld [vmem:[%s4725 + $0x30] sm:$0xf]
    %v4739 = vld [vmem:[%s4725 + $0x34] sm:$0xf]
    %v4740 = vld [vmem:[%s4725 + $0x38] sm:$0xf]
    %v4741 = vld [vmem:[%s4725 + $0x3c] sm:$0xf]
    %v4744 = vunpack.c.l.b16 %v4550
    %v4745 = vunpack.c.l.b16 %v4551
    %v4746 = vpack.c.b16 %v4745, %v4744
    %v4764 = vunpack.c.l.b16 %v4726
    %v4765 = vunpack.c.l.b16 %v4727
    %v4766 = vunpack.c.l.b16 %v4728
    %v4767 = vunpack.c.l.b16 %v4729
    %v4768 = vunpack.c.l.b16 %v4730
    %v4769 = vunpack.c.l.b16 %v4731
    %v4770 = vunpack.c.l.b16 %v4732
    %v4771 = vunpack.c.l.b16 %v4733
    %v4772 = vunpack.c.l.b16 %v4734
    %v4773 = vunpack.c.l.b16 %v4735
    %v4774 = vunpack.c.l.b16 %v4736
    %v4775 = vunpack.c.l.b16 %v4737
    %v4776 = vunpack.c.l.b16 %v4738
    %v4777 = vunpack.c.l.b16 %v4739
    %v4778 = vunpack.c.l.b16 %v4740
    %v4779 = vunpack.c.l.b16 %v4741
    %v4780 = vpack.c.b16 %v4765, %v4764
    %v4781 = vpack.c.b16 %v4767, %v4766
    %v4782 = vpack.c.b16 %v4769, %v4768
    %v4783 = vpack.c.b16 %v4771, %v4770
    %v4784 = vpack.c.b16 %v4773, %v4772
    %v4785 = vpack.c.b16 %v4775, %v4774
    %v4786 = vpack.c.b16 %v4777, %v4776
    %v4787 = vpack.c.b16 %v4779, %v4778
    %4796 = vmatpush.bf16.msra.mxu0 %v4787
    %4797 = vmatpush.bf16.msra.mxu0 %v4786
    %4798 = vmatpush.bf16.msra.mxu0 %v4785
    %4799 = vmatpush.bf16.msra.mxu0 %v4784
    %4800 = vmatpush.bf16.msra.mxu0 %v4783
    %4801 = vmatpush.bf16.msra.mxu0 %v4782
    %4802 = vmatpush.bf16.msra.mxu0 %v4781
    %4803 = vmatpush.bf16.msra.mxu0 %v4780
    %4804 = vmatmul.bf16.gmra.mxu0 %v4746
    %v4805 = vpop.f32.mrf.mxu0
    %v4806 = vadd.f32 0.0, %v4805
    %v4807 = vpop.f32.mrf.mxu0
    %v4808 = vadd.f32 0.0, %v4807
    %4809 = vdwg.mxu0
    %v4810 = vadd.f32 %v4721, %v4806
    %v4811 = vadd.f32 %v4723, %v4808
    %s4812 = scalar_lea.vmem [#allocation4], 192
    %v4813 = vld [vmem:[%s4812] sm:$0xf]
    %v4814 = vld [vmem:[%s4812 + $0x4] sm:$0xf]
    %v4815 = vld [vmem:[%s4812 + $0x8] sm:$0xf]
    %v4816 = vld [vmem:[%s4812 + $0xc] sm:$0xf]
    %v4817 = vld [vmem:[%s4812 + $0x10] sm:$0xf]
    %v4818 = vld [vmem:[%s4812 + $0x14] sm:$0xf]
    %v4819 = vld [vmem:[%s4812 + $0x18] sm:$0xf]
    %v4820 = vld [vmem:[%s4812 + $0x1c] sm:$0xf]
    %v4821 = vld [vmem:[%s4812 + $0x20] sm:$0xf]
    %v4822 = vld [vmem:[%s4812 + $0x24] sm:$0xf]
    %v4823 = vld [vmem:[%s4812 + $0x28] sm:$0xf]
    %v4824 = vld [vmem:[%s4812 + $0x2c] sm:$0xf]
    %v4825 = vld [vmem:[%s4812 + $0x30] sm:$0xf]
    %v4826 = vld [vmem:[%s4812 + $0x34] sm:$0xf]
    %v4827 = vld [vmem:[%s4812 + $0x38] sm:$0xf]
    %v4828 = vld [vmem:[%s4812 + $0x3c] sm:$0xf]
    %v4831 = vunpack.c.l.b16 %v4552
    %v4832 = vunpack.c.l.b16 %v4553
    %v4833 = vpack.c.b16 %v4832, %v4831
    %v4851 = vunpack.c.l.b16 %v4813
    %v4852 = vunpack.c.l.b16 %v4814
    %v4853 = vunpack.c.l.b16 %v4815
    %v4854 = vunpack.c.l.b16 %v4816
    %v4855 = vunpack.c.l.b16 %v4817
    %v4856 = vunpack.c.l.b16 %v4818
    %v4857 = vunpack.c.l.b16 %v4819
    %v4858 = vunpack.c.l.b16 %v4820
    %v4859 = vunpack.c.l.b16 %v4821
    %v4860 = vunpack.c.l.b16 %v4822
    %v4861 = vunpack.c.l.b16 %v4823
    %v4862 = vunpack.c.l.b16 %v4824
    %v4863 = vunpack.c.l.b16 %v4825
    %v4864 = vunpack.c.l.b16 %v4826
    %v4865 = vunpack.c.l.b16 %v4827
    %v4866 = vunpack.c.l.b16 %v4828
    %v4867 = vpack.c.b16 %v4852, %v4851
    %v4868 = vpack.c.b16 %v4854, %v4853
    %v4869 = vpack.c.b16 %v4856, %v4855
    %v4870 = vpack.c.b16 %v4858, %v4857
    %v4871 = vpack.c.b16 %v4860, %v4859
    %v4872 = vpack.c.b16 %v4862, %v4861
    %v4873 = vpack.c.b16 %v4864, %v4863
    %v4874 = vpack.c.b16 %v4866, %v4865
    %4883 = vmatpush.bf16.msra.mxu0 %v4874
    %4884 = vmatpush.bf16.msra.mxu0 %v4873
    %4885 = vmatpush.bf16.msra.mxu0 %v4872
    %4886 = vmatpush.bf16.msra.mxu0 %v4871
    %4887 = vmatpush.bf16.msra.mxu0 %v4870
    %4888 = vmatpush.bf16.msra.mxu0 %v4869
    %4889 = vmatpush.bf16.msra.mxu0 %v4868
    %4890 = vmatpush.bf16.msra.mxu0 %v4867
    %4891 = vmatmul.bf16.gmra.mxu0 %v4833
    %v4892 = vpop.f32.mrf.mxu0
    %v4893 = vadd.f32 0.0, %v4892
    %v4894 = vpop.f32.mrf.mxu0
    %v4895 = vadd.f32 0.0, %v4894
    %4896 = vdwg.mxu0
    %v4897 = vadd.f32 %v4810, %v4893
    %v4898 = vadd.f32 %v4811, %v4895
    %s4899 = scalar_lea.vmem [#allocation4], 256
    %v4900 = vld [vmem:[%s4899] sm:$0xf]
    %v4901 = vld [vmem:[%s4899 + $0x4] sm:$0xf]
    %v4902 = vld [vmem:[%s4899 + $0x8] sm:$0xf]
    %v4903 = vld [vmem:[%s4899 + $0xc] sm:$0xf]
    %v4904 = vld [vmem:[%s4899 + $0x10] sm:$0xf]
    %v4905 = vld [vmem:[%s4899 + $0x14] sm:$0xf]
    %v4906 = vld [vmem:[%s4899 + $0x18] sm:$0xf]
    %v4907 = vld [vmem:[%s4899 + $0x1c] sm:$0xf]
    %v4908 = vld [vmem:[%s4899 + $0x20] sm:$0xf]
    %v4909 = vld [vmem:[%s4899 + $0x24] sm:$0xf]
    %v4910 = vld [vmem:[%s4899 + $0x28] sm:$0xf]
    %v4911 = vld [vmem:[%s4899 + $0x2c] sm:$0xf]
    %v4912 = vld [vmem:[%s4899 + $0x30] sm:$0xf]
    %v4913 = vld [vmem:[%s4899 + $0x34] sm:$0xf]
    %v4914 = vld [vmem:[%s4899 + $0x38] sm:$0xf]
    %v4915 = vld [vmem:[%s4899 + $0x3c] sm:$0xf]
    %v4918 = vunpack.c.l.b16 %v4554
    %v4919 = vunpack.c.l.b16 %v4555
    %v4920 = vpack.c.b16 %v4919, %v4918
    %v4938 = vunpack.c.l.b16 %v4900
    %v4939 = vunpack.c.l.b16 %v4901
    %v4940 = vunpack.c.l.b16 %v4902
    %v4941 = vunpack.c.l.b16 %v4903
    %v4942 = vunpack.c.l.b16 %v4904
    %v4943 = vunpack.c.l.b16 %v4905
    %v4944 = vunpack.c.l.b16 %v4906
    %v4945 = vunpack.c.l.b16 %v4907
    %v4946 = vunpack.c.l.b16 %v4908
    %v4947 = vunpack.c.l.b16 %v4909
    %v4948 = vunpack.c.l.b16 %v4910
    %v4949 = vunpack.c.l.b16 %v4911
    %v4950 = vunpack.c.l.b16 %v4912
    %v4951 = vunpack.c.l.b16 %v4913
    %v4952 = vunpack.c.l.b16 %v4914
    %v4953 = vunpack.c.l.b16 %v4915
    %v4954 = vpack.c.b16 %v4939, %v4938
    %v4955 = vpack.c.b16 %v4941, %v4940
    %v4956 = vpack.c.b16 %v4943, %v4942
    %v4957 = vpack.c.b16 %v4945, %v4944
    %v4958 = vpack.c.b16 %v4947, %v4946
    %v4959 = vpack.c.b16 %v4949, %v4948
    %v4960 = vpack.c.b16 %v4951, %v4950
    %v4961 = vpack.c.b16 %v4953, %v4952
    %4970 = vmatpush.bf16.msra.mxu0 %v4961
    %4971 = vmatpush.bf16.msra.mxu0 %v4960
    %4972 = vmatpush.bf16.msra.mxu0 %v4959
    %4973 = vmatpush.bf16.msra.mxu0 %v4958
    %4974 = vmatpush.bf16.msra.mxu0 %v4957
    %4975 = vmatpush.bf16.msra.mxu0 %v4956
    %4976 = vmatpush.bf16.msra.mxu0 %v4955
    %4977 = vmatpush.bf16.msra.mxu0 %v4954
    %4978 = vmatmul.bf16.gmra.mxu0 %v4920
    %v4979 = vpop.f32.mrf.mxu0
    %v4980 = vadd.f32 0.0, %v4979
    %v4981 = vpop.f32.mrf.mxu0
    %v4982 = vadd.f32 0.0, %v4981
    %4983 = vdwg.mxu0
    %v4984 = vadd.f32 %v4897, %v4980
    %v4985 = vadd.f32 %v4898, %v4982
    %v4986 = vld [vmem:[%s6] sm:$0x1]
    %v4988 = vperm.slane %v4986, 0
    %v4990 = vadd.f32 %v4984, %v4988
    %v4991 = vadd.f32 %v4985, %v4988
    %v4992 = vmax.f32 %v4990, 0.0
    %v4993 = vmax.f32 %v4991, 0.0
    %v4994 = vpack.c.bf16 %v4993, %v4992
    %v4995 = vld [vmem:[%s7] sm:$0xf]
    %v4996 = vld [vmem:[%s7 + $0x4] sm:$0xf]
    %v4997 = vld [vmem:[%s7 + $0x8] sm:$0xf]
    %v4998 = vld [vmem:[%s7 + $0xc] sm:$0xf]
    %v4999 = vld [vmem:[%s7 + $0x10] sm:$0xf]
    %v5000 = vld [vmem:[%s7 + $0x14] sm:$0xf]
    %v5001 = vld [vmem:[%s7 + $0x18] sm:$0xf]
    %v5002 = vld [vmem:[%s7 + $0x1c] sm:$0xf]
    %v5003 = vld [vmem:[%s7 + $0x20] sm:$0xf]
    %v5004 = vld [vmem:[%s7 + $0x24] sm:$0xf]
    %v5005 = vld [vmem:[%s7 + $0x28] sm:$0xf]
    %v5006 = vld [vmem:[%s7 + $0x2c] sm:$0xf]
    %v5007 = vld [vmem:[%s7 + $0x30] sm:$0xf]
    %v5008 = vld [vmem:[%s7 + $0x34] sm:$0xf]
    %v5009 = vld [vmem:[%s7 + $0x38] sm:$0xf]
    %v5010 = vld [vmem:[%s7 + $0x3c] sm:$0xf]
    %v5011 = vld [vmem:[%s8] sm:$0x1]
    %v5013 = vperm.slane %v5011, 0
    %v5031 = vunpack.c.l.b16 %v4995
    %v5032 = vunpack.c.l.b16 %v4996
    %v5033 = vunpack.c.l.b16 %v4997
    %v5034 = vunpack.c.l.b16 %v4998
    %v5035 = vunpack.c.l.b16 %v4999
    %v5036 = vunpack.c.l.b16 %v5000
    %v5037 = vunpack.c.l.b16 %v5001
    %v5038 = vunpack.c.l.b16 %v5002
    %v5039 = vunpack.c.l.b16 %v5003
    %v5040 = vunpack.c.l.b16 %v5004
    %v5041 = vunpack.c.l.b16 %v5005
    %v5042 = vunpack.c.l.b16 %v5006
    %v5043 = vunpack.c.l.b16 %v5007
    %v5044 = vunpack.c.l.b16 %v5008
    %v5045 = vunpack.c.l.b16 %v5009
    %v5046 = vunpack.c.l.b16 %v5010
    %v5047 = vpack.c.b16 %v5032, %v5031
    %v5048 = vpack.c.b16 %v5034, %v5033
    %v5049 = vpack.c.b16 %v5036, %v5035
    %v5050 = vpack.c.b16 %v5038, %v5037
    %v5051 = vpack.c.b16 %v5040, %v5039
    %v5052 = vpack.c.b16 %v5042, %v5041
    %v5053 = vpack.c.b16 %v5044, %v5043
    %v5054 = vpack.c.b16 %v5046, %v5045
    %5063 = vmatpush.bf16.msra.mxu0 %v5054
    %5064 = vmatpush.bf16.msra.mxu0 %v5053
    %5065 = vmatpush.bf16.msra.mxu0 %v5052
    %5066 = vmatpush.bf16.msra.mxu0 %v5051
    %5067 = vmatpush.bf16.msra.mxu0 %v5050
    %5068 = vmatpush.bf16.msra.mxu0 %v5049
    %5069 = vmatpush.bf16.msra.mxu0 %v5048
    %5070 = vmatpush.bf16.msra.mxu0 %v5047
    %5071 = vmatmul.bf16.gmra.mxu0 %v4994
    %v5072 = vpop.f32.mrf.mxu0
    %v5073 = vadd.f32 %v5013, %v5072
    %v5074 = vpop.f32.mrf.mxu0
    %v5075 = vadd.f32 %v5013, %v5074
    %5076 = vdwg.mxu0
    %v5077 = vmax.f32 %v5073, 0.0
    %v5078 = vmax.f32 %v5075, 0.0
    %v5079 = vpack.c.bf16 %v5078, %v5077
    %v5080 = vld [vmem:[%s9] sm:$0xf]
    %v5081 = vld [vmem:[%s9 + $0x4] sm:$0xf]
    %v5082 = vld [vmem:[%s9 + $0x8] sm:$0xf]
    %v5083 = vld [vmem:[%s9 + $0xc] sm:$0xf]
    %v5084 = vld [vmem:[%s9 + $0x10] sm:$0xf]
    %v5085 = vld [vmem:[%s9 + $0x14] sm:$0xf]
    %v5086 = vld [vmem:[%s9 + $0x18] sm:$0xf]
    %v5087 = vld [vmem:[%s9 + $0x1c] sm:$0xf]
    %v5088 = vld [vmem:[%s9 + $0x20] sm:$0xf]
    %v5089 = vld [vmem:[%s9 + $0x24] sm:$0xf]
    %v5090 = vld [vmem:[%s9 + $0x28] sm:$0xf]
    %v5091 = vld [vmem:[%s9 + $0x2c] sm:$0xf]
    %v5092 = vld [vmem:[%s9 + $0x30] sm:$0xf]
    %v5093 = vld [vmem:[%s9 + $0x34] sm:$0xf]
    %v5094 = vld [vmem:[%s9 + $0x38] sm:$0xf]
    %v5095 = vld [vmem:[%s9 + $0x3c] sm:$0xf]
    %v5096 = vld [vmem:[%s10] sm:$0x1]
    %v5098 = vperm.slane %v5096, 0
    %v5116 = vunpack.c.l.b16 %v5080
    %v5117 = vunpack.c.l.b16 %v5081
    %v5118 = vunpack.c.l.b16 %v5082
    %v5119 = vunpack.c.l.b16 %v5083
    %v5120 = vunpack.c.l.b16 %v5084
    %v5121 = vunpack.c.l.b16 %v5085
    %v5122 = vunpack.c.l.b16 %v5086
    %v5123 = vunpack.c.l.b16 %v5087
    %v5124 = vunpack.c.l.b16 %v5088
    %v5125 = vunpack.c.l.b16 %v5089
    %v5126 = vunpack.c.l.b16 %v5090
    %v5127 = vunpack.c.l.b16 %v5091
    %v5128 = vunpack.c.l.b16 %v5092
    %v5129 = vunpack.c.l.b16 %v5093
    %v5130 = vunpack.c.l.b16 %v5094
    %v5131 = vunpack.c.l.b16 %v5095
    %v5132 = vpack.c.b16 %v5117, %v5116
    %v5133 = vpack.c.b16 %v5119, %v5118
    %v5134 = vpack.c.b16 %v5121, %v5120
    %v5135 = vpack.c.b16 %v5123, %v5122
    %v5136 = vpack.c.b16 %v5125, %v5124
    %v5137 = vpack.c.b16 %v5127, %v5126
    %v5138 = vpack.c.b16 %v5129, %v5128
    %v5139 = vpack.c.b16 %v5131, %v5130
    %5148 = vmatpush.bf16.msra.mxu0 %v5139
    %5149 = vmatpush.bf16.msra.mxu0 %v5138
    %5150 = vmatpush.bf16.msra.mxu0 %v5137
    %5151 = vmatpush.bf16.msra.mxu0 %v5136
    %5152 = vmatpush.bf16.msra.mxu0 %v5135
    %5153 = vmatpush.bf16.msra.mxu0 %v5134
    %5154 = vmatpush.bf16.msra.mxu0 %v5133
    %5155 = vmatpush.bf16.msra.mxu0 %v5132
    %5156 = vmatmul.bf16.gmra.mxu0 %v5079
    %v5157 = vpop.f32.mrf.mxu0
    %v5158 = vadd.f32 %v5098, %v5157
    %v5159 = vpop.f32.mrf.mxu0
    %v5160 = vadd.f32 %v5098, %v5159
    %5161 = vdwg.mxu0
    %5162 = vst [vmem:[%s11] sm:$0xff] %v5158
    %5163 = vst [vmem:[%s11 + $0x8] sm:$0xff] %v5160
    // Predicated region
    $region54: #{net_cifar10_forward.1} parent=1 // pred_check
      _
    $region55: #{net_cifar10_forward.1} parent=1 // pred_check_branch
      %5165 = sbr.rel (0) target = $region57
    $region56: #{net_cifar10_forward.1} parent=1 // pred_region
      _
    $region57: #{net_cifar10_forward.1} parent=1 // pred_fallthru
      _
    // Predicated region
    $region58: #{net_cifar10_forward.1} parent=1 // pred_check
      _
    $region59: #{net_cifar10_forward.1} parent=1 // pred_check_branch
      %5167 = sbr.rel (0) target = $region61
    $region60: #{net_cifar10_forward.1} parent=1 // pred_region
      _
    $region61: #{net_cifar10_forward.1} parent=1 // pred_fallthru
      _
    %5168 = vsyncpa [#allocation3], 1
    %5169 = vsyncpa [#allocation5], 1

</llo_original>
